<compile_context>
chip_gen: v6e
topology: v6e:2x2x1
jax: 0.10.0
libtpu: 0.0.40
codegen_flags: <defaults>
</compile_context>

<pallas_src>
import functools

import jax
import jax.numpy as jnp
from jax.experimental import pallas as pl
from jax.experimental.pallas import tpu as pltpu


# ----------------------------------------------------------------------------
# Pallas kernel: fused Conv(3x3, BN-scale folded) + shift + ReLU + MaxPool2x2
# ----------------------------------------------------------------------------
def _conv_block_kernel(p0_ref, p1_ref, p2_ref, p3_ref, w_ref, shift_ref, o_ref):
    # p*_ref: (tm, K) im2col patches for the four 2x2-pool corners
    # w_ref:  (K, Cout) weights with BN scale folded in
    # shift_ref: (1, Cout) folded BN shift (incl. conv bias)
    w = w_ref[...]
    y = jnp.dot(p0_ref[...], w, preferred_element_type=jnp.float32)
    y = jnp.maximum(y, jnp.dot(p1_ref[...], w, preferred_element_type=jnp.float32))
    y = jnp.maximum(y, jnp.dot(p2_ref[...], w, preferred_element_type=jnp.float32))
    y = jnp.maximum(y, jnp.dot(p3_ref[...], w, preferred_element_type=jnp.float32))
    # max_c relu(dot_c + shift) == relu(max_c(dot_c) + shift)  (shift is per-channel)
    o_ref[...] = jnp.maximum(y + shift_ref[...], 0.0)


def _pick_tile(m, cap=256):
    """Largest legal row-tile: full extent when small, else a multiple-of-8
    divisor of m capped so double-buffered tiles stay far under VMEM and the
    parallel grid keeps >=2 steps (v7x megacore)."""
    if m <= cap:
        return m
    t = (cap // 8) * 8
    while t >= 8:
        if m % t == 0:
            return t
        t -= 8
    return m  # fallback: single full block


def fused_conv_bn_relu_pool(corners, w_mat, shift, *, matmul_dtype=jnp.float32):
    M, K = corners[0].shape
    Cout = w_mat.shape[1]
    tm = _pick_tile(M)
    grid = (M // tm,)
    corner_spec = pl.BlockSpec((tm, K), lambda i: (i, 0))
    return pl.pallas_call(
        _conv_block_kernel,
        out_shape=jax.ShapeDtypeStruct((M, Cout), jnp.float32),
        grid_spec=pltpu.PrefetchScalarGridSpec(
            num_scalar_prefetch=0,
            grid=grid,
            in_specs=[corner_spec, corner_spec, corner_spec, corner_spec,
                      pl.BlockSpec((K, Cout), lambda i: (0, 0)),
                      pl.BlockSpec((1, Cout), lambda i: (0, 0))],
            out_specs=pl.BlockSpec((tm, Cout), lambda i: (i, 0)),
        ),
        compiler_params=pltpu.CompilerParams(dimension_semantics=("parallel",)),
    )(*(c.astype(matmul_dtype) for c in corners),
      w_mat.astype(matmul_dtype), shift)


# ----------------------------------------------------------------------------
# Glue: corner-ordered im2col, BN folding, backbone, MetaTemplate wrapper
# ----------------------------------------------------------------------------
def _corner_patches(x_nhwc):
    """im2col(3x3, pad=1) split into the four 2x2 max-pool corners.
    Returns 4 arrays of shape (N*(H//2)*(W//2), 9*C)."""
    N, H, W, C = x_nhwc.shape
    xp = jnp.pad(x_nhwc, ((0, 0), (1, 1), (1, 1), (0, 0)))
    cols = [xp[:, dy:dy + H, dx:dx + W, :] for dy in range(3) for dx in range(3)]
    pat = jnp.concatenate(cols, axis=-1)                     # (N,H,W,9C)
    pat = pat.reshape(N, H // 2, 2, W // 2, 2, 9 * C)
    return tuple(
        pat[:, :, di, :, dj, :].reshape(N * (H // 2) * (W // 2), 9 * C)
        for di in (0, 1) for dj in (0, 1)
    )


def conv_block(x_nhwc, params, matmul_dtype=jnp.float32):
    """Conv3x3(pad=1, bias) + BatchNorm(eval) + ReLU + MaxPool2x2, one launch."""
    N, H, W, Cin = x_nhwc.shape
    Hout, Wout = H // 2, W // 2
    w, b, gamma, beta, mean, var = params
    Cout = w.shape[0]
    eps = 1e-5
    scale = gamma / jnp.sqrt(var + eps)                      # fold BN
    shift = beta + scale * (b - mean)
    # torch conv weight (Cout,Cin,kh,kw) -> (kh,kw,Cin,Cout) -> (9*Cin, Cout),
    # BN scale folded into the weights (exact: per-output-channel).
    w_mat = jnp.transpose(w, (2, 3, 1, 0)).reshape(9 * Cin, Cout) * scale[None, :]
    corners = _corner_patches(x_nhwc)
    y = fused_conv_bn_relu_pool(corners, w_mat, shift.reshape(1, Cout),
                                matmul_dtype=matmul_dtype)
    return y.reshape(N, Hout, Wout, Cout)


@functools.partial(jax.jit, static_argnames=("matmul_dtype",))
def _feature_forward_impl(params, x_nchw, matmul_dtype=jnp.float32):
    x = jnp.transpose(x_nchw, (0, 2, 3, 1))                  # NCHW -> NHWC
    for p in params:
        x = conv_block(x, p, matmul_dtype=matmul_dtype)
    x = jnp.transpose(x, (0, 3, 1, 2))                       # back to NCHW
    return x.reshape(x.shape[0], -1)                         # torch-style flatten


def init_block_params(key, cin, cout):
    k1, k2, k3, k4, k5 = jax.random.split(key, 5)
    w = 0.1 * jax.random.normal(k1, (cout, cin, 3, 3), jnp.float32)
    b = 0.05 * jax.random.normal(k2, (cout,), jnp.float32)
    gamma = 1.0 + 0.1 * jax.random.normal(k3, (cout,), jnp.float32)
    beta = 0.1 * jax.random.normal(k4, (cout,), jnp.float32)
    mean = 0.05 * jax.random.normal(k5, (cout,), jnp.float32)
    var = jnp.ones((cout,), jnp.float32)
    return (w, b, gamma, beta, mean, var)


class MetaTemplatePallas:
    """JAX/Pallas port of MetaTemplate: forward(x) = self.feature.forward(x)."""

    def __init__(self, n_way=5, n_support=5, in_channels=4, hidden=32,
                 n_blocks=4, key=jax.random.PRNGKey(0),
                 matmul_dtype=jnp.float32):
        self.n_way = n_way
        self.n_support = n_support
        self.n_query = -1
        self.change_way = True
        # matmul_dtype=jnp.bfloat16 uses the bf16 MXU path on v6e/v7x (f32
        # accumulation + f32 epilogue everywhere); loosen tolerances if used.
        self.matmul_dtype = matmul_dtype
        keys = jax.random.split(key, n_blocks)
        chans = [in_channels] + [hidden] * n_blocks
        self.params = [
            init_block_params(keys[i], chans[i], chans[i + 1])
            for i in range(n_blocks)
        ]
        self.feat_dim = hidden  # spatial collapses to 1x1 for 16x16 input

    def feature_forward(self, x_nchw):
        return _feature_forward_impl(self.params, x_nchw,
                                     matmul_dtype=self.matmul_dtype)

    def forward(self, x_nchw):
        return self.feature_forward(x_nchw)

    def parse_feature(self, x, is_feature=False):
        # faithful to the torch version (pure reshape glue around the kernel)
        if is_feature:
            z_all = x
        else:
            x = x.reshape((self.n_way * (self.n_support + self.n_query),)
                          + x.shape[2:])
            z_all = self.feature_forward(x)
            z_all = z_all.reshape(self.n_way, self.n_support + self.n_query, -1)
        return z_all[:, :self.n_support], z_all[:, self.n_support:]

    # TODO(synk): set_forward / set_forward_loss are @abstractmethod in the
    # torch module (no concrete semantics to port); train/test loops and
    # set_forward_adaptation's SGD loop are host driver code, not kernel work.


# ----------------------------------------------------------------------------
# Pure-JAX reference (for self-check)
# ----------------------------------------------------------------------------
def reference_forward(model, x_nchw):
    x = jnp.transpose(x_nchw, (0, 2, 3, 1))
    for (w, b, gamma, beta, mean, var) in model.params:
        w_hwio = jnp.transpose(w, (2, 3, 1, 0))
        y = jax.lax.conv_general_dilated(
            x, w_hwio, (1, 1), "SAME",
            dimension_numbers=("NHWC", "HWIO", "NHWC"))
        y = y + b
        y = gamma * (y - mean) / jnp.sqrt(var + 1e-5) + beta
        y = jnp.maximum(y, 0.0)
        N, H, W, C = y.shape
        y = y.reshape(N, H // 2, 2, W // 2, 2, C).max(axis=(2, 4))
        x = y
    x = jnp.transpose(x, (0, 3, 1, 2))
    return x.reshape(x.shape[0], -1)


if __name__ == "__main__":
    key = jax.random.PRNGKey(0)
    k_model, k_x = jax.random.split(key)
    model = MetaTemplatePallas(n_way=5, n_support=5, in_channels=4, hidden=32,
                               n_blocks=4, key=k_model)
    x = jax.random.normal(k_x, (2, 4, 16, 16), jnp.float32)  # NCHW like torch

    out = jax.block_until_ready(model.forward(x))
    ref = jax.block_until_ready(reference_forward(model, x))

    assert out.shape == (2, model.feat_dim), out.shape
    assert jnp.allclose(out, ref, atol=1e-4, rtol=1e-4), \
        float(jnp.max(jnp.abs(out - ref)))

    print("KERNEL_OK")
</pallas_src>

<mosaic_0001>
module attributes {stable_mosaic.version = 11 : i64} {
  func.func @_conv_block_kernel(%arg0: i32, %arg1: memref<128x36xf32, #tpu.memory_space<vmem>>, %arg2: memref<128x36xf32, #tpu.memory_space<vmem>>, %arg3: memref<128x36xf32, #tpu.memory_space<vmem>>, %arg4: memref<128x36xf32, #tpu.memory_space<vmem>>, %arg5: memref<36x32xf32, #tpu.memory_space<vmem>>, %arg6: memref<1x32xf32, #tpu.memory_space<vmem>>, %arg7: memref<128x32xf32, #tpu.memory_space<vmem>>) attributes {dimension_semantics = [#tpu.dimension_semantics<parallel>], iteration_bounds = array<i64: 1>, scalar_prefetch = 0 : i64, scratch_operands = 0 : i64, tpu.core_type = #tpu.core_type<tc>, window_params = [{transform_indices = @transform_0, window_bounds = array<i64: 128, 36>}, {transform_indices = @transform_1, window_bounds = array<i64: 128, 36>}, {transform_indices = @transform_2, window_bounds = array<i64: 128, 36>}, {transform_indices = @transform_3, window_bounds = array<i64: 128, 36>}, {pipeline_mode = #tpu.pipeline_mode<synchronous>, transform_indices = @transform_4, window_bounds = array<i64: 36, 32>}, {pipeline_mode = #tpu.pipeline_mode<synchronous>, transform_indices = @transform_5, window_bounds = array<i64: 1, 32>}, {transform_indices = @transform_6, window_bounds = array<i64: 128, 32>}]} {
    %c0 = arith.constant 0 : index
    %c0_0 = arith.constant 0 : index
    %0 = vector.load %arg5[%c0, %c0_0] : memref<36x32xf32, #tpu.memory_space<vmem>>, vector<36x32xf32>
    %c0_1 = arith.constant 0 : index
    %c0_2 = arith.constant 0 : index
    %1 = vector.load %arg1[%c0_1, %c0_2] : memref<128x36xf32, #tpu.memory_space<vmem>>, vector<128x36xf32>
    %cst = arith.constant dense<0.000000e+00> : vector<128x32xf32>
    %2 = tpu.matmul %1, %0, %cst {dimension_numbers = #tpu.dot_dimension_numbers<[1], [0], [0], [1], [0, 0, 1, 1], [], []>} : vector<128x36xf32>, vector<36x32xf32>, vector<128x32xf32> -> vector<128x32xf32>
    %c0_3 = arith.constant 0 : index
    %c0_4 = arith.constant 0 : index
    %3 = vector.load %arg2[%c0_3, %c0_4] : memref<128x36xf32, #tpu.memory_space<vmem>>, vector<128x36xf32>
    %cst_5 = arith.constant dense<0.000000e+00> : vector<128x32xf32>
    %4 = tpu.matmul %3, %0, %cst_5 {dimension_numbers = #tpu.dot_dimension_numbers<[1], [0], [0], [1], [0, 0, 1, 1], [], []>} : vector<128x36xf32>, vector<36x32xf32>, vector<128x32xf32> -> vector<128x32xf32>
    %5 = arith.maximumf %2, %4 : vector<128x32xf32>
    %c0_6 = arith.constant 0 : index
    %c0_7 = arith.constant 0 : index
    %6 = vector.load %arg3[%c0_6, %c0_7] : memref<128x36xf32, #tpu.memory_space<vmem>>, vector<128x36xf32>
    %cst_8 = arith.constant dense<0.000000e+00> : vector<128x32xf32>
    %7 = tpu.matmul %6, %0, %cst_8 {dimension_numbers = #tpu.dot_dimension_numbers<[1], [0], [0], [1], [0, 0, 1, 1], [], []>} : vector<128x36xf32>, vector<36x32xf32>, vector<128x32xf32> -> vector<128x32xf32>
    %8 = arith.maximumf %5, %7 : vector<128x32xf32>
    %c0_9 = arith.constant 0 : index
    %c0_10 = arith.constant 0 : index
    %9 = vector.load %arg4[%c0_9, %c0_10] : memref<128x36xf32, #tpu.memory_space<vmem>>, vector<128x36xf32>
    %cst_11 = arith.constant dense<0.000000e+00> : vector<128x32xf32>
    %10 = tpu.matmul %9, %0, %cst_11 {dimension_numbers = #tpu.dot_dimension_numbers<[1], [0], [0], [1], [0, 0, 1, 1], [], []>} : vector<128x36xf32>, vector<36x32xf32>, vector<128x32xf32> -> vector<128x32xf32>
    %11 = arith.maximumf %8, %10 : vector<128x32xf32>
    %c0_12 = arith.constant 0 : index
    %c0_13 = arith.constant 0 : index
    %12 = vector.load %arg6[%c0_12, %c0_13] : memref<1x32xf32, #tpu.memory_space<vmem>>, vector<1x32xf32>
    %13 = vector.broadcast %12 : vector<1x32xf32> to vector<128x32xf32>
    %14 = arith.addf %11, %13 : vector<128x32xf32>
    %cst_14 = arith.constant 0.000000e+00 : f32
    %15 = vector.broadcast %cst_14 : f32 to vector<128x32xf32>
    %16 = arith.maximumf %14, %15 : vector<128x32xf32>
    %c0_15 = arith.constant 0 : index
    %c0_16 = arith.constant 0 : index
    %17 = vector.load %arg7[%c0_15, %c0_16] : memref<128x32xf32, #tpu.memory_space<vmem>>, vector<128x32xf32>
    tpu.vector_store %arg7[%c0_15, %c0_16], %16 {strides = array<i32>} : memref<128x32xf32, #tpu.memory_space<vmem>>, vector<128x32xf32>,
    return
  }
  func.func @transform_0(%arg0: i32) -> (i32, i32) {
    %c0_i32 = arith.constant 0 : i32
    %c0_i32_0 = arith.constant 0 : i32
    return %arg0, %c0_i32 : i32, i32
  }
  func.func @transform_1(%arg0: i32) -> (i32, i32) {
    %c0_i32 = arith.constant 0 : i32
    %c0_i32_0 = arith.constant 0 : i32
    return %arg0, %c0_i32 : i32, i32
  }
  func.func @transform_2(%arg0: i32) -> (i32, i32) {
    %c0_i32 = arith.constant 0 : i32
    %c0_i32_0 = arith.constant 0 : i32
    return %arg0, %c0_i32 : i32, i32
  }
  func.func @transform_3(%arg0: i32) -> (i32, i32) {
    %c0_i32 = arith.constant 0 : i32
    %c0_i32_0 = arith.constant 0 : i32
    return %arg0, %c0_i32 : i32, i32
  }
  func.func @transform_4(%arg0: i32) -> (i32, i32) {
    %c0_i32 = arith.constant 0 : i32
    %c0_i32_0 = arith.constant 0 : i32
    %c0_i32_1 = arith.constant 0 : i32
    return %c0_i32, %c0_i32_0 : i32, i32
  }
  func.func @transform_5(%arg0: i32) -> (i32, i32) {
    %c0_i32 = arith.constant 0 : i32
    %c0_i32_0 = arith.constant 0 : i32
    %c0_i32_1 = arith.constant 0 : i32
    return %c0_i32, %c0_i32_0 : i32, i32
  }
  func.func @transform_6(%arg0: i32) -> (i32, i32) {
    %c0_i32 = arith.constant 0 : i32
    %c0_i32_0 = arith.constant 0 : i32
    return %arg0, %c0_i32 : i32, i32
  }
}

module attributes {stable_mosaic.version = 11 : i64} {
  func.func @_conv_block_kernel(%arg0: i32, %arg1: memref<32x288xf32, #tpu.memory_space<vmem>>, %arg2: memref<32x288xf32, #tpu.memory_space<vmem>>, %arg3: memref<32x288xf32, #tpu.memory_space<vmem>>, %arg4: memref<32x288xf32, #tpu.memory_space<vmem>>, %arg5: memref<288x32xf32, #tpu.memory_space<vmem>>, %arg6: memref<1x32xf32, #tpu.memory_space<vmem>>, %arg7: memref<32x32xf32, #tpu.memory_space<vmem>>) attributes {dimension_semantics = [#tpu.dimension_semantics<parallel>], iteration_bounds = array<i64: 1>, scalar_prefetch = 0 : i64, scratch_operands = 0 : i64, tpu.core_type = #tpu.core_type<tc>, window_params = [{transform_indices = @transform_0, window_bounds = array<i64: 32, 288>}, {transform_indices = @transform_1, window_bounds = array<i64: 32, 288>}, {transform_indices = @transform_2, window_bounds = array<i64: 32, 288>}, {transform_indices = @transform_3, window_bounds = array<i64: 32, 288>}, {pipeline_mode = #tpu.pipeline_mode<synchronous>, transform_indices = @transform_4, window_bounds = array<i64: 288, 32>}, {pipeline_mode = #tpu.pipeline_mode<synchronous>, transform_indices = @transform_5, window_bounds = array<i64: 1, 32>}, {transform_indices = @transform_6, window_bounds = array<i64: 32, 32>}]} {
    %c0 = arith.constant 0 : index
    %c0_0 = arith.constant 0 : index
    %0 = vector.load %arg5[%c0, %c0_0] : memref<288x32xf32, #tpu.memory_space<vmem>>, vector<288x32xf32>
    %c0_1 = arith.constant 0 : index
    %c0_2 = arith.constant 0 : index
    %1 = vector.load %arg1[%c0_1, %c0_2] : memref<32x288xf32, #tpu.memory_space<vmem>>, vector<32x288xf32>
    %cst = arith.constant dense<0.000000e+00> : vector<32x32xf32>
    %2 = tpu.matmul %1, %0, %cst {dimension_numbers = #tpu.dot_dimension_numbers<[1], [0], [0], [1], [0, 0, 1, 1], [], []>} : vector<32x288xf32>, vector<288x32xf32>, vector<32x32xf32> -> vector<32x32xf32>
    %c0_3 = arith.constant 0 : index
    %c0_4 = arith.constant 0 : index
    %3 = vector.load %arg2[%c0_3, %c0_4] : memref<32x288xf32, #tpu.memory_space<vmem>>, vector<32x288xf32>
    %cst_5 = arith.constant dense<0.000000e+00> : vector<32x32xf32>
    %4 = tpu.matmul %3, %0, %cst_5 {dimension_numbers = #tpu.dot_dimension_numbers<[1], [0], [0], [1], [0, 0, 1, 1], [], []>} : vector<32x288xf32>, vector<288x32xf32>, vector<32x32xf32> -> vector<32x32xf32>
    %5 = arith.maximumf %2, %4 : vector<32x32xf32>
    %c0_6 = arith.constant 0 : index
    %c0_7 = arith.constant 0 : index
    %6 = vector.load %arg3[%c0_6, %c0_7] : memref<32x288xf32, #tpu.memory_space<vmem>>, vector<32x288xf32>
    %cst_8 = arith.constant dense<0.000000e+00> : vector<32x32xf32>
    %7 = tpu.matmul %6, %0, %cst_8 {dimension_numbers = #tpu.dot_dimension_numbers<[1], [0], [0], [1], [0, 0, 1, 1], [], []>} : vector<32x288xf32>, vector<288x32xf32>, vector<32x32xf32> -> vector<32x32xf32>
    %8 = arith.maximumf %5, %7 : vector<32x32xf32>
    %c0_9 = arith.constant 0 : index
    %c0_10 = arith.constant 0 : index
    %9 = vector.load %arg4[%c0_9, %c0_10] : memref<32x288xf32, #tpu.memory_space<vmem>>, vector<32x288xf32>
    %cst_11 = arith.constant dense<0.000000e+00> : vector<32x32xf32>
    %10 = tpu.matmul %9, %0, %cst_11 {dimension_numbers = #tpu.dot_dimension_numbers<[1], [0], [0], [1], [0, 0, 1, 1], [], []>} : vector<32x288xf32>, vector<288x32xf32>, vector<32x32xf32> -> vector<32x32xf32>
    %11 = arith.maximumf %8, %10 : vector<32x32xf32>
    %c0_12 = arith.constant 0 : index
    %c0_13 = arith.constant 0 : index
    %12 = vector.load %arg6[%c0_12, %c0_13] : memref<1x32xf32, #tpu.memory_space<vmem>>, vector<1x32xf32>
    %13 = vector.broadcast %12 : vector<1x32xf32> to vector<32x32xf32>
    %14 = arith.addf %11, %13 : vector<32x32xf32>
    %cst_14 = arith.constant 0.000000e+00 : f32
    %15 = vector.broadcast %cst_14 : f32 to vector<32x32xf32>
    %16 = arith.maximumf %14, %15 : vector<32x32xf32>
    %c0_15 = arith.constant 0 : index
    %c0_16 = arith.constant 0 : index
    %17 = vector.load %arg7[%c0_15, %c0_16] : memref<32x32xf32, #tpu.memory_space<vmem>>, vector<32x32xf32>
    tpu.vector_store %arg7[%c0_15, %c0_16], %16 {strides = array<i32>} : memref<32x32xf32, #tpu.memory_space<vmem>>, vector<32x32xf32>,
    return
  }
  func.func @transform_0(%arg0: i32) -> (i32, i32) {
    %c0_i32 = arith.constant 0 : i32
    %c0_i32_0 = arith.constant 0 : i32
    return %arg0, %c0_i32 : i32, i32
  }
  func.func @transform_1(%arg0: i32) -> (i32, i32) {
    %c0_i32 = arith.constant 0 : i32
    %c0_i32_0 = arith.constant 0 : i32
    return %arg0, %c0_i32 : i32, i32
  }
  func.func @transform_2(%arg0: i32) -> (i32, i32) {
    %c0_i32 = arith.constant 0 : i32
    %c0_i32_0 = arith.constant 0 : i32
    return %arg0, %c0_i32 : i32, i32
  }
  func.func @transform_3(%arg0: i32) -> (i32, i32) {
    %c0_i32 = arith.constant 0 : i32
    %c0_i32_0 = arith.constant 0 : i32
    return %arg0, %c0_i32 : i32, i32
  }
  func.func @transform_4(%arg0: i32) -> (i32, i32) {
    %c0_i32 = arith.constant 0 : i32
    %c0_i32_0 = arith.constant 0 : i32
    %c0_i32_1 = arith.constant 0 : i32
    return %c0_i32, %c0_i32_0 : i32, i32
  }
  func.func @transform_5(%arg0: i32) -> (i32, i32) {
    %c0_i32 = arith.constant 0 : i32
    %c0_i32_0 = arith.constant 0 : i32
    %c0_i32_1 = arith.constant 0 : i32
    return %c0_i32, %c0_i32_0 : i32, i32
  }
  func.func @transform_6(%arg0: i32) -> (i32, i32) {
    %c0_i32 = arith.constant 0 : i32
    %c0_i32_0 = arith.constant 0 : i32
    return %arg0, %c0_i32 : i32, i32
  }
}

module attributes {stable_mosaic.version = 11 : i64} {
  func.func @_conv_block_kernel(%arg0: i32, %arg1: memref<8x288xf32, #tpu.memory_space<vmem>>, %arg2: memref<8x288xf32, #tpu.memory_space<vmem>>, %arg3: memref<8x288xf32, #tpu.memory_space<vmem>>, %arg4: memref<8x288xf32, #tpu.memory_space<vmem>>, %arg5: memref<288x32xf32, #tpu.memory_space<vmem>>, %arg6: memref<1x32xf32, #tpu.memory_space<vmem>>, %arg7: memref<8x32xf32, #tpu.memory_space<vmem>>) attributes {dimension_semantics = [#tpu.dimension_semantics<parallel>], iteration_bounds = array<i64: 1>, scalar_prefetch = 0 : i64, scratch_operands = 0 : i64, tpu.core_type = #tpu.core_type<tc>, window_params = [{transform_indices = @transform_0, window_bounds = array<i64: 8, 288>}, {transform_indices = @transform_1, window_bounds = array<i64: 8, 288>}, {transform_indices = @transform_2, window_bounds = array<i64: 8, 288>}, {transform_indices = @transform_3, window_bounds = array<i64: 8, 288>}, {pipeline_mode = #tpu.pipeline_mode<synchronous>, transform_indices = @transform_4, window_bounds = array<i64: 288, 32>}, {pipeline_mode = #tpu.pipeline_mode<synchronous>, transform_indices = @transform_5, window_bounds = array<i64: 1, 32>}, {transform_indices = @transform_6, window_bounds = array<i64: 8, 32>}]} {
    %c0 = arith.constant 0 : index
    %c0_0 = arith.constant 0 : index
    %0 = vector.load %arg5[%c0, %c0_0] : memref<288x32xf32, #tpu.memory_space<vmem>>, vector<288x32xf32>
    %c0_1 = arith.constant 0 : index
    %c0_2 = arith.constant 0 : index
    %1 = vector.load %arg1[%c0_1, %c0_2] : memref<8x288xf32, #tpu.memory_space<vmem>>, vector<8x288xf32>
    %cst = arith.constant dense<0.000000e+00> : vector<8x32xf32>
    %2 = tpu.matmul %1, %0, %cst {dimension_numbers = #tpu.dot_dimension_numbers<[1], [0], [0], [1], [0, 0, 1, 1], [], []>} : vector<8x288xf32>, vector<288x32xf32>, vector<8x32xf32> -> vector<8x32xf32>
    %c0_3 = arith.constant 0 : index
    %c0_4 = arith.constant 0 : index
    %3 = vector.load %arg2[%c0_3, %c0_4] : memref<8x288xf32, #tpu.memory_space<vmem>>, vector<8x288xf32>
    %cst_5 = arith.constant dense<0.000000e+00> : vector<8x32xf32>
    %4 = tpu.matmul %3, %0, %cst_5 {dimension_numbers = #tpu.dot_dimension_numbers<[1], [0], [0], [1], [0, 0, 1, 1], [], []>} : vector<8x288xf32>, vector<288x32xf32>, vector<8x32xf32> -> vector<8x32xf32>
    %5 = arith.maximumf %2, %4 : vector<8x32xf32>
    %c0_6 = arith.constant 0 : index
    %c0_7 = arith.constant 0 : index
    %6 = vector.load %arg3[%c0_6, %c0_7] : memref<8x288xf32, #tpu.memory_space<vmem>>, vector<8x288xf32>
    %cst_8 = arith.constant dense<0.000000e+00> : vector<8x32xf32>
    %7 = tpu.matmul %6, %0, %cst_8 {dimension_numbers = #tpu.dot_dimension_numbers<[1], [0], [0], [1], [0, 0, 1, 1], [], []>} : vector<8x288xf32>, vector<288x32xf32>, vector<8x32xf32> -> vector<8x32xf32>
    %8 = arith.maximumf %5, %7 : vector<8x32xf32>
    %c0_9 = arith.constant 0 : index
    %c0_10 = arith.constant 0 : index
    %9 = vector.load %arg4[%c0_9, %c0_10] : memref<8x288xf32, #tpu.memory_space<vmem>>, vector<8x288xf32>
    %cst_11 = arith.constant dense<0.000000e+00> : vector<8x32xf32>
    %10 = tpu.matmul %9, %0, %cst_11 {dimension_numbers = #tpu.dot_dimension_numbers<[1], [0], [0], [1], [0, 0, 1, 1], [], []>} : vector<8x288xf32>, vector<288x32xf32>, vector<8x32xf32> -> vector<8x32xf32>
    %11 = arith.maximumf %8, %10 : vector<8x32xf32>
    %c0_12 = arith.constant 0 : index
    %c0_13 = arith.constant 0 : index
    %12 = vector.load %arg6[%c0_12, %c0_13] : memref<1x32xf32, #tpu.memory_space<vmem>>, vector<1x32xf32>
    %13 = vector.broadcast %12 : vector<1x32xf32> to vector<8x32xf32>
    %14 = arith.addf %11, %13 : vector<8x32xf32>
    %cst_14 = arith.constant 0.000000e+00 : f32
    %15 = vector.broadcast %cst_14 : f32 to vector<8x32xf32>
    %16 = arith.maximumf %14, %15 : vector<8x32xf32>
    %c0_15 = arith.constant 0 : index
    %c0_16 = arith.constant 0 : index
    %17 = vector.load %arg7[%c0_15, %c0_16] : memref<8x32xf32, #tpu.memory_space<vmem>>, vector<8x32xf32>
    tpu.vector_store %arg7[%c0_15, %c0_16], %16 {strides = array<i32>} : memref<8x32xf32, #tpu.memory_space<vmem>>, vector<8x32xf32>,
    return
  }
  func.func @transform_0(%arg0: i32) -> (i32, i32) {
    %c0_i32 = arith.constant 0 : i32
    %c0_i32_0 = arith.constant 0 : i32
    return %arg0, %c0_i32 : i32, i32
  }
  func.func @transform_1(%arg0: i32) -> (i32, i32) {
    %c0_i32 = arith.constant 0 : i32
    %c0_i32_0 = arith.constant 0 : i32
    return %arg0, %c0_i32 : i32, i32
  }
  func.func @transform_2(%arg0: i32) -> (i32, i32) {
    %c0_i32 = arith.constant 0 : i32
    %c0_i32_0 = arith.constant 0 : i32
    return %arg0, %c0_i32 : i32, i32
  }
  func.func @transform_3(%arg0: i32) -> (i32, i32) {
    %c0_i32 = arith.constant 0 : i32
    %c0_i32_0 = arith.constant 0 : i32
    return %arg0, %c0_i32 : i32, i32
  }
  func.func @transform_4(%arg0: i32) -> (i32, i32) {
    %c0_i32 = arith.constant 0 : i32
    %c0_i32_0 = arith.constant 0 : i32
    %c0_i32_1 = arith.constant 0 : i32
    return %c0_i32, %c0_i32_0 : i32, i32
  }
  func.func @transform_5(%arg0: i32) -> (i32, i32) {
    %c0_i32 = arith.constant 0 : i32
    %c0_i32_0 = arith.constant 0 : i32
    %c0_i32_1 = arith.constant 0 : i32
    return %c0_i32, %c0_i32_0 : i32, i32
  }
  func.func @transform_6(%arg0: i32) -> (i32, i32) {
    %c0_i32 = arith.constant 0 : i32
    %c0_i32_0 = arith.constant 0 : i32
    return %arg0, %c0_i32 : i32, i32
  }
}

module attributes {stable_mosaic.version = 11 : i64} {
  func.func @_conv_block_kernel(%arg0: i32, %arg1: memref<2x288xf32, #tpu.memory_space<vmem>>, %arg2: memref<2x288xf32, #tpu.memory_space<vmem>>, %arg3: memref<2x288xf32, #tpu.memory_space<vmem>>, %arg4: memref<2x288xf32, #tpu.memory_space<vmem>>, %arg5: memref<288x32xf32, #tpu.memory_space<vmem>>, %arg6: memref<1x32xf32, #tpu.memory_space<vmem>>, %arg7: memref<2x32xf32, #tpu.memory_space<vmem>>) attributes {dimension_semantics = [#tpu.dimension_semantics<parallel>], iteration_bounds = array<i64: 1>, scalar_prefetch = 0 : i64, scratch_operands = 0 : i64, tpu.core_type = #tpu.core_type<tc>, window_params = [{transform_indices = @transform_0, window_bounds = array<i64: 2, 288>}, {transform_indices = @transform_1, window_bounds = array<i64: 2, 288>}, {transform_indices = @transform_2, window_bounds = array<i64: 2, 288>}, {transform_indices = @transform_3, window_bounds = array<i64: 2, 288>}, {pipeline_mode = #tpu.pipeline_mode<synchronous>, transform_indices = @transform_4, window_bounds = array<i64: 288, 32>}, {pipeline_mode = #tpu.pipeline_mode<synchronous>, transform_indices = @transform_5, window_bounds = array<i64: 1, 32>}, {transform_indices = @transform_6, window_bounds = array<i64: 2, 32>}]} {
    %c0 = arith.constant 0 : index
    %c0_0 = arith.constant 0 : index
    %0 = vector.load %arg5[%c0, %c0_0] : memref<288x32xf32, #tpu.memory_space<vmem>>, vector<288x32xf32>
    %c0_1 = arith.constant 0 : index
    %c0_2 = arith.constant 0 : index
    %1 = vector.load %arg1[%c0_1, %c0_2] : memref<2x288xf32, #tpu.memory_space<vmem>>, vector<2x288xf32>
    %cst = arith.constant dense<0.000000e+00> : vector<2x32xf32>
    %2 = tpu.matmul %1, %0, %cst {dimension_numbers = #tpu.dot_dimension_numbers<[1], [0], [0], [1], [0, 0, 1, 1], [], []>} : vector<2x288xf32>, vector<288x32xf32>, vector<2x32xf32> -> vector<2x32xf32>
    %c0_3 = arith.constant 0 : index
    %c0_4 = arith.constant 0 : index
    %3 = vector.load %arg2[%c0_3, %c0_4] : memref<2x288xf32, #tpu.memory_space<vmem>>, vector<2x288xf32>
    %cst_5 = arith.constant dense<0.000000e+00> : vector<2x32xf32>
    %4 = tpu.matmul %3, %0, %cst_5 {dimension_numbers = #tpu.dot_dimension_numbers<[1], [0], [0], [1], [0, 0, 1, 1], [], []>} : vector<2x288xf32>, vector<288x32xf32>, vector<2x32xf32> -> vector<2x32xf32>
    %5 = arith.maximumf %2, %4 : vector<2x32xf32>
    %c0_6 = arith.constant 0 : index
    %c0_7 = arith.constant 0 : index
    %6 = vector.load %arg3[%c0_6, %c0_7] : memref<2x288xf32, #tpu.memory_space<vmem>>, vector<2x288xf32>
    %cst_8 = arith.constant dense<0.000000e+00> : vector<2x32xf32>
    %7 = tpu.matmul %6, %0, %cst_8 {dimension_numbers = #tpu.dot_dimension_numbers<[1], [0], [0], [1], [0, 0, 1, 1], [], []>} : vector<2x288xf32>, vector<288x32xf32>, vector<2x32xf32> -> vector<2x32xf32>
    %8 = arith.maximumf %5, %7 : vector<2x32xf32>
    %c0_9 = arith.constant 0 : index
    %c0_10 = arith.constant 0 : index
    %9 = vector.load %arg4[%c0_9, %c0_10] : memref<2x288xf32, #tpu.memory_space<vmem>>, vector<2x288xf32>
    %cst_11 = arith.constant dense<0.000000e+00> : vector<2x32xf32>
    %10 = tpu.matmul %9, %0, %cst_11 {dimension_numbers = #tpu.dot_dimension_numbers<[1], [0], [0], [1], [0, 0, 1, 1], [], []>} : vector<2x288xf32>, vector<288x32xf32>, vector<2x32xf32> -> vector<2x32xf32>
    %11 = arith.maximumf %8, %10 : vector<2x32xf32>
    %c0_12 = arith.constant 0 : index
    %c0_13 = arith.constant 0 : index
    %12 = vector.load %arg6[%c0_12, %c0_13] : memref<1x32xf32, #tpu.memory_space<vmem>>, vector<1x32xf32>
    %13 = vector.broadcast %12 : vector<1x32xf32> to vector<2x32xf32>
    %14 = arith.addf %11, %13 : vector<2x32xf32>
    %cst_14 = arith.constant 0.000000e+00 : f32
    %15 = vector.broadcast %cst_14 : f32 to vector<2x32xf32>
    %16 = arith.maximumf %14, %15 : vector<2x32xf32>
    %c0_15 = arith.constant 0 : index
    %c0_16 = arith.constant 0 : index
    %17 = vector.load %arg7[%c0_15, %c0_16] : memref<2x32xf32, #tpu.memory_space<vmem>>, vector<2x32xf32>
    tpu.vector_store %arg7[%c0_15, %c0_16], %16 {strides = array<i32>} : memref<2x32xf32, #tpu.memory_space<vmem>>, vector<2x32xf32>,
    return
  }
  func.func @transform_0(%arg0: i32) -> (i32, i32) {
    %c0_i32 = arith.constant 0 : i32
    %c0_i32_0 = arith.constant 0 : i32
    return %arg0, %c0_i32 : i32, i32
  }
  func.func @transform_1(%arg0: i32) -> (i32, i32) {
    %c0_i32 = arith.constant 0 : i32
    %c0_i32_0 = arith.constant 0 : i32
    return %arg0, %c0_i32 : i32, i32
  }
  func.func @transform_2(%arg0: i32) -> (i32, i32) {
    %c0_i32 = arith.constant 0 : i32
    %c0_i32_0 = arith.constant 0 : i32
    return %arg0, %c0_i32 : i32, i32
  }
  func.func @transform_3(%arg0: i32) -> (i32, i32) {
    %c0_i32 = arith.constant 0 : i32
    %c0_i32_0 = arith.constant 0 : i32
    return %arg0, %c0_i32 : i32, i32
  }
  func.func @transform_4(%arg0: i32) -> (i32, i32) {
    %c0_i32 = arith.constant 0 : i32
    %c0_i32_0 = arith.constant 0 : i32
    %c0_i32_1 = arith.constant 0 : i32
    return %c0_i32, %c0_i32_0 : i32, i32
  }
  func.func @transform_5(%arg0: i32) -> (i32, i32) {
    %c0_i32 = arith.constant 0 : i32
    %c0_i32_0 = arith.constant 0 : i32
    %c0_i32_1 = arith.constant 0 : i32
    return %c0_i32, %c0_i32_0 : i32, i32
  }
  func.func @transform_6(%arg0: i32) -> (i32, i32) {
    %c0_i32 = arith.constant 0 : i32
    %c0_i32_0 = arith.constant 0 : i32
    return %arg0, %c0_i32 : i32, i32
  }
}

</mosaic_0001>

<llo_original>
// kernel: _feature_forward_impl.4
$region0: #{_feature_forward_impl.4}
  #allocation0 [shape = 'u32[]', space=smem, size = 0x4, offset = 0x4, fixed_abs, tag = 'smem constant byte address 0x4 - core index']
  #allocation1 [shape = 'u32[144,128]{1,0:T(1,128)}', space=vmem, size = 0x12000, scoped, tag = 'internal scratch']
  %s0 = inlined_call_operand.vmem [shape: f32[128,36], index: 0, kind: input, shape index: {}]
  %s1 = inlined_call_operand.vmem [shape: f32[128,36], index: 1, kind: input, shape index: {}]
  %s2 = inlined_call_operand.vmem [shape: f32[128,36], index: 2, kind: input, shape index: {}]
  %s3 = inlined_call_operand.vmem [shape: f32[128,36], index: 3, kind: input, shape index: {}]
  %s4 = inlined_call_operand.vmem [shape: f32[36,32], index: 4, kind: input, shape index: {}]
  %s5 = inlined_call_operand.vmem [shape: f32[1,32], index: 5, kind: input, shape index: {}]
  %s6 = inlined_call_operand.vmem [shape: f32[128,32], index: 6, kind: output, shape index: {}]
  %s7 = sld [smem:[#allocation0]]
  $region34: #{_feature_forward_impl.4} parent=0
    _
  %s9 = ssub.s32 1, %s7
  %s10 = scalar_select 0, %s9, %s7
  // Predicated region
  $region2: #{_feature_forward_impl.4} parent=0 // pred_check
    _
  $region3: #{_feature_forward_impl.4} parent=0 // pred_check_branch
    %12 = sbr.rel (0) target = $region5
  $region4: #{_feature_forward_impl.4} parent=0 // pred_region
    _
  $region5: #{_feature_forward_impl.4} parent=0 // pred_fallthru
    _
  // Predicated region
  $region6: #{_feature_forward_impl.4} parent=0 // pred_check
    _
  $region7: #{_feature_forward_impl.4} parent=0 // pred_check_branch
    %14 = sbr.rel (0) target = $region9
  $region8: #{_feature_forward_impl.4} parent=0 // pred_region
    _
  $region9: #{_feature_forward_impl.4} parent=0 // pred_fallthru
    _
  // Predicated region
  $region10: #{_feature_forward_impl.4} parent=0 // pred_check
    _
  $region11: #{_feature_forward_impl.4} parent=0 // pred_check_branch
    %16 = sbr.rel (0) target = $region13
  $region12: #{_feature_forward_impl.4} parent=0 // pred_region
    _
  $region13: #{_feature_forward_impl.4} parent=0 // pred_fallthru
    _
  // Predicated region
  $region14: #{_feature_forward_impl.4} parent=0 // pred_check
    _
  $region15: #{_feature_forward_impl.4} parent=0 // pred_check_branch
    %18 = sbr.rel (0) target = $region17
  $region16: #{_feature_forward_impl.4} parent=0 // pred_region
    _
  $region17: #{_feature_forward_impl.4} parent=0 // pred_fallthru
    _
  // Predicated region
  $region18: #{_feature_forward_impl.4} parent=0 // pred_check
    _
  $region19: #{_feature_forward_impl.4} parent=0 // pred_check_branch
    %20 = sbr.rel (0) target = $region21
  $region20: #{_feature_forward_impl.4} parent=0 // pred_region
    _
  $region21: #{_feature_forward_impl.4} parent=0 // pred_fallthru
    _
  // Predicated region
  $region22: #{_feature_forward_impl.4} parent=0 // pred_check
    _
  $region23: #{_feature_forward_impl.4} parent=0 // pred_check_branch
    %22 = sbr.rel (0) target = $region25
  $region24: #{_feature_forward_impl.4} parent=0 // pred_region
    _
  $region25: #{_feature_forward_impl.4} parent=0 // pred_fallthru
    _
  %v23 = vld [vmem:[%s4] sm:$0xff]
  %v24 = vld [vmem:[%s4 + $0x8] sm:$0xff]
  %v25 = vld [vmem:[%s4 + $0x10] sm:$0xff]
  %v26 = vld [vmem:[%s4 + $0x18] sm:$0xff]
  %v27 = vld [vmem:[%s4 + $0x20] sm:$0xf]
  %v28 = vld [vmem:[%s0] sm:$0xff]
  %v29 = vld [vmem:[%s0 + $0x8] sm:$0xff]
  %v30 = vld [vmem:[%s0 + $0x10] sm:$0xff]
  %v31 = vld [vmem:[%s0 + $0x18] sm:$0xff]
  %v32 = vld [vmem:[%s0 + $0x20] sm:$0xff]
  %v33 = vld [vmem:[%s0 + $0x28] sm:$0xff]
  %v34 = vld [vmem:[%s0 + $0x30] sm:$0xff]
  %v35 = vld [vmem:[%s0 + $0x38] sm:$0xff]
  %v36 = vld [vmem:[%s0 + $0x40] sm:$0xff]
  %v37 = vld [vmem:[%s0 + $0x48] sm:$0xff]
  %v38 = vld [vmem:[%s0 + $0x50] sm:$0xff]
  %v39 = vld [vmem:[%s0 + $0x58] sm:$0xff]
  %v40 = vld [vmem:[%s0 + $0x60] sm:$0xff]
  %v41 = vld [vmem:[%s0 + $0x68] sm:$0xff]
  %v42 = vld [vmem:[%s0 + $0x70] sm:$0xff]
  %v43 = vld [vmem:[%s0 + $0x78] sm:$0xff]
  %vm44 = vcmask 293888
  %v46 = vsel %vm44, %v28, 0
  %v49 = vsel %vm44, %v29, 0
  %v52 = vsel %vm44, %v30, 0
  %v55 = vsel %vm44, %v31, 0
  %v58 = vsel %vm44, %v32, 0
  %v61 = vsel %vm44, %v33, 0
  %v64 = vsel %vm44, %v34, 0
  %v67 = vsel %vm44, %v35, 0
  %v70 = vsel %vm44, %v36, 0
  %v73 = vsel %vm44, %v37, 0
  %v76 = vsel %vm44, %v38, 0
  %v79 = vsel %vm44, %v39, 0
  %v82 = vsel %vm44, %v40, 0
  %v85 = vsel %vm44, %v41, 0
  %v88 = vsel %vm44, %v42, 0
  %v91 = vsel %vm44, %v43, 0
  %vm93 = vcmask 1043456
  %v95 = vsel %vm93, %v27, 0
  %97 = vmatprep.subr.mxu0 0.0
  %98 = vmatpush1.msra.mxu0 0.0
  %99 = vmatprep.subr.mxu0 0.0
  %100 = vmatpush1.msra.mxu0 0.0
  %101 = vmatprep.subr.mxu0 0.0
  %102 = vmatpush1.msra.mxu0 0.0
  %103 = vmatprep.subr.mxu0 0.0
  %104 = vmatpush1.msra.mxu0 0.0
  %105 = vmatprep.subr.mxu0 0.0
  %106 = vmatpush1.msra.mxu0 0.0
  %107 = vmatprep.subr.mxu0 0.0
  %108 = vmatpush1.msra.mxu0 0.0
  %109 = vmatprep.subr.mxu0 0.0
  %110 = vmatpush1.msra.mxu0 0.0
  %111 = vmatprep.subr.mxu0 0.0
  %112 = vmatpush1.msra.mxu0 0.0
  %113 = vmatprep.subr.mxu0 0.0
  %114 = vmatpush1.msra.mxu0 0.0
  %115 = vmatprep.subr.mxu0 0.0
  %116 = vmatpush1.msra.mxu0 0.0
  %117 = vmatprep.subr.mxu0 0.0
  %118 = vmatpush1.msra.mxu0 0.0
  %119 = vmatprep.subr.mxu0 0.0
  %120 = vmatpush1.msra.mxu0 %v95
  %121 = vmatprep.subr.mxu0 0.0
  %122 = vmatpush1.msra.mxu0 %v26
  %123 = vmatprep.subr.mxu0 0.0
  %124 = vmatpush1.msra.mxu0 %v25
  %125 = vmatprep.subr.mxu0 0.0
  %126 = vmatpush1.msra.mxu0 %v24
  %127 = vmatprep.subr.mxu0 0.0
  %128 = vmatpush1.msra.mxu0 %v23
  %129 = vmatprep.subr.mxu0 0.0
  %130 = vmatpush2.msra.mxu0 0.0
  %131 = vmatprep.subr.mxu0 0.0
  %132 = vmatpush2.msra.mxu0 0.0
  %133 = vmatprep.subr.mxu0 0.0
  %134 = vmatpush2.msra.mxu0 0.0
  %135 = vmatprep.subr.mxu0 0.0
  %136 = vmatpush2.msra.mxu0 0.0
  %137 = vmatprep.subr.mxu0 0.0
  %138 = vmatpush2.msra.mxu0 0.0
  %139 = vmatprep.subr.mxu0 0.0
  %140 = vmatpush2.msra.mxu0 0.0
  %141 = vmatprep.subr.mxu0 0.0
  %142 = vmatpush2.msra.mxu0 0.0
  %143 = vmatprep.subr.mxu0 0.0
  %144 = vmatpush2.msra.mxu0 0.0
  %145 = vmatprep.subr.mxu0 0.0
  %146 = vmatpush2.msra.mxu0 0.0
  %147 = vmatprep.subr.mxu0 0.0
  %148 = vmatpush2.msra.mxu0 0.0
  %149 = vmatprep.subr.mxu0 0.0
  %150 = vmatpush2.msra.mxu0 0.0
  %151 = vmatprep.subr.mxu0 0.0
  %152 = vmatpush2.msra.mxu0 0.0
  %153 = vmatprep.subr.mxu0 0.0
  %154 = vmatpush2.msra.mxu0 0.0
  %155 = vmatprep.subr.mxu0 0.0
  %156 = vmatpush2.msra.mxu0 0.0
  %157 = vmatprep.subr.mxu0 0.0
  %158 = vmatpush2.msra.mxu0 0.0
  %159 = vmatprep.subr.mxu0 0.0
  %160 = vmatpush2.msra.mxu0 0.0
  %161 = vmatprep.mubr.f32.mxu0 0.0
  %162 = vmatmul.mubr.f32.gmra.mxu0 %v46
  %v163 = vpop.f32.mrf.mxu0
  %v164 = vadd.f32 0.0, %v163
  %v165 = vpop.f32.mrf.mxu0
  %166 = vmatprep.mubr.f32.mxu0 0.0
  %167 = vmatmul.mubr.f32.gmra.mxu0 %v49
  %v168 = vpop.f32.mrf.mxu0
  %v169 = vadd.f32 0.0, %v168
  %v170 = vpop.f32.mrf.mxu0
  %171 = vmatprep.mubr.f32.mxu0 0.0
  %172 = vmatmul.mubr.f32.gmra.mxu0 %v52
  %v173 = vpop.f32.mrf.mxu0
  %v174 = vadd.f32 0.0, %v173
  %v175 = vpop.f32.mrf.mxu0
  %176 = vmatprep.mubr.f32.mxu0 0.0
  %177 = vmatmul.mubr.f32.gmra.mxu0 %v55
  %v178 = vpop.f32.mrf.mxu0
  %v179 = vadd.f32 0.0, %v178
  %v180 = vpop.f32.mrf.mxu0
  %181 = vmatprep.mubr.f32.mxu0 0.0
  %182 = vmatmul.mubr.f32.gmra.mxu0 %v58
  %v183 = vpop.f32.mrf.mxu0
  %v184 = vadd.f32 0.0, %v183
  %v185 = vpop.f32.mrf.mxu0
  %186 = vmatprep.mubr.f32.mxu0 0.0
  %187 = vmatmul.mubr.f32.gmra.mxu0 %v61
  %v188 = vpop.f32.mrf.mxu0
  %v189 = vadd.f32 0.0, %v188
  %v190 = vpop.f32.mrf.mxu0
  %191 = vmatprep.mubr.f32.mxu0 0.0
  %192 = vmatmul.mubr.f32.gmra.mxu0 %v64
  %v193 = vpop.f32.mrf.mxu0
  %v194 = vadd.f32 0.0, %v193
  %v195 = vpop.f32.mrf.mxu0
  %196 = vmatprep.mubr.f32.mxu0 0.0
  %197 = vmatmul.mubr.f32.gmra.mxu0 %v67
  %v198 = vpop.f32.mrf.mxu0
  %v199 = vadd.f32 0.0, %v198
  %v200 = vpop.f32.mrf.mxu0
  %201 = vmatprep.mubr.f32.mxu0 0.0
  %202 = vmatmul.mubr.f32.gmra.mxu0 %v70
  %v203 = vpop.f32.mrf.mxu0
  %v204 = vadd.f32 0.0, %v203
  %v205 = vpop.f32.mrf.mxu0
  %206 = vmatprep.mubr.f32.mxu0 0.0
  %207 = vmatmul.mubr.f32.gmra.mxu0 %v73
  %v208 = vpop.f32.mrf.mxu0
  %v209 = vadd.f32 0.0, %v208
  %v210 = vpop.f32.mrf.mxu0
  %211 = vmatprep.mubr.f32.mxu0 0.0
  %212 = vmatmul.mubr.f32.gmra.mxu0 %v76
  %v213 = vpop.f32.mrf.mxu0
  %v214 = vadd.f32 0.0, %v213
  %v215 = vpop.f32.mrf.mxu0
  %216 = vmatprep.mubr.f32.mxu0 0.0
  %217 = vmatmul.mubr.f32.gmra.mxu0 %v79
  %v218 = vpop.f32.mrf.mxu0
  %v219 = vadd.f32 0.0, %v218
  %v220 = vpop.f32.mrf.mxu0
  %221 = vmatprep.mubr.f32.mxu0 0.0
  %222 = vmatmul.mubr.f32.gmra.mxu0 %v82
  %v223 = vpop.f32.mrf.mxu0
  %v224 = vadd.f32 0.0, %v223
  %v225 = vpop.f32.mrf.mxu0
  %226 = vmatprep.mubr.f32.mxu0 0.0
  %227 = vmatmul.mubr.f32.gmra.mxu0 %v85
  %v228 = vpop.f32.mrf.mxu0
  %v229 = vadd.f32 0.0, %v228
  %v230 = vpop.f32.mrf.mxu0
  %231 = vmatprep.mubr.f32.mxu0 0.0
  %232 = vmatmul.mubr.f32.gmra.mxu0 %v88
  %v233 = vpop.f32.mrf.mxu0
  %v234 = vadd.f32 0.0, %v233
  %v235 = vpop.f32.mrf.mxu0
  %236 = vmatprep.mubr.f32.mxu0 0.0
  %237 = vmatmul.mubr.f32.gmra.mxu0 %v91
  %v238 = vpop.f32.mrf.mxu0
  %v239 = vadd.f32 0.0, %v238
  %v240 = vpop.f32.mrf.mxu0
  %241 = vdwg.mxu0
  %v242 = vld [vmem:[%s1] sm:$0xff]
  %v243 = vld [vmem:[%s1 + $0x8] sm:$0xff]
  %v244 = vld [vmem:[%s1 + $0x10] sm:$0xff]
  %v245 = vld [vmem:[%s1 + $0x18] sm:$0xff]
  %v246 = vld [vmem:[%s1 + $0x20] sm:$0xff]
  %v247 = vld [vmem:[%s1 + $0x28] sm:$0xff]
  %v248 = vld [vmem:[%s1 + $0x30] sm:$0xff]
  %v249 = vld [vmem:[%s1 + $0x38] sm:$0xff]
  %v250 = vld [vmem:[%s1 + $0x40] sm:$0xff]
  %v251 = vld [vmem:[%s1 + $0x48] sm:$0xff]
  %v252 = vld [vmem:[%s1 + $0x50] sm:$0xff]
  %v253 = vld [vmem:[%s1 + $0x58] sm:$0xff]
  %v254 = vld [vmem:[%s1 + $0x60] sm:$0xff]
  %v255 = vld [vmem:[%s1 + $0x68] sm:$0xff]
  %v256 = vld [vmem:[%s1 + $0x70] sm:$0xff]
  %v257 = vld [vmem:[%s1 + $0x78] sm:$0xff]
  %v259 = vsel %vm44, %v242, 0
  %v262 = vsel %vm44, %v243, 0
  %v265 = vsel %vm44, %v244, 0
  %v268 = vsel %vm44, %v245, 0
  %v271 = vsel %vm44, %v246, 0
  %v274 = vsel %vm44, %v247, 0
  %v277 = vsel %vm44, %v248, 0
  %v280 = vsel %vm44, %v249, 0
  %v283 = vsel %vm44, %v250, 0
  %v286 = vsel %vm44, %v251, 0
  %v289 = vsel %vm44, %v252, 0
  %v292 = vsel %vm44, %v253, 0
  %v295 = vsel %vm44, %v254, 0
  %v298 = vsel %vm44, %v255, 0
  %v301 = vsel %vm44, %v256, 0
  %v304 = vsel %vm44, %v257, 0
  %306 = vmatprep.subr.mxu0 0.0
  %307 = vmatpush1.msra.mxu0 0.0
  %308 = vmatprep.subr.mxu0 0.0
  %309 = vmatpush1.msra.mxu0 0.0
  %310 = vmatprep.subr.mxu0 0.0
  %311 = vmatpush1.msra.mxu0 0.0
  %312 = vmatprep.subr.mxu0 0.0
  %313 = vmatpush1.msra.mxu0 0.0
  %314 = vmatprep.subr.mxu0 0.0
  %315 = vmatpush1.msra.mxu0 0.0
  %316 = vmatprep.subr.mxu0 0.0
  %317 = vmatpush1.msra.mxu0 0.0
  %318 = vmatprep.subr.mxu0 0.0
  %319 = vmatpush1.msra.mxu0 0.0
  %320 = vmatprep.subr.mxu0 0.0
  %321 = vmatpush1.msra.mxu0 0.0
  %322 = vmatprep.subr.mxu0 0.0
  %323 = vmatpush1.msra.mxu0 0.0
  %324 = vmatprep.subr.mxu0 0.0
  %325 = vmatpush1.msra.mxu0 0.0
  %326 = vmatprep.subr.mxu0 0.0
  %327 = vmatpush1.msra.mxu0 0.0
  %328 = vmatprep.subr.mxu0 0.0
  %329 = vmatpush1.msra.mxu0 %v95
  %330 = vmatprep.subr.mxu0 0.0
  %331 = vmatpush1.msra.mxu0 %v26
  %332 = vmatprep.subr.mxu0 0.0
  %333 = vmatpush1.msra.mxu0 %v25
  %334 = vmatprep.subr.mxu0 0.0
  %335 = vmatpush1.msra.mxu0 %v24
  %336 = vmatprep.subr.mxu0 0.0
  %337 = vmatpush1.msra.mxu0 %v23
  %338 = vmatprep.subr.mxu0 0.0
  %339 = vmatpush2.msra.mxu0 0.0
  %340 = vmatprep.subr.mxu0 0.0
  %341 = vmatpush2.msra.mxu0 0.0
  %342 = vmatprep.subr.mxu0 0.0
  %343 = vmatpush2.msra.mxu0 0.0
  %344 = vmatprep.subr.mxu0 0.0
  %345 = vmatpush2.msra.mxu0 0.0
  %346 = vmatprep.subr.mxu0 0.0
  %347 = vmatpush2.msra.mxu0 0.0
  %348 = vmatprep.subr.mxu0 0.0
  %349 = vmatpush2.msra.mxu0 0.0
  %350 = vmatprep.subr.mxu0 0.0
  %351 = vmatpush2.msra.mxu0 0.0
  %352 = vmatprep.subr.mxu0 0.0
  %353 = vmatpush2.msra.mxu0 0.0
  %354 = vmatprep.subr.mxu0 0.0
  %355 = vmatpush2.msra.mxu0 0.0
  %356 = vmatprep.subr.mxu0 0.0
  %357 = vmatpush2.msra.mxu0 0.0
  %358 = vmatprep.subr.mxu0 0.0
  %359 = vmatpush2.msra.mxu0 0.0
  %360 = vmatprep.subr.mxu0 0.0
  %361 = vmatpush2.msra.mxu0 0.0
  %362 = vmatprep.subr.mxu0 0.0
  %363 = vmatpush2.msra.mxu0 0.0
  %364 = vmatprep.subr.mxu0 0.0
  %365 = vmatpush2.msra.mxu0 0.0
  %366 = vmatprep.subr.mxu0 0.0
  %367 = vmatpush2.msra.mxu0 0.0
  %368 = vmatprep.subr.mxu0 0.0
  %369 = vmatpush2.msra.mxu0 0.0
  %370 = vmatprep.mubr.f32.mxu0 0.0
  %371 = vmatmul.mubr.f32.gmra.mxu0 %v259
  %v372 = vpop.f32.mrf.mxu0
  %v373 = vadd.f32 0.0, %v372
  %v374 = vpop.f32.mrf.mxu0
  %375 = vmatprep.mubr.f32.mxu0 0.0
  %376 = vmatmul.mubr.f32.gmra.mxu0 %v262
  %v377 = vpop.f32.mrf.mxu0
  %v378 = vadd.f32 0.0, %v377
  %v379 = vpop.f32.mrf.mxu0
  %380 = vmatprep.mubr.f32.mxu0 0.0
  %381 = vmatmul.mubr.f32.gmra.mxu0 %v265
  %v382 = vpop.f32.mrf.mxu0
  %v383 = vadd.f32 0.0, %v382
  %v384 = vpop.f32.mrf.mxu0
  %385 = vmatprep.mubr.f32.mxu0 0.0
  %386 = vmatmul.mubr.f32.gmra.mxu0 %v268
  %v387 = vpop.f32.mrf.mxu0
  %v388 = vadd.f32 0.0, %v387
  %v389 = vpop.f32.mrf.mxu0
  %390 = vmatprep.mubr.f32.mxu0 0.0
  %391 = vmatmul.mubr.f32.gmra.mxu0 %v271
  %v392 = vpop.f32.mrf.mxu0
  %v393 = vadd.f32 0.0, %v392
  %v394 = vpop.f32.mrf.mxu0
  %395 = vmatprep.mubr.f32.mxu0 0.0
  %396 = vmatmul.mubr.f32.gmra.mxu0 %v274
  %v397 = vpop.f32.mrf.mxu0
  %v398 = vadd.f32 0.0, %v397
  %v399 = vpop.f32.mrf.mxu0
  %400 = vmatprep.mubr.f32.mxu0 0.0
  %401 = vmatmul.mubr.f32.gmra.mxu0 %v277
  %v402 = vpop.f32.mrf.mxu0
  %v403 = vadd.f32 0.0, %v402
  %v404 = vpop.f32.mrf.mxu0
  %405 = vmatprep.mubr.f32.mxu0 0.0
  %406 = vmatmul.mubr.f32.gmra.mxu0 %v280
  %v407 = vpop.f32.mrf.mxu0
  %v408 = vadd.f32 0.0, %v407
  %v409 = vpop.f32.mrf.mxu0
  %410 = vmatprep.mubr.f32.mxu0 0.0
  %411 = vmatmul.mubr.f32.gmra.mxu0 %v283
  %v412 = vpop.f32.mrf.mxu0
  %v413 = vadd.f32 0.0, %v412
  %v414 = vpop.f32.mrf.mxu0
  %415 = vmatprep.mubr.f32.mxu0 0.0
  %416 = vmatmul.mubr.f32.gmra.mxu0 %v286
  %v417 = vpop.f32.mrf.mxu0
  %v418 = vadd.f32 0.0, %v417
  %v419 = vpop.f32.mrf.mxu0
  %420 = vmatprep.mubr.f32.mxu0 0.0
  %421 = vmatmul.mubr.f32.gmra.mxu0 %v289
  %v422 = vpop.f32.mrf.mxu0
  %v423 = vadd.f32 0.0, %v422
  %v424 = vpop.f32.mrf.mxu0
  %425 = vmatprep.mubr.f32.mxu0 0.0
  %426 = vmatmul.mubr.f32.gmra.mxu0 %v292
  %v427 = vpop.f32.mrf.mxu0
  %v428 = vadd.f32 0.0, %v427
  %v429 = vpop.f32.mrf.mxu0
  %430 = vmatprep.mubr.f32.mxu0 0.0
  %431 = vmatmul.mubr.f32.gmra.mxu0 %v295
  %v432 = vpop.f32.mrf.mxu0
  %v433 = vadd.f32 0.0, %v432
  %v434 = vpop.f32.mrf.mxu0
  %435 = vmatprep.mubr.f32.mxu0 0.0
  %436 = vmatmul.mubr.f32.gmra.mxu0 %v298
  %v437 = vpop.f32.mrf.mxu0
  %v438 = vadd.f32 0.0, %v437
  %v439 = vpop.f32.mrf.mxu0
  %440 = vmatprep.mubr.f32.mxu0 0.0
  %441 = vmatmul.mubr.f32.gmra.mxu0 %v301
  %v442 = vpop.f32.mrf.mxu0
  %v443 = vadd.f32 0.0, %v442
  %v444 = vpop.f32.mrf.mxu0
  %445 = vmatprep.mubr.f32.mxu0 0.0
  %446 = vmatmul.mubr.f32.gmra.mxu0 %v304
  %v447 = vpop.f32.mrf.mxu0
  %v448 = vadd.f32 0.0, %v447
  %v449 = vpop.f32.mrf.mxu0
  %450 = vdwg.mxu0
  %v451 = vmax.f32 %v164, %v373
  %v452 = vmax.f32 %v169, %v378
  %v453 = vmax.f32 %v174, %v383
  %v454 = vmax.f32 %v179, %v388
  %v455 = vmax.f32 %v184, %v393
  %v456 = vmax.f32 %v189, %v398
  %v457 = vmax.f32 %v194, %v403
  %v458 = vmax.f32 %v199, %v408
  %v459 = vmax.f32 %v204, %v413
  %v460 = vmax.f32 %v209, %v418
  %v461 = vmax.f32 %v214, %v423
  %v462 = vmax.f32 %v219, %v428
  %v463 = vmax.f32 %v224, %v433
  %v464 = vmax.f32 %v229, %v438
  %v465 = vmax.f32 %v234, %v443
  %v466 = vmax.f32 %v239, %v448
  %v467 = vld [vmem:[%s2] sm:$0xff]
  %v468 = vld [vmem:[%s2 + $0x8] sm:$0xff]
  %v469 = vld [vmem:[%s2 + $0x10] sm:$0xff]
  %v470 = vld [vmem:[%s2 + $0x18] sm:$0xff]
  %v471 = vld [vmem:[%s2 + $0x20] sm:$0xff]
  %v472 = vld [vmem:[%s2 + $0x28] sm:$0xff]
  %v473 = vld [vmem:[%s2 + $0x30] sm:$0xff]
  %v474 = vld [vmem:[%s2 + $0x38] sm:$0xff]
  %v475 = vld [vmem:[%s2 + $0x40] sm:$0xff]
  %v476 = vld [vmem:[%s2 + $0x48] sm:$0xff]
  %v477 = vld [vmem:[%s2 + $0x50] sm:$0xff]
  %v478 = vld [vmem:[%s2 + $0x58] sm:$0xff]
  %v479 = vld [vmem:[%s2 + $0x60] sm:$0xff]
  %v480 = vld [vmem:[%s2 + $0x68] sm:$0xff]
  %v481 = vld [vmem:[%s2 + $0x70] sm:$0xff]
  %v482 = vld [vmem:[%s2 + $0x78] sm:$0xff]
  %v484 = vsel %vm44, %v467, 0
  %v487 = vsel %vm44, %v468, 0
  %v490 = vsel %vm44, %v469, 0
  %v493 = vsel %vm44, %v470, 0
  %v496 = vsel %vm44, %v471, 0
  %v499 = vsel %vm44, %v472, 0
  %v502 = vsel %vm44, %v473, 0
  %v505 = vsel %vm44, %v474, 0
  %v508 = vsel %vm44, %v475, 0
  %v511 = vsel %vm44, %v476, 0
  %v514 = vsel %vm44, %v477, 0
  %v517 = vsel %vm44, %v478, 0
  %v520 = vsel %vm44, %v479, 0
  %v523 = vsel %vm44, %v480, 0
  %v526 = vsel %vm44, %v481, 0
  %v529 = vsel %vm44, %v482, 0
  %531 = vmatprep.subr.mxu0 0.0
  %532 = vmatpush1.msra.mxu0 0.0
  %533 = vmatprep.subr.mxu0 0.0
  %534 = vmatpush1.msra.mxu0 0.0
  %535 = vmatprep.subr.mxu0 0.0
  %536 = vmatpush1.msra.mxu0 0.0
  %537 = vmatprep.subr.mxu0 0.0
  %538 = vmatpush1.msra.mxu0 0.0
  %539 = vmatprep.subr.mxu0 0.0
  %540 = vmatpush1.msra.mxu0 0.0
  %541 = vmatprep.subr.mxu0 0.0
  %542 = vmatpush1.msra.mxu0 0.0
  %543 = vmatprep.subr.mxu0 0.0
  %544 = vmatpush1.msra.mxu0 0.0
  %545 = vmatprep.subr.mxu0 0.0
  %546 = vmatpush1.msra.mxu0 0.0
  %547 = vmatprep.subr.mxu0 0.0
  %548 = vmatpush1.msra.mxu0 0.0
  %549 = vmatprep.subr.mxu0 0.0
  %550 = vmatpush1.msra.mxu0 0.0
  %551 = vmatprep.subr.mxu0 0.0
  %552 = vmatpush1.msra.mxu0 0.0
  %553 = vmatprep.subr.mxu0 0.0
  %554 = vmatpush1.msra.mxu0 %v95
  %555 = vmatprep.subr.mxu0 0.0
  %556 = vmatpush1.msra.mxu0 %v26
  %557 = vmatprep.subr.mxu0 0.0
  %558 = vmatpush1.msra.mxu0 %v25
  %559 = vmatprep.subr.mxu0 0.0
  %560 = vmatpush1.msra.mxu0 %v24
  %561 = vmatprep.subr.mxu0 0.0
  %562 = vmatpush1.msra.mxu0 %v23
  %563 = vmatprep.subr.mxu0 0.0
  %564 = vmatpush2.msra.mxu0 0.0
  %565 = vmatprep.subr.mxu0 0.0
  %566 = vmatpush2.msra.mxu0 0.0
  %567 = vmatprep.subr.mxu0 0.0
  %568 = vmatpush2.msra.mxu0 0.0
  %569 = vmatprep.subr.mxu0 0.0
  %570 = vmatpush2.msra.mxu0 0.0
  %571 = vmatprep.subr.mxu0 0.0
  %572 = vmatpush2.msra.mxu0 0.0
  %573 = vmatprep.subr.mxu0 0.0
  %574 = vmatpush2.msra.mxu0 0.0
  %575 = vmatprep.subr.mxu0 0.0
  %576 = vmatpush2.msra.mxu0 0.0
  %577 = vmatprep.subr.mxu0 0.0
  %578 = vmatpush2.msra.mxu0 0.0
  %579 = vmatprep.subr.mxu0 0.0
  %580 = vmatpush2.msra.mxu0 0.0
  %581 = vmatprep.subr.mxu0 0.0
  %582 = vmatpush2.msra.mxu0 0.0
  %583 = vmatprep.subr.mxu0 0.0
  %584 = vmatpush2.msra.mxu0 0.0
  %585 = vmatprep.subr.mxu0 0.0
  %586 = vmatpush2.msra.mxu0 0.0
  %587 = vmatprep.subr.mxu0 0.0
  %588 = vmatpush2.msra.mxu0 0.0
  %589 = vmatprep.subr.mxu0 0.0
  %590 = vmatpush2.msra.mxu0 0.0
  %591 = vmatprep.subr.mxu0 0.0
  %592 = vmatpush2.msra.mxu0 0.0
  %593 = vmatprep.subr.mxu0 0.0
  %594 = vmatpush2.msra.mxu0 0.0
  %595 = vmatprep.mubr.f32.mxu0 0.0
  %596 = vmatmul.mubr.f32.gmra.mxu0 %v484
  %v597 = vpop.f32.mrf.mxu0
  %v598 = vadd.f32 0.0, %v597
  %v599 = vpop.f32.mrf.mxu0
  %600 = vmatprep.mubr.f32.mxu0 0.0
  %601 = vmatmul.mubr.f32.gmra.mxu0 %v487
  %v602 = vpop.f32.mrf.mxu0
  %v603 = vadd.f32 0.0, %v602
  %v604 = vpop.f32.mrf.mxu0
  %605 = vmatprep.mubr.f32.mxu0 0.0
  %606 = vmatmul.mubr.f32.gmra.mxu0 %v490
  %v607 = vpop.f32.mrf.mxu0
  %v608 = vadd.f32 0.0, %v607
  %v609 = vpop.f32.mrf.mxu0
  %610 = vmatprep.mubr.f32.mxu0 0.0
  %611 = vmatmul.mubr.f32.gmra.mxu0 %v493
  %v612 = vpop.f32.mrf.mxu0
  %v613 = vadd.f32 0.0, %v612
  %v614 = vpop.f32.mrf.mxu0
  %615 = vmatprep.mubr.f32.mxu0 0.0
  %616 = vmatmul.mubr.f32.gmra.mxu0 %v496
  %v617 = vpop.f32.mrf.mxu0
  %v618 = vadd.f32 0.0, %v617
  %v619 = vpop.f32.mrf.mxu0
  %620 = vmatprep.mubr.f32.mxu0 0.0
  %621 = vmatmul.mubr.f32.gmra.mxu0 %v499
  %v622 = vpop.f32.mrf.mxu0
  %v623 = vadd.f32 0.0, %v622
  %v624 = vpop.f32.mrf.mxu0
  %625 = vmatprep.mubr.f32.mxu0 0.0
  %626 = vmatmul.mubr.f32.gmra.mxu0 %v502
  %v627 = vpop.f32.mrf.mxu0
  %v628 = vadd.f32 0.0, %v627
  %v629 = vpop.f32.mrf.mxu0
  %630 = vmatprep.mubr.f32.mxu0 0.0
  %631 = vmatmul.mubr.f32.gmra.mxu0 %v505
  %v632 = vpop.f32.mrf.mxu0
  %v633 = vadd.f32 0.0, %v632
  %v634 = vpop.f32.mrf.mxu0
  %635 = vmatprep.mubr.f32.mxu0 0.0
  %636 = vmatmul.mubr.f32.gmra.mxu0 %v508
  %v637 = vpop.f32.mrf.mxu0
  %v638 = vadd.f32 0.0, %v637
  %v639 = vpop.f32.mrf.mxu0
  %640 = vmatprep.mubr.f32.mxu0 0.0
  %641 = vmatmul.mubr.f32.gmra.mxu0 %v511
  %v642 = vpop.f32.mrf.mxu0
  %v643 = vadd.f32 0.0, %v642
  %v644 = vpop.f32.mrf.mxu0
  %645 = vmatprep.mubr.f32.mxu0 0.0
  %646 = vmatmul.mubr.f32.gmra.mxu0 %v514
  %v647 = vpop.f32.mrf.mxu0
  %v648 = vadd.f32 0.0, %v647
  %v649 = vpop.f32.mrf.mxu0
  %650 = vmatprep.mubr.f32.mxu0 0.0
  %651 = vmatmul.mubr.f32.gmra.mxu0 %v517
  %v652 = vpop.f32.mrf.mxu0
  %v653 = vadd.f32 0.0, %v652
  %v654 = vpop.f32.mrf.mxu0
  %655 = vmatprep.mubr.f32.mxu0 0.0
  %656 = vmatmul.mubr.f32.gmra.mxu0 %v520
  %v657 = vpop.f32.mrf.mxu0
  %v658 = vadd.f32 0.0, %v657
  %v659 = vpop.f32.mrf.mxu0
  %660 = vmatprep.mubr.f32.mxu0 0.0
  %661 = vmatmul.mubr.f32.gmra.mxu0 %v523
  %v662 = vpop.f32.mrf.mxu0
  %v663 = vadd.f32 0.0, %v662
  %v664 = vpop.f32.mrf.mxu0
  %665 = vmatprep.mubr.f32.mxu0 0.0
  %666 = vmatmul.mubr.f32.gmra.mxu0 %v526
  %v667 = vpop.f32.mrf.mxu0
  %v668 = vadd.f32 0.0, %v667
  %v669 = vpop.f32.mrf.mxu0
  %670 = vmatprep.mubr.f32.mxu0 0.0
  %671 = vmatmul.mubr.f32.gmra.mxu0 %v529
  %v672 = vpop.f32.mrf.mxu0
  %v673 = vadd.f32 0.0, %v672
  %v674 = vpop.f32.mrf.mxu0
  %675 = vdwg.mxu0
  %v676 = vmax.f32 %v451, %v598
  %v677 = vmax.f32 %v452, %v603
  %v678 = vmax.f32 %v453, %v608
  %v679 = vmax.f32 %v454, %v613
  %v680 = vmax.f32 %v455, %v618
  %v681 = vmax.f32 %v456, %v623
  %v682 = vmax.f32 %v457, %v628
  %v683 = vmax.f32 %v458, %v633
  %v684 = vmax.f32 %v459, %v638
  %v685 = vmax.f32 %v460, %v643
  %v686 = vmax.f32 %v461, %v648
  %v687 = vmax.f32 %v462, %v653
  %v688 = vmax.f32 %v463, %v658
  %v689 = vmax.f32 %v464, %v663
  %v690 = vmax.f32 %v465, %v668
  %v691 = vmax.f32 %v466, %v673
  %v692 = vld [vmem:[%s3] sm:$0xff]
  %v693 = vld [vmem:[%s3 + $0x8] sm:$0xff]
  %v694 = vld [vmem:[%s3 + $0x10] sm:$0xff]
  %v695 = vld [vmem:[%s3 + $0x18] sm:$0xff]
  %v696 = vld [vmem:[%s3 + $0x20] sm:$0xff]
  %v697 = vld [vmem:[%s3 + $0x28] sm:$0xff]
  %v698 = vld [vmem:[%s3 + $0x30] sm:$0xff]
  %v699 = vld [vmem:[%s3 + $0x38] sm:$0xff]
  %v700 = vld [vmem:[%s3 + $0x40] sm:$0xff]
  %v701 = vld [vmem:[%s3 + $0x48] sm:$0xff]
  %v702 = vld [vmem:[%s3 + $0x50] sm:$0xff]
  %v703 = vld [vmem:[%s3 + $0x58] sm:$0xff]
  %v704 = vld [vmem:[%s3 + $0x60] sm:$0xff]
  %v705 = vld [vmem:[%s3 + $0x68] sm:$0xff]
  %v706 = vld [vmem:[%s3 + $0x70] sm:$0xff]
  %v707 = vld [vmem:[%s3 + $0x78] sm:$0xff]
  %v709 = vsel %vm44, %v692, 0
  %v712 = vsel %vm44, %v693, 0
  %v715 = vsel %vm44, %v694, 0
  %v718 = vsel %vm44, %v695, 0
  %v721 = vsel %vm44, %v696, 0
  %v724 = vsel %vm44, %v697, 0
  %v727 = vsel %vm44, %v698, 0
  %v730 = vsel %vm44, %v699, 0
  %v733 = vsel %vm44, %v700, 0
  %v736 = vsel %vm44, %v701, 0
  %v739 = vsel %vm44, %v702, 0
  %v742 = vsel %vm44, %v703, 0
  %v745 = vsel %vm44, %v704, 0
  %v748 = vsel %vm44, %v705, 0
  %v751 = vsel %vm44, %v706, 0
  %v754 = vsel %vm44, %v707, 0
  %756 = vmatprep.subr.mxu0 0.0
  %757 = vmatpush1.msra.mxu0 0.0
  %758 = vmatprep.subr.mxu0 0.0
  %759 = vmatpush1.msra.mxu0 0.0
  %760 = vmatprep.subr.mxu0 0.0
  %761 = vmatpush1.msra.mxu0 0.0
  %762 = vmatprep.subr.mxu0 0.0
  %763 = vmatpush1.msra.mxu0 0.0
  %764 = vmatprep.subr.mxu0 0.0
  %765 = vmatpush1.msra.mxu0 0.0
  %766 = vmatprep.subr.mxu0 0.0
  %767 = vmatpush1.msra.mxu0 0.0
  %768 = vmatprep.subr.mxu0 0.0
  %769 = vmatpush1.msra.mxu0 0.0
  %770 = vmatprep.subr.mxu0 0.0
  %771 = vmatpush1.msra.mxu0 0.0
  %772 = vmatprep.subr.mxu0 0.0
  %773 = vmatpush1.msra.mxu0 0.0
  %774 = vmatprep.subr.mxu0 0.0
  %775 = vmatpush1.msra.mxu0 0.0
  %776 = vmatprep.subr.mxu0 0.0
  %777 = vmatpush1.msra.mxu0 0.0
  %778 = vmatprep.subr.mxu0 0.0
  %779 = vmatpush1.msra.mxu0 %v95
  %780 = vmatprep.subr.mxu0 0.0
  %781 = vmatpush1.msra.mxu0 %v26
  %782 = vmatprep.subr.mxu0 0.0
  %783 = vmatpush1.msra.mxu0 %v25
  %784 = vmatprep.subr.mxu0 0.0
  %785 = vmatpush1.msra.mxu0 %v24
  %786 = vmatprep.subr.mxu0 0.0
  %787 = vmatpush1.msra.mxu0 %v23
  %788 = vmatprep.subr.mxu0 0.0
  %789 = vmatpush2.msra.mxu0 0.0
  %790 = vmatprep.subr.mxu0 0.0
  %791 = vmatpush2.msra.mxu0 0.0
  %792 = vmatprep.subr.mxu0 0.0
  %793 = vmatpush2.msra.mxu0 0.0
  %794 = vmatprep.subr.mxu0 0.0
  %795 = vmatpush2.msra.mxu0 0.0
  %796 = vmatprep.subr.mxu0 0.0
  %797 = vmatpush2.msra.mxu0 0.0
  %798 = vmatprep.subr.mxu0 0.0
  %799 = vmatpush2.msra.mxu0 0.0
  %800 = vmatprep.subr.mxu0 0.0
  %801 = vmatpush2.msra.mxu0 0.0
  %802 = vmatprep.subr.mxu0 0.0
  %803 = vmatpush2.msra.mxu0 0.0
  %804 = vmatprep.subr.mxu0 0.0
  %805 = vmatpush2.msra.mxu0 0.0
  %806 = vmatprep.subr.mxu0 0.0
  %807 = vmatpush2.msra.mxu0 0.0
  %808 = vmatprep.subr.mxu0 0.0
  %809 = vmatpush2.msra.mxu0 0.0
  %810 = vmatprep.subr.mxu0 0.0
  %811 = vmatpush2.msra.mxu0 0.0
  %812 = vmatprep.subr.mxu0 0.0
  %813 = vmatpush2.msra.mxu0 0.0
  %814 = vmatprep.subr.mxu0 0.0
  %815 = vmatpush2.msra.mxu0 0.0
  %816 = vmatprep.subr.mxu0 0.0
  %817 = vmatpush2.msra.mxu0 0.0
  %818 = vmatprep.subr.mxu0 0.0
  %819 = vmatpush2.msra.mxu0 0.0
  %820 = vmatprep.mubr.f32.mxu0 0.0
  %821 = vmatmul.mubr.f32.gmra.mxu0 %v709
  %v822 = vpop.f32.mrf.mxu0
  %v823 = vadd.f32 0.0, %v822
  %v824 = vpop.f32.mrf.mxu0
  %825 = vmatprep.mubr.f32.mxu0 0.0
  %826 = vmatmul.mubr.f32.gmra.mxu0 %v712
  %v827 = vpop.f32.mrf.mxu0
  %v828 = vadd.f32 0.0, %v827
  %v829 = vpop.f32.mrf.mxu0
  %830 = vmatprep.mubr.f32.mxu0 0.0
  %831 = vmatmul.mubr.f32.gmra.mxu0 %v715
  %v832 = vpop.f32.mrf.mxu0
  %v833 = vadd.f32 0.0, %v832
  %v834 = vpop.f32.mrf.mxu0
  %835 = vmatprep.mubr.f32.mxu0 0.0
  %836 = vmatmul.mubr.f32.gmra.mxu0 %v718
  %v837 = vpop.f32.mrf.mxu0
  %v838 = vadd.f32 0.0, %v837
  %v839 = vpop.f32.mrf.mxu0
  %840 = vmatprep.mubr.f32.mxu0 0.0
  %841 = vmatmul.mubr.f32.gmra.mxu0 %v721
  %v842 = vpop.f32.mrf.mxu0
  %v843 = vadd.f32 0.0, %v842
  %v844 = vpop.f32.mrf.mxu0
  %845 = vmatprep.mubr.f32.mxu0 0.0
  %846 = vmatmul.mubr.f32.gmra.mxu0 %v724
  %v847 = vpop.f32.mrf.mxu0
  %v848 = vadd.f32 0.0, %v847
  %v849 = vpop.f32.mrf.mxu0
  %850 = vmatprep.mubr.f32.mxu0 0.0
  %851 = vmatmul.mubr.f32.gmra.mxu0 %v727
  %v852 = vpop.f32.mrf.mxu0
  %v853 = vadd.f32 0.0, %v852
  %v854 = vpop.f32.mrf.mxu0
  %855 = vmatprep.mubr.f32.mxu0 0.0
  %856 = vmatmul.mubr.f32.gmra.mxu0 %v730
  %v857 = vpop.f32.mrf.mxu0
  %v858 = vadd.f32 0.0, %v857
  %v859 = vpop.f32.mrf.mxu0
  %860 = vmatprep.mubr.f32.mxu0 0.0
  %861 = vmatmul.mubr.f32.gmra.mxu0 %v733
  %v862 = vpop.f32.mrf.mxu0
  %v863 = vadd.f32 0.0, %v862
  %v864 = vpop.f32.mrf.mxu0
  %865 = vmatprep.mubr.f32.mxu0 0.0
  %866 = vmatmul.mubr.f32.gmra.mxu0 %v736
  %v867 = vpop.f32.mrf.mxu0
  %v868 = vadd.f32 0.0, %v867
  %v869 = vpop.f32.mrf.mxu0
  %870 = vmatprep.mubr.f32.mxu0 0.0
  %871 = vmatmul.mubr.f32.gmra.mxu0 %v739
  %v872 = vpop.f32.mrf.mxu0
  %v873 = vadd.f32 0.0, %v872
  %v874 = vpop.f32.mrf.mxu0
  %875 = vmatprep.mubr.f32.mxu0 0.0
  %876 = vmatmul.mubr.f32.gmra.mxu0 %v742
  %v877 = vpop.f32.mrf.mxu0
  %v878 = vadd.f32 0.0, %v877
  %v879 = vpop.f32.mrf.mxu0
  %880 = vmatprep.mubr.f32.mxu0 0.0
  %881 = vmatmul.mubr.f32.gmra.mxu0 %v745
  %v882 = vpop.f32.mrf.mxu0
  %v883 = vadd.f32 0.0, %v882
  %v884 = vpop.f32.mrf.mxu0
  %885 = vmatprep.mubr.f32.mxu0 0.0
  %886 = vmatmul.mubr.f32.gmra.mxu0 %v748
  %v887 = vpop.f32.mrf.mxu0
  %v888 = vadd.f32 0.0, %v887
  %v889 = vpop.f32.mrf.mxu0
  %890 = vmatprep.mubr.f32.mxu0 0.0
  %891 = vmatmul.mubr.f32.gmra.mxu0 %v751
  %v892 = vpop.f32.mrf.mxu0
  %v893 = vadd.f32 0.0, %v892
  %v894 = vpop.f32.mrf.mxu0
  %895 = vmatprep.mubr.f32.mxu0 0.0
  %896 = vmatmul.mubr.f32.gmra.mxu0 %v754
  %v897 = vpop.f32.mrf.mxu0
  %v898 = vadd.f32 0.0, %v897
  %v899 = vpop.f32.mrf.mxu0
  %900 = vdwg.mxu0
  %v901 = vmax.f32 %v676, %v823
  %v902 = vmax.f32 %v677, %v828
  %v903 = vmax.f32 %v678, %v833
  %v904 = vmax.f32 %v679, %v838
  %v905 = vmax.f32 %v680, %v843
  %v906 = vmax.f32 %v681, %v848
  %v907 = vmax.f32 %v682, %v853
  %v908 = vmax.f32 %v683, %v858
  %v909 = vmax.f32 %v684, %v863
  %v910 = vmax.f32 %v685, %v868
  %v911 = vmax.f32 %v686, %v873
  %v912 = vmax.f32 %v687, %v878
  %v913 = vmax.f32 %v688, %v883
  %v914 = vmax.f32 %v689, %v888
  %v915 = vmax.f32 %v690, %v893
  %v916 = vmax.f32 %v691, %v898
  %v917 = vld [vmem:[%s5] sm:$0x1]
  %v919 = vlaneseq
  %v920 = vshrl.u32 %v919, 7
  %v921 = vsub.s32 0, %v920
  %v922 = vrot.slane %v917, %v921
  %v924 = vadd.f32 %v901, %v922
  %v925 = vadd.f32 %v902, %v922
  %v926 = vadd.f32 %v903, %v922
  %v927 = vadd.f32 %v904, %v922
  %v928 = vadd.f32 %v905, %v922
  %v929 = vadd.f32 %v906, %v922
  %v930 = vadd.f32 %v907, %v922
  %v931 = vadd.f32 %v908, %v922
  %v932 = vadd.f32 %v909, %v922
  %v933 = vadd.f32 %v910, %v922
  %v934 = vadd.f32 %v911, %v922
  %v935 = vadd.f32 %v912, %v922
  %v936 = vadd.f32 %v913, %v922
  %v937 = vadd.f32 %v914, %v922
  %v938 = vadd.f32 %v915, %v922
  %v939 = vadd.f32 %v916, %v922
  %v940 = vmax.f32 %v924, 0.0
  %v941 = vmax.f32 %v925, 0.0
  %v942 = vmax.f32 %v926, 0.0
  %v943 = vmax.f32 %v927, 0.0
  %v944 = vmax.f32 %v928, 0.0
  %v945 = vmax.f32 %v929, 0.0
  %v946 = vmax.f32 %v930, 0.0
  %v947 = vmax.f32 %v931, 0.0
  %v948 = vmax.f32 %v932, 0.0
  %v949 = vmax.f32 %v933, 0.0
  %v950 = vmax.f32 %v934, 0.0
  %v951 = vmax.f32 %v935, 0.0
  %v952 = vmax.f32 %v936, 0.0
  %v953 = vmax.f32 %v937, 0.0
  %v954 = vmax.f32 %v938, 0.0
  %v955 = vmax.f32 %v939, 0.0
  %vm956 = vcmask 261120
  %957 = vst.msk [vmem:[%s6] sm:$0xff] %vm956, %v940
  %958 = vst.msk [vmem:[%s6 + $0x8] sm:$0xff] %vm956, %v941
  %959 = vst.msk [vmem:[%s6 + $0x10] sm:$0xff] %vm956, %v942
  %960 = vst.msk [vmem:[%s6 + $0x18] sm:$0xff] %vm956, %v943
  %961 = vst.msk [vmem:[%s6 + $0x20] sm:$0xff] %vm956, %v944
  %962 = vst.msk [vmem:[%s6 + $0x28] sm:$0xff] %vm956, %v945
  %963 = vst.msk [vmem:[%s6 + $0x30] sm:$0xff] %vm956, %v946
  %964 = vst.msk [vmem:[%s6 + $0x38] sm:$0xff] %vm956, %v947
  %965 = vst.msk [vmem:[%s6 + $0x40] sm:$0xff] %vm956, %v948
  %966 = vst.msk [vmem:[%s6 + $0x48] sm:$0xff] %vm956, %v949
  %967 = vst.msk [vmem:[%s6 + $0x50] sm:$0xff] %vm956, %v950
  %968 = vst.msk [vmem:[%s6 + $0x58] sm:$0xff] %vm956, %v951
  %969 = vst.msk [vmem:[%s6 + $0x60] sm:$0xff] %vm956, %v952
  %970 = vst.msk [vmem:[%s6 + $0x68] sm:$0xff] %vm956, %v953
  %971 = vst.msk [vmem:[%s6 + $0x70] sm:$0xff] %vm956, %v954
  %972 = vst.msk [vmem:[%s6 + $0x78] sm:$0xff] %vm956, %v955
  // Predicated region
  $region26: #{_feature_forward_impl.4} parent=0 // pred_check
    _
  $region27: #{_feature_forward_impl.4} parent=0 // pred_check_branch
    %974 = sbr.rel (0) target = $region29
  $region28: #{_feature_forward_impl.4} parent=0 // pred_region
    _
  $region29: #{_feature_forward_impl.4} parent=0 // pred_fallthru
    _
  // Predicated region
  $region30: #{_feature_forward_impl.4} parent=0 // pred_check
    _
  $region31: #{_feature_forward_impl.4} parent=0 // pred_check_branch
    %976 = sbr.rel (0) target = $region33
  $region32: #{_feature_forward_impl.4} parent=0 // pred_region
    _
  $region33: #{_feature_forward_impl.4} parent=0 // pred_fallthru
    _

// kernel: squeeze.20
$region0: #{squeeze.20}
  %s0 = inlined_call_operand.vmem [shape: f32[2,4,4,288], index: 0, kind: input, shape index: {}]
  %s1 = inlined_call_operand.vmem [shape: f32[32,288], index: 1, kind: output, shape index: {}]
  $region1: #{squeeze.20} parent=0
    #allocation0 [shape = 'u8[98304]{0}', space=vmem, size = 0x18000, scoped, tag = 'scoped mem for input reshape']
    %s3 = sshll.u32 1, 4
    %s4 = ssub.s32 %s3, 1
    %s5 = smul.addr 4, 23
    %s6 = scalar_lea.vmem %s0, %s5
    %v7 = vld [vmem:[%s6] sm:%s4]
    %s8 = scalar_lea.vmem [#allocation0], 184
    %9 = vst [vmem:[%s8] sm:%s4] %v7
    %s10 = smul.addr 4, 22
    %s11 = scalar_lea.vmem %s0, %s10
    %v12 = vld [vmem:[%s11] sm:%s4]
    %s13 = scalar_lea.vmem [#allocation0], 176
    %14 = vst [vmem:[%s13] sm:%s4] %v12
    %s15 = smul.addr 4, 21
    %s16 = scalar_lea.vmem %s0, %s15
    %v17 = vld [vmem:[%s16] sm:%s4]
    %s18 = scalar_lea.vmem [#allocation0], 168
    %19 = vst [vmem:[%s18] sm:%s4] %v17
    %s20 = smul.addr 4, 20
    %s21 = scalar_lea.vmem %s0, %s20
    %v22 = vld [vmem:[%s21] sm:%s4]
    %s23 = scalar_lea.vmem [#allocation0], 160
    %24 = vst [vmem:[%s23] sm:%s4] %v22
    %s25 = smul.addr 4, 19
    %s26 = scalar_lea.vmem %s0, %s25
    %v27 = vld [vmem:[%s26] sm:%s4]
    %s28 = scalar_lea.vmem [#allocation0], 152
    %29 = vst [vmem:[%s28] sm:%s4] %v27
    %s30 = smul.addr 4, 18
    %s31 = scalar_lea.vmem %s0, %s30
    %v32 = vld [vmem:[%s31] sm:%s4]
    %s33 = scalar_lea.vmem [#allocation0], 144
    %34 = vst [vmem:[%s33] sm:%s4] %v32
    %s35 = smul.addr 4, 17
    %s36 = scalar_lea.vmem %s0, %s35
    %v37 = vld [vmem:[%s36] sm:%s4]
    %s38 = scalar_lea.vmem [#allocation0], 136
    %39 = vst [vmem:[%s38] sm:%s4] %v37
    %s40 = smul.addr 4, 16
    %s41 = scalar_lea.vmem %s0, %s40
    %v42 = vld [vmem:[%s41] sm:%s4]
    %s43 = scalar_lea.vmem [#allocation0], 128
    %44 = vst [vmem:[%s43] sm:%s4] %v42
    %s45 = smul.addr 4, 15
    %s46 = scalar_lea.vmem %s0, %s45
    %v47 = vld [vmem:[%s46] sm:%s4]
    %s48 = scalar_lea.vmem [#allocation0], 120
    %49 = vst [vmem:[%s48] sm:%s4] %v47
    %s50 = smul.addr 4, 14
    %s51 = scalar_lea.vmem %s0, %s50
    %v52 = vld [vmem:[%s51] sm:%s4]
    %s53 = scalar_lea.vmem [#allocation0], 112
    %54 = vst [vmem:[%s53] sm:%s4] %v52
    %s55 = smul.addr 4, 13
    %s56 = scalar_lea.vmem %s0, %s55
    %v57 = vld [vmem:[%s56] sm:%s4]
    %s58 = scalar_lea.vmem [#allocation0], 104
    %59 = vst [vmem:[%s58] sm:%s4] %v57
    %s60 = smul.addr 4, 12
    %s61 = scalar_lea.vmem %s0, %s60
    %v62 = vld [vmem:[%s61] sm:%s4]
    %s63 = scalar_lea.vmem [#allocation0], 96
    %64 = vst [vmem:[%s63] sm:%s4] %v62
    %s65 = smul.addr 4, 11
    %s66 = scalar_lea.vmem %s0, %s65
    %v67 = vld [vmem:[%s66] sm:%s4]
    %s68 = scalar_lea.vmem [#allocation0], 88
    %69 = vst [vmem:[%s68] sm:%s4] %v67
    %s70 = smul.addr 4, 10
    %s71 = scalar_lea.vmem %s0, %s70
    %v72 = vld [vmem:[%s71] sm:%s4]
    %s73 = scalar_lea.vmem [#allocation0], 80
    %74 = vst [vmem:[%s73] sm:%s4] %v72
    %s75 = smul.addr 4, 9
    %s76 = scalar_lea.vmem %s0, %s75
    %v77 = vld [vmem:[%s76] sm:%s4]
    %s78 = scalar_lea.vmem [#allocation0], 72
    %79 = vst [vmem:[%s78] sm:%s4] %v77
    %s80 = smul.addr 4, 8
    %s81 = scalar_lea.vmem %s0, %s80
    %v82 = vld [vmem:[%s81] sm:%s4]
    %s83 = scalar_lea.vmem [#allocation0], 64
    %84 = vst [vmem:[%s83] sm:%s4] %v82
    %s85 = smul.addr 4, 7
    %s86 = scalar_lea.vmem %s0, %s85
    %v87 = vld [vmem:[%s86] sm:%s4]
    %s88 = scalar_lea.vmem [#allocation0], 56
    %89 = vst [vmem:[%s88] sm:%s4] %v87
    %s90 = smul.addr 4, 6
    %s91 = scalar_lea.vmem %s0, %s90
    %v92 = vld [vmem:[%s91] sm:%s4]
    %s93 = scalar_lea.vmem [#allocation0], 48
    %94 = vst [vmem:[%s93] sm:%s4] %v92
    %s95 = smul.addr 4, 5
    %s96 = scalar_lea.vmem %s0, %s95
    %v97 = vld [vmem:[%s96] sm:%s4]
    %s98 = scalar_lea.vmem [#allocation0], 40
    %99 = vst [vmem:[%s98] sm:%s4] %v97
    %s100 = smul.addr 4, 4
    %s101 = scalar_lea.vmem %s0, %s100
    %v102 = vld [vmem:[%s101] sm:%s4]
    %s103 = scalar_lea.vmem [#allocation0], 32
    %104 = vst [vmem:[%s103] sm:%s4] %v102
    %s105 = smul.addr 4, 3
    %s106 = scalar_lea.vmem %s0, %s105
    %v107 = vld [vmem:[%s106] sm:%s4]
    %s108 = scalar_lea.vmem [#allocation0], 24
    %109 = vst [vmem:[%s108] sm:%s4] %v107
    %s110 = smul.addr 4, 2
    %s111 = scalar_lea.vmem %s0, %s110
    %v112 = vld [vmem:[%s111] sm:%s4]
    %s113 = scalar_lea.vmem [#allocation0], 16
    %114 = vst [vmem:[%s113] sm:%s4] %v112
    %s115 = scalar_lea.vmem %s0, 4
    %v116 = vld [vmem:[%s115] sm:%s4]
    %s117 = scalar_lea.vmem [#allocation0], 8
    %118 = vst [vmem:[%s117] sm:%s4] %v116
    %v119 = vld [vmem:[%s0] sm:%s4]
    %120 = vst [vmem:[#allocation0] sm:%s4] %v119
    %s121 = scalar_lea.vmem [#allocation0], 16
    %v122 = vld [vmem:[%s121] sm:$0xf]
    %vm123 = vcmask 261120
    %s124 = scalar_lea.vmem %s1, 16
    %125 = vst.msk [vmem:[%s124] sm:$0xf] %vm123, %v122
    %s126 = scalar_lea.vmem [#allocation0], 40
    %v127 = vld [vmem:[%s126] sm:$0xf]
    %vm128 = vcmask 261120
    %s129 = scalar_lea.vmem %s1, 20
    %130 = vst.msk [vmem:[%s129] sm:$0xf] %vm128, %v127
    %s131 = scalar_lea.vmem [#allocation0], 64
    %v132 = vld [vmem:[%s131] sm:$0xf]
    %vm133 = vcmask 261120
    %s134 = scalar_lea.vmem %s1, 40
    %135 = vst.msk [vmem:[%s134] sm:$0xf] %vm133, %v132
    %s136 = scalar_lea.vmem [#allocation0], 88
    %v137 = vld [vmem:[%s136] sm:$0xf]
    %vm138 = vcmask 261120
    %s139 = scalar_lea.vmem %s1, 44
    %140 = vst.msk [vmem:[%s139] sm:$0xf] %vm138, %v137
    %s141 = scalar_lea.vmem [#allocation0], 112
    %v142 = vld [vmem:[%s141] sm:$0xf]
    %vm143 = vcmask 261120
    %s144 = scalar_lea.vmem %s1, 64
    %145 = vst.msk [vmem:[%s144] sm:$0xf] %vm143, %v142
    %s146 = scalar_lea.vmem [#allocation0], 136
    %v147 = vld [vmem:[%s146] sm:$0xf]
    %vm148 = vcmask 261120
    %s149 = scalar_lea.vmem %s1, 68
    %150 = vst.msk [vmem:[%s149] sm:$0xf] %vm148, %v147
    %s151 = scalar_lea.vmem [#allocation0], 160
    %v152 = vld [vmem:[%s151] sm:$0xf]
    %vm153 = vcmask 261120
    %s154 = scalar_lea.vmem %s1, 88
    %155 = vst.msk [vmem:[%s154] sm:$0xf] %vm153, %v152
    %s156 = scalar_lea.vmem [#allocation0], 184
    %v157 = vld [vmem:[%s156] sm:$0xf]
    %vm158 = vcmask 261120
    %s159 = scalar_lea.vmem %s1, 92
    %160 = vst.msk [vmem:[%s159] sm:$0xf] %vm158, %v157
    %v161 = vld [vmem:[#allocation0] sm:$0xf]
    %162 = vst [vmem:[%s1] sm:$0xf] %v161
    %s163 = scalar_lea.vmem [#allocation0], 8
    %v164 = vld [vmem:[%s163] sm:$0xf]
    %s165 = scalar_lea.vmem %s1, 8
    %166 = vst [vmem:[%s165] sm:$0xf] %v164
    %s167 = scalar_lea.vmem [#allocation0], 24
    %v168 = vld [vmem:[%s167] sm:$0xf]
    %s169 = scalar_lea.vmem %s1, 4
    %170 = vst [vmem:[%s169] sm:$0xf] %v168
    %s171 = scalar_lea.vmem [#allocation0], 32
    %v172 = vld [vmem:[%s171] sm:$0xf]
    %s173 = scalar_lea.vmem %s1, 12
    %174 = vst [vmem:[%s173] sm:$0xf] %v172
    %s175 = scalar_lea.vmem [#allocation0], 48
    %v176 = vld [vmem:[%s175] sm:$0xf]
    %s177 = scalar_lea.vmem %s1, 24
    %178 = vst [vmem:[%s177] sm:$0xf] %v176
    %s179 = scalar_lea.vmem [#allocation0], 56
    %v180 = vld [vmem:[%s179] sm:$0xf]
    %s181 = scalar_lea.vmem %s1, 32
    %182 = vst [vmem:[%s181] sm:$0xf] %v180
    %s183 = scalar_lea.vmem [#allocation0], 72
    %v184 = vld [vmem:[%s183] sm:$0xf]
    %s185 = scalar_lea.vmem %s1, 28
    %186 = vst [vmem:[%s185] sm:$0xf] %v184
    %s187 = scalar_lea.vmem [#allocation0], 80
    %v188 = vld [vmem:[%s187] sm:$0xf]
    %s189 = scalar_lea.vmem %s1, 36
    %190 = vst [vmem:[%s189] sm:$0xf] %v188
    %s191 = scalar_lea.vmem [#allocation0], 96
    %v192 = vld [vmem:[%s191] sm:$0xf]
    %s193 = scalar_lea.vmem %s1, 48
    %194 = vst [vmem:[%s193] sm:$0xf] %v192
    %s195 = scalar_lea.vmem [#allocation0], 104
    %v196 = vld [vmem:[%s195] sm:$0xf]
    %s197 = scalar_lea.vmem %s1, 56
    %198 = vst [vmem:[%s197] sm:$0xf] %v196
    %s199 = scalar_lea.vmem [#allocation0], 120
    %v200 = vld [vmem:[%s199] sm:$0xf]
    %s201 = scalar_lea.vmem %s1, 52
    %202 = vst [vmem:[%s201] sm:$0xf] %v200
    %s203 = scalar_lea.vmem [#allocation0], 128
    %v204 = vld [vmem:[%s203] sm:$0xf]
    %s205 = scalar_lea.vmem %s1, 60
    %206 = vst [vmem:[%s205] sm:$0xf] %v204
    %s207 = scalar_lea.vmem [#allocation0], 144
    %v208 = vld [vmem:[%s207] sm:$0xf]
    %s209 = scalar_lea.vmem %s1, 72
    %210 = vst [vmem:[%s209] sm:$0xf] %v208
    %s211 = scalar_lea.vmem [#allocation0], 152
    %v212 = vld [vmem:[%s211] sm:$0xf]
    %s213 = scalar_lea.vmem %s1, 80
    %214 = vst [vmem:[%s213] sm:$0xf] %v212
    %s215 = scalar_lea.vmem [#allocation0], 168
    %v216 = vld [vmem:[%s215] sm:$0xf]
    %s217 = scalar_lea.vmem %s1, 76
    %218 = vst [vmem:[%s217] sm:$0xf] %v216
    %s219 = scalar_lea.vmem [#allocation0], 176
    %v220 = vld [vmem:[%s219] sm:$0xf]
    %s221 = scalar_lea.vmem %s1, 84
    %222 = vst [vmem:[%s221] sm:$0xf] %v220

// kernel: _feature_forward_impl.5
$region0: #{_feature_forward_impl.5}
  #allocation0 [shape = 'u32[]', space=smem, size = 0x4, offset = 0x4, fixed_abs, tag = 'smem constant byte address 0x4 - core index']
  #allocation1 [shape = 'u32[144,128]{1,0:T(1,128)}', space=vmem, size = 0x12000, scoped, tag = 'internal scratch']
  %s0 = inlined_call_operand.vmem [shape: f32[32,288], index: 0, kind: input, shape index: {}]
  %s1 = inlined_call_operand.vmem [shape: f32[32,288], index: 1, kind: input, shape index: {}]
  %s2 = inlined_call_operand.vmem [shape: f32[32,288], index: 2, kind: input, shape index: {}]
  %s3 = inlined_call_operand.vmem [shape: f32[32,288], index: 3, kind: input, shape index: {}]
  %s4 = inlined_call_operand.vmem [shape: f32[288,32], index: 4, kind: input, shape index: {}]
  %s5 = inlined_call_operand.vmem [shape: f32[1,32], index: 5, kind: input, shape index: {}]
  %s6 = inlined_call_operand.vmem [shape: f32[32,32], index: 6, kind: output, shape index: {}]
  %s7 = sld [smem:[#allocation0]]
  $region34: #{_feature_forward_impl.5} parent=0
    _
  %s9 = ssub.s32 1, %s7
  %s10 = scalar_select 0, %s9, %s7
  // Predicated region
  $region2: #{_feature_forward_impl.5} parent=0 // pred_check
    _
  $region3: #{_feature_forward_impl.5} parent=0 // pred_check_branch
    %12 = sbr.rel (0) target = $region5
  $region4: #{_feature_forward_impl.5} parent=0 // pred_region
    _
  $region5: #{_feature_forward_impl.5} parent=0 // pred_fallthru
    _
  // Predicated region
  $region6: #{_feature_forward_impl.5} parent=0 // pred_check
    _
  $region7: #{_feature_forward_impl.5} parent=0 // pred_check_branch
    %14 = sbr.rel (0) target = $region9
  $region8: #{_feature_forward_impl.5} parent=0 // pred_region
    _
  $region9: #{_feature_forward_impl.5} parent=0 // pred_fallthru
    _
  // Predicated region
  $region10: #{_feature_forward_impl.5} parent=0 // pred_check
    _
  $region11: #{_feature_forward_impl.5} parent=0 // pred_check_branch
    %16 = sbr.rel (0) target = $region13
  $region12: #{_feature_forward_impl.5} parent=0 // pred_region
    _
  $region13: #{_feature_forward_impl.5} parent=0 // pred_fallthru
    _
  // Predicated region
  $region14: #{_feature_forward_impl.5} parent=0 // pred_check
    _
  $region15: #{_feature_forward_impl.5} parent=0 // pred_check_branch
    %18 = sbr.rel (0) target = $region17
  $region16: #{_feature_forward_impl.5} parent=0 // pred_region
    _
  $region17: #{_feature_forward_impl.5} parent=0 // pred_fallthru
    _
  // Predicated region
  $region18: #{_feature_forward_impl.5} parent=0 // pred_check
    _
  $region19: #{_feature_forward_impl.5} parent=0 // pred_check_branch
    %20 = sbr.rel (0) target = $region21
  $region20: #{_feature_forward_impl.5} parent=0 // pred_region
    _
  $region21: #{_feature_forward_impl.5} parent=0 // pred_fallthru
    _
  // Predicated region
  $region22: #{_feature_forward_impl.5} parent=0 // pred_check
    _
  $region23: #{_feature_forward_impl.5} parent=0 // pred_check_branch
    %22 = sbr.rel (0) target = $region25
  $region24: #{_feature_forward_impl.5} parent=0 // pred_region
    _
  $region25: #{_feature_forward_impl.5} parent=0 // pred_fallthru
    _
  %v23 = vld [vmem:[%s4] sm:$0xff]
  %v24 = vld [vmem:[%s4 + $0x8] sm:$0xff]
  %v25 = vld [vmem:[%s4 + $0x10] sm:$0xff]
  %v26 = vld [vmem:[%s4 + $0x18] sm:$0xff]
  %v27 = vld [vmem:[%s4 + $0x20] sm:$0xff]
  %v28 = vld [vmem:[%s4 + $0x28] sm:$0xff]
  %v29 = vld [vmem:[%s4 + $0x30] sm:$0xff]
  %v30 = vld [vmem:[%s4 + $0x38] sm:$0xff]
  %v31 = vld [vmem:[%s4 + $0x40] sm:$0xff]
  %v32 = vld [vmem:[%s4 + $0x48] sm:$0xff]
  %v33 = vld [vmem:[%s4 + $0x50] sm:$0xff]
  %v34 = vld [vmem:[%s4 + $0x58] sm:$0xff]
  %v35 = vld [vmem:[%s4 + $0x60] sm:$0xff]
  %v36 = vld [vmem:[%s4 + $0x68] sm:$0xff]
  %v37 = vld [vmem:[%s4 + $0x70] sm:$0xff]
  %v38 = vld [vmem:[%s4 + $0x78] sm:$0xff]
  %v39 = vld [vmem:[%s4 + $0x80] sm:$0xff]
  %v40 = vld [vmem:[%s4 + $0x88] sm:$0xff]
  %v41 = vld [vmem:[%s4 + $0x90] sm:$0xff]
  %v42 = vld [vmem:[%s4 + $0x98] sm:$0xff]
  %v43 = vld [vmem:[%s4 + $0xa0] sm:$0xff]
  %v44 = vld [vmem:[%s4 + $0xa8] sm:$0xff]
  %v45 = vld [vmem:[%s4 + $0xb0] sm:$0xff]
  %v46 = vld [vmem:[%s4 + $0xb8] sm:$0xff]
  %v47 = vld [vmem:[%s4 + $0xc0] sm:$0xff]
  %v48 = vld [vmem:[%s4 + $0xc8] sm:$0xff]
  %v49 = vld [vmem:[%s4 + $0xd0] sm:$0xff]
  %v50 = vld [vmem:[%s4 + $0xd8] sm:$0xff]
  %v51 = vld [vmem:[%s4 + $0xe0] sm:$0xff]
  %v52 = vld [vmem:[%s4 + $0xe8] sm:$0xff]
  %v53 = vld [vmem:[%s4 + $0xf0] sm:$0xff]
  %v54 = vld [vmem:[%s4 + $0xf8] sm:$0xff]
  %v55 = vld [vmem:[%s4 + $0x100] sm:$0xff]
  %v56 = vld [vmem:[%s4 + $0x108] sm:$0xff]
  %v57 = vld [vmem:[%s4 + $0x110] sm:$0xff]
  %v58 = vld [vmem:[%s4 + $0x118] sm:$0xff]
  %v59 = vld [vmem:[%s0] sm:$0xff]
  %v60 = vld [vmem:[%s0 + $0x8] sm:$0xff]
  %v61 = vld [vmem:[%s0 + $0x10] sm:$0xff]
  %v62 = vld [vmem:[%s0 + $0x18] sm:$0xff]
  %v63 = vld [vmem:[%s0 + $0x20] sm:$0xff]
  %v64 = vld [vmem:[%s0 + $0x28] sm:$0xff]
  %v65 = vld [vmem:[%s0 + $0x30] sm:$0xff]
  %v66 = vld [vmem:[%s0 + $0x38] sm:$0xff]
  %v67 = vld [vmem:[%s0 + $0x40] sm:$0xff]
  %v68 = vld [vmem:[%s0 + $0x48] sm:$0xff]
  %v69 = vld [vmem:[%s0 + $0x50] sm:$0xff]
  %v70 = vld [vmem:[%s0 + $0x58] sm:$0xff]
  %vm71 = vcmask 261120
  %v73 = vsel %vm71, %v61, 0
  %v76 = vsel %vm71, %v64, 0
  %v79 = vsel %vm71, %v67, 0
  %v82 = vsel %vm71, %v70, 0
  %84 = vmatprep.subr.mxu0 0.0
  %85 = vmatpush1.msra.mxu0 %v38
  %86 = vmatprep.subr.mxu0 0.0
  %87 = vmatpush1.msra.mxu0 %v37
  %88 = vmatprep.subr.mxu0 0.0
  %89 = vmatpush1.msra.mxu0 %v36
  %90 = vmatprep.subr.mxu0 0.0
  %91 = vmatpush1.msra.mxu0 %v35
  %92 = vmatprep.subr.mxu0 0.0
  %93 = vmatpush1.msra.mxu0 %v34
  %94 = vmatprep.subr.mxu0 0.0
  %95 = vmatpush1.msra.mxu0 %v33
  %96 = vmatprep.subr.mxu0 0.0
  %97 = vmatpush1.msra.mxu0 %v32
  %98 = vmatprep.subr.mxu0 0.0
  %99 = vmatpush1.msra.mxu0 %v31
  %100 = vmatprep.subr.mxu0 0.0
  %101 = vmatpush1.msra.mxu0 %v30
  %102 = vmatprep.subr.mxu0 0.0
  %103 = vmatpush1.msra.mxu0 %v29
  %104 = vmatprep.subr.mxu0 0.0
  %105 = vmatpush1.msra.mxu0 %v28
  %106 = vmatprep.subr.mxu0 0.0
  %107 = vmatpush1.msra.mxu0 %v27
  %108 = vmatprep.subr.mxu0 0.0
  %109 = vmatpush1.msra.mxu0 %v26
  %110 = vmatprep.subr.mxu0 0.0
  %111 = vmatpush1.msra.mxu0 %v25
  %112 = vmatprep.subr.mxu0 0.0
  %113 = vmatpush1.msra.mxu0 %v24
  %114 = vmatprep.subr.mxu0 0.0
  %115 = vmatpush1.msra.mxu0 %v23
  %116 = vmatprep.subr.mxu0 0.0
  %117 = vmatpush2.msra.mxu0 %v54
  %118 = vmatprep.subr.mxu0 0.0
  %119 = vmatpush2.msra.mxu0 %v53
  %120 = vmatprep.subr.mxu0 0.0
  %121 = vmatpush2.msra.mxu0 %v52
  %122 = vmatprep.subr.mxu0 0.0
  %123 = vmatpush2.msra.mxu0 %v51
  %124 = vmatprep.subr.mxu0 0.0
  %125 = vmatpush2.msra.mxu0 %v50
  %126 = vmatprep.subr.mxu0 0.0
  %127 = vmatpush2.msra.mxu0 %v49
  %128 = vmatprep.subr.mxu0 0.0
  %129 = vmatpush2.msra.mxu0 %v48
  %130 = vmatprep.subr.mxu0 0.0
  %131 = vmatpush2.msra.mxu0 %v47
  %132 = vmatprep.subr.mxu0 0.0
  %133 = vmatpush2.msra.mxu0 %v46
  %134 = vmatprep.subr.mxu0 0.0
  %135 = vmatpush2.msra.mxu0 %v45
  %136 = vmatprep.subr.mxu0 0.0
  %137 = vmatpush2.msra.mxu0 %v44
  %138 = vmatprep.subr.mxu0 0.0
  %139 = vmatpush2.msra.mxu0 %v43
  %140 = vmatprep.subr.mxu0 0.0
  %141 = vmatpush2.msra.mxu0 %v42
  %142 = vmatprep.subr.mxu0 0.0
  %143 = vmatpush2.msra.mxu0 %v41
  %144 = vmatprep.subr.mxu0 0.0
  %145 = vmatpush2.msra.mxu0 %v40
  %146 = vmatprep.subr.mxu0 0.0
  %147 = vmatpush2.msra.mxu0 %v39
  %148 = vmatprep.mubr.f32.mxu0 %v60
  %149 = vmatmul.mubr.f32.gmra.mxu0 %v59
  %v150 = vpop.f32.mrf.mxu0
  %v151 = vadd.f32 0.0, %v150
  %v152 = vpop.f32.mrf.mxu0
  %153 = vmatprep.mubr.f32.mxu0 %v63
  %154 = vmatmul.mubr.f32.gmra.mxu0 %v62
  %v155 = vpop.f32.mrf.mxu0
  %v156 = vadd.f32 0.0, %v155
  %v157 = vpop.f32.mrf.mxu0
  %158 = vmatprep.mubr.f32.mxu0 %v66
  %159 = vmatmul.mubr.f32.gmra.mxu0 %v65
  %v160 = vpop.f32.mrf.mxu0
  %v161 = vadd.f32 0.0, %v160
  %v162 = vpop.f32.mrf.mxu0
  %163 = vmatprep.mubr.f32.mxu0 %v69
  %164 = vmatmul.mubr.f32.gmra.mxu0 %v68
  %v165 = vpop.f32.mrf.mxu0
  %v166 = vadd.f32 0.0, %v165
  %v167 = vpop.f32.mrf.mxu0
  %168 = vdwg.mxu0
  %169 = vmatprep.subr.mxu0 0.0
  %170 = vmatpush1.msra.mxu0 0.0
  %171 = vmatprep.subr.mxu0 0.0
  %172 = vmatpush1.msra.mxu0 0.0
  %173 = vmatprep.subr.mxu0 0.0
  %174 = vmatpush1.msra.mxu0 0.0
  %175 = vmatprep.subr.mxu0 0.0
  %176 = vmatpush1.msra.mxu0 0.0
  %177 = vmatprep.subr.mxu0 0.0
  %178 = vmatpush1.msra.mxu0 0.0
  %179 = vmatprep.subr.mxu0 0.0
  %180 = vmatpush1.msra.mxu0 0.0
  %181 = vmatprep.subr.mxu0 0.0
  %182 = vmatpush1.msra.mxu0 0.0
  %183 = vmatprep.subr.mxu0 0.0
  %184 = vmatpush1.msra.mxu0 0.0
  %185 = vmatprep.subr.mxu0 0.0
  %186 = vmatpush1.msra.mxu0 0.0
  %187 = vmatprep.subr.mxu0 0.0
  %188 = vmatpush1.msra.mxu0 0.0
  %189 = vmatprep.subr.mxu0 0.0
  %190 = vmatpush1.msra.mxu0 0.0
  %191 = vmatprep.subr.mxu0 0.0
  %192 = vmatpush1.msra.mxu0 0.0
  %193 = vmatprep.subr.mxu0 0.0
  %194 = vmatpush1.msra.mxu0 %v58
  %195 = vmatprep.subr.mxu0 0.0
  %196 = vmatpush1.msra.mxu0 %v57
  %197 = vmatprep.subr.mxu0 0.0
  %198 = vmatpush1.msra.mxu0 %v56
  %199 = vmatprep.subr.mxu0 0.0
  %200 = vmatpush1.msra.mxu0 %v55
  %201 = vmatprep.subr.mxu0 0.0
  %202 = vmatpush2.msra.mxu0 0.0
  %203 = vmatprep.subr.mxu0 0.0
  %204 = vmatpush2.msra.mxu0 0.0
  %205 = vmatprep.subr.mxu0 0.0
  %206 = vmatpush2.msra.mxu0 0.0
  %207 = vmatprep.subr.mxu0 0.0
  %208 = vmatpush2.msra.mxu0 0.0
  %209 = vmatprep.subr.mxu0 0.0
  %210 = vmatpush2.msra.mxu0 0.0
  %211 = vmatprep.subr.mxu0 0.0
  %212 = vmatpush2.msra.mxu0 0.0
  %213 = vmatprep.subr.mxu0 0.0
  %214 = vmatpush2.msra.mxu0 0.0
  %215 = vmatprep.subr.mxu0 0.0
  %216 = vmatpush2.msra.mxu0 0.0
  %217 = vmatprep.subr.mxu0 0.0
  %218 = vmatpush2.msra.mxu0 0.0
  %219 = vmatprep.subr.mxu0 0.0
  %220 = vmatpush2.msra.mxu0 0.0
  %221 = vmatprep.subr.mxu0 0.0
  %222 = vmatpush2.msra.mxu0 0.0
  %223 = vmatprep.subr.mxu0 0.0
  %224 = vmatpush2.msra.mxu0 0.0
  %225 = vmatprep.subr.mxu0 0.0
  %226 = vmatpush2.msra.mxu0 0.0
  %227 = vmatprep.subr.mxu0 0.0
  %228 = vmatpush2.msra.mxu0 0.0
  %229 = vmatprep.subr.mxu0 0.0
  %230 = vmatpush2.msra.mxu0 0.0
  %231 = vmatprep.subr.mxu0 0.0
  %232 = vmatpush2.msra.mxu0 0.0
  %233 = vmatprep.mubr.f32.mxu0 0.0
  %234 = vmatmul.mubr.f32.gmra.mxu0 %v73
  %v235 = vpop.f32.mrf.mxu0
  %v236 = vadd.f32 %v151, %v235
  %v237 = vpop.f32.mrf.mxu0
  %238 = vmatprep.mubr.f32.mxu0 0.0
  %239 = vmatmul.mubr.f32.gmra.mxu0 %v76
  %v240 = vpop.f32.mrf.mxu0
  %v241 = vadd.f32 %v156, %v240
  %v242 = vpop.f32.mrf.mxu0
  %243 = vmatprep.mubr.f32.mxu0 0.0
  %244 = vmatmul.mubr.f32.gmra.mxu0 %v79
  %v245 = vpop.f32.mrf.mxu0
  %v246 = vadd.f32 %v161, %v245
  %v247 = vpop.f32.mrf.mxu0
  %248 = vmatprep.mubr.f32.mxu0 0.0
  %249 = vmatmul.mubr.f32.gmra.mxu0 %v82
  %v250 = vpop.f32.mrf.mxu0
  %v251 = vadd.f32 %v166, %v250
  %v252 = vpop.f32.mrf.mxu0
  %253 = vdwg.mxu0
  %v254 = vld [vmem:[%s1] sm:$0xff]
  %v255 = vld [vmem:[%s1 + $0x8] sm:$0xff]
  %v256 = vld [vmem:[%s1 + $0x10] sm:$0xff]
  %v257 = vld [vmem:[%s1 + $0x18] sm:$0xff]
  %v258 = vld [vmem:[%s1 + $0x20] sm:$0xff]
  %v259 = vld [vmem:[%s1 + $0x28] sm:$0xff]
  %v260 = vld [vmem:[%s1 + $0x30] sm:$0xff]
  %v261 = vld [vmem:[%s1 + $0x38] sm:$0xff]
  %v262 = vld [vmem:[%s1 + $0x40] sm:$0xff]
  %v263 = vld [vmem:[%s1 + $0x48] sm:$0xff]
  %v264 = vld [vmem:[%s1 + $0x50] sm:$0xff]
  %v265 = vld [vmem:[%s1 + $0x58] sm:$0xff]
  %v267 = vsel %vm71, %v256, 0
  %v270 = vsel %vm71, %v259, 0
  %v273 = vsel %vm71, %v262, 0
  %v276 = vsel %vm71, %v265, 0
  %278 = vmatprep.subr.mxu0 0.0
  %279 = vmatpush1.msra.mxu0 %v38
  %280 = vmatprep.subr.mxu0 0.0
  %281 = vmatpush1.msra.mxu0 %v37
  %282 = vmatprep.subr.mxu0 0.0
  %283 = vmatpush1.msra.mxu0 %v36
  %284 = vmatprep.subr.mxu0 0.0
  %285 = vmatpush1.msra.mxu0 %v35
  %286 = vmatprep.subr.mxu0 0.0
  %287 = vmatpush1.msra.mxu0 %v34
  %288 = vmatprep.subr.mxu0 0.0
  %289 = vmatpush1.msra.mxu0 %v33
  %290 = vmatprep.subr.mxu0 0.0
  %291 = vmatpush1.msra.mxu0 %v32
  %292 = vmatprep.subr.mxu0 0.0
  %293 = vmatpush1.msra.mxu0 %v31
  %294 = vmatprep.subr.mxu0 0.0
  %295 = vmatpush1.msra.mxu0 %v30
  %296 = vmatprep.subr.mxu0 0.0
  %297 = vmatpush1.msra.mxu0 %v29
  %298 = vmatprep.subr.mxu0 0.0
  %299 = vmatpush1.msra.mxu0 %v28
  %300 = vmatprep.subr.mxu0 0.0
  %301 = vmatpush1.msra.mxu0 %v27
  %302 = vmatprep.subr.mxu0 0.0
  %303 = vmatpush1.msra.mxu0 %v26
  %304 = vmatprep.subr.mxu0 0.0
  %305 = vmatpush1.msra.mxu0 %v25
  %306 = vmatprep.subr.mxu0 0.0
  %307 = vmatpush1.msra.mxu0 %v24
  %308 = vmatprep.subr.mxu0 0.0
  %309 = vmatpush1.msra.mxu0 %v23
  %310 = vmatprep.subr.mxu0 0.0
  %311 = vmatpush2.msra.mxu0 %v54
  %312 = vmatprep.subr.mxu0 0.0
  %313 = vmatpush2.msra.mxu0 %v53
  %314 = vmatprep.subr.mxu0 0.0
  %315 = vmatpush2.msra.mxu0 %v52
  %316 = vmatprep.subr.mxu0 0.0
  %317 = vmatpush2.msra.mxu0 %v51
  %318 = vmatprep.subr.mxu0 0.0
  %319 = vmatpush2.msra.mxu0 %v50
  %320 = vmatprep.subr.mxu0 0.0
  %321 = vmatpush2.msra.mxu0 %v49
  %322 = vmatprep.subr.mxu0 0.0
  %323 = vmatpush2.msra.mxu0 %v48
  %324 = vmatprep.subr.mxu0 0.0
  %325 = vmatpush2.msra.mxu0 %v47
  %326 = vmatprep.subr.mxu0 0.0
  %327 = vmatpush2.msra.mxu0 %v46
  %328 = vmatprep.subr.mxu0 0.0
  %329 = vmatpush2.msra.mxu0 %v45
  %330 = vmatprep.subr.mxu0 0.0
  %331 = vmatpush2.msra.mxu0 %v44
  %332 = vmatprep.subr.mxu0 0.0
  %333 = vmatpush2.msra.mxu0 %v43
  %334 = vmatprep.subr.mxu0 0.0
  %335 = vmatpush2.msra.mxu0 %v42
  %336 = vmatprep.subr.mxu0 0.0
  %337 = vmatpush2.msra.mxu0 %v41
  %338 = vmatprep.subr.mxu0 0.0
  %339 = vmatpush2.msra.mxu0 %v40
  %340 = vmatprep.subr.mxu0 0.0
  %341 = vmatpush2.msra.mxu0 %v39
  %342 = vmatprep.mubr.f32.mxu0 %v255
  %343 = vmatmul.mubr.f32.gmra.mxu0 %v254
  %v344 = vpop.f32.mrf.mxu0
  %v345 = vadd.f32 0.0, %v344
  %v346 = vpop.f32.mrf.mxu0
  %347 = vmatprep.mubr.f32.mxu0 %v258
  %348 = vmatmul.mubr.f32.gmra.mxu0 %v257
  %v349 = vpop.f32.mrf.mxu0
  %v350 = vadd.f32 0.0, %v349
  %v351 = vpop.f32.mrf.mxu0
  %352 = vmatprep.mubr.f32.mxu0 %v261
  %353 = vmatmul.mubr.f32.gmra.mxu0 %v260
  %v354 = vpop.f32.mrf.mxu0
  %v355 = vadd.f32 0.0, %v354
  %v356 = vpop.f32.mrf.mxu0
  %357 = vmatprep.mubr.f32.mxu0 %v264
  %358 = vmatmul.mubr.f32.gmra.mxu0 %v263
  %v359 = vpop.f32.mrf.mxu0
  %v360 = vadd.f32 0.0, %v359
  %v361 = vpop.f32.mrf.mxu0
  %362 = vdwg.mxu0
  %363 = vmatprep.subr.mxu0 0.0
  %364 = vmatpush1.msra.mxu0 0.0
  %365 = vmatprep.subr.mxu0 0.0
  %366 = vmatpush1.msra.mxu0 0.0
  %367 = vmatprep.subr.mxu0 0.0
  %368 = vmatpush1.msra.mxu0 0.0
  %369 = vmatprep.subr.mxu0 0.0
  %370 = vmatpush1.msra.mxu0 0.0
  %371 = vmatprep.subr.mxu0 0.0
  %372 = vmatpush1.msra.mxu0 0.0
  %373 = vmatprep.subr.mxu0 0.0
  %374 = vmatpush1.msra.mxu0 0.0
  %375 = vmatprep.subr.mxu0 0.0
  %376 = vmatpush1.msra.mxu0 0.0
  %377 = vmatprep.subr.mxu0 0.0
  %378 = vmatpush1.msra.mxu0 0.0
  %379 = vmatprep.subr.mxu0 0.0
  %380 = vmatpush1.msra.mxu0 0.0
  %381 = vmatprep.subr.mxu0 0.0
  %382 = vmatpush1.msra.mxu0 0.0
  %383 = vmatprep.subr.mxu0 0.0
  %384 = vmatpush1.msra.mxu0 0.0
  %385 = vmatprep.subr.mxu0 0.0
  %386 = vmatpush1.msra.mxu0 0.0
  %387 = vmatprep.subr.mxu0 0.0
  %388 = vmatpush1.msra.mxu0 %v58
  %389 = vmatprep.subr.mxu0 0.0
  %390 = vmatpush1.msra.mxu0 %v57
  %391 = vmatprep.subr.mxu0 0.0
  %392 = vmatpush1.msra.mxu0 %v56
  %393 = vmatprep.subr.mxu0 0.0
  %394 = vmatpush1.msra.mxu0 %v55
  %395 = vmatprep.subr.mxu0 0.0
  %396 = vmatpush2.msra.mxu0 0.0
  %397 = vmatprep.subr.mxu0 0.0
  %398 = vmatpush2.msra.mxu0 0.0
  %399 = vmatprep.subr.mxu0 0.0
  %400 = vmatpush2.msra.mxu0 0.0
  %401 = vmatprep.subr.mxu0 0.0
  %402 = vmatpush2.msra.mxu0 0.0
  %403 = vmatprep.subr.mxu0 0.0
  %404 = vmatpush2.msra.mxu0 0.0
  %405 = vmatprep.subr.mxu0 0.0
  %406 = vmatpush2.msra.mxu0 0.0
  %407 = vmatprep.subr.mxu0 0.0
  %408 = vmatpush2.msra.mxu0 0.0
  %409 = vmatprep.subr.mxu0 0.0
  %410 = vmatpush2.msra.mxu0 0.0
  %411 = vmatprep.subr.mxu0 0.0
  %412 = vmatpush2.msra.mxu0 0.0
  %413 = vmatprep.subr.mxu0 0.0
  %414 = vmatpush2.msra.mxu0 0.0
  %415 = vmatprep.subr.mxu0 0.0
  %416 = vmatpush2.msra.mxu0 0.0
  %417 = vmatprep.subr.mxu0 0.0
  %418 = vmatpush2.msra.mxu0 0.0
  %419 = vmatprep.subr.mxu0 0.0
  %420 = vmatpush2.msra.mxu0 0.0
  %421 = vmatprep.subr.mxu0 0.0
  %422 = vmatpush2.msra.mxu0 0.0
  %423 = vmatprep.subr.mxu0 0.0
  %424 = vmatpush2.msra.mxu0 0.0
  %425 = vmatprep.subr.mxu0 0.0
  %426 = vmatpush2.msra.mxu0 0.0
  %427 = vmatprep.mubr.f32.mxu0 0.0
  %428 = vmatmul.mubr.f32.gmra.mxu0 %v267
  %v429 = vpop.f32.mrf.mxu0
  %v430 = vadd.f32 %v345, %v429
  %v431 = vpop.f32.mrf.mxu0
  %432 = vmatprep.mubr.f32.mxu0 0.0
  %433 = vmatmul.mubr.f32.gmra.mxu0 %v270
  %v434 = vpop.f32.mrf.mxu0
  %v435 = vadd.f32 %v350, %v434
  %v436 = vpop.f32.mrf.mxu0
  %437 = vmatprep.mubr.f32.mxu0 0.0
  %438 = vmatmul.mubr.f32.gmra.mxu0 %v273
  %v439 = vpop.f32.mrf.mxu0
  %v440 = vadd.f32 %v355, %v439
  %v441 = vpop.f32.mrf.mxu0
  %442 = vmatprep.mubr.f32.mxu0 0.0
  %443 = vmatmul.mubr.f32.gmra.mxu0 %v276
  %v444 = vpop.f32.mrf.mxu0
  %v445 = vadd.f32 %v360, %v444
  %v446 = vpop.f32.mrf.mxu0
  %447 = vdwg.mxu0
  %v448 = vmax.f32 %v236, %v430
  %v449 = vmax.f32 %v241, %v435
  %v450 = vmax.f32 %v246, %v440
  %v451 = vmax.f32 %v251, %v445
  %v452 = vld [vmem:[%s2] sm:$0xff]
  %v453 = vld [vmem:[%s2 + $0x8] sm:$0xff]
  %v454 = vld [vmem:[%s2 + $0x10] sm:$0xff]
  %v455 = vld [vmem:[%s2 + $0x18] sm:$0xff]
  %v456 = vld [vmem:[%s2 + $0x20] sm:$0xff]
  %v457 = vld [vmem:[%s2 + $0x28] sm:$0xff]
  %v458 = vld [vmem:[%s2 + $0x30] sm:$0xff]
  %v459 = vld [vmem:[%s2 + $0x38] sm:$0xff]
  %v460 = vld [vmem:[%s2 + $0x40] sm:$0xff]
  %v461 = vld [vmem:[%s2 + $0x48] sm:$0xff]
  %v462 = vld [vmem:[%s2 + $0x50] sm:$0xff]
  %v463 = vld [vmem:[%s2 + $0x58] sm:$0xff]
  %v465 = vsel %vm71, %v454, 0
  %v468 = vsel %vm71, %v457, 0
  %v471 = vsel %vm71, %v460, 0
  %v474 = vsel %vm71, %v463, 0
  %476 = vmatprep.subr.mxu0 0.0
  %477 = vmatpush1.msra.mxu0 %v38
  %478 = vmatprep.subr.mxu0 0.0
  %479 = vmatpush1.msra.mxu0 %v37
  %480 = vmatprep.subr.mxu0 0.0
  %481 = vmatpush1.msra.mxu0 %v36
  %482 = vmatprep.subr.mxu0 0.0
  %483 = vmatpush1.msra.mxu0 %v35
  %484 = vmatprep.subr.mxu0 0.0
  %485 = vmatpush1.msra.mxu0 %v34
  %486 = vmatprep.subr.mxu0 0.0
  %487 = vmatpush1.msra.mxu0 %v33
  %488 = vmatprep.subr.mxu0 0.0
  %489 = vmatpush1.msra.mxu0 %v32
  %490 = vmatprep.subr.mxu0 0.0
  %491 = vmatpush1.msra.mxu0 %v31
  %492 = vmatprep.subr.mxu0 0.0
  %493 = vmatpush1.msra.mxu0 %v30
  %494 = vmatprep.subr.mxu0 0.0
  %495 = vmatpush1.msra.mxu0 %v29
  %496 = vmatprep.subr.mxu0 0.0
  %497 = vmatpush1.msra.mxu0 %v28
  %498 = vmatprep.subr.mxu0 0.0
  %499 = vmatpush1.msra.mxu0 %v27
  %500 = vmatprep.subr.mxu0 0.0
  %501 = vmatpush1.msra.mxu0 %v26
  %502 = vmatprep.subr.mxu0 0.0
  %503 = vmatpush1.msra.mxu0 %v25
  %504 = vmatprep.subr.mxu0 0.0
  %505 = vmatpush1.msra.mxu0 %v24
  %506 = vmatprep.subr.mxu0 0.0
  %507 = vmatpush1.msra.mxu0 %v23
  %508 = vmatprep.subr.mxu0 0.0
  %509 = vmatpush2.msra.mxu0 %v54
  %510 = vmatprep.subr.mxu0 0.0
  %511 = vmatpush2.msra.mxu0 %v53
  %512 = vmatprep.subr.mxu0 0.0
  %513 = vmatpush2.msra.mxu0 %v52
  %514 = vmatprep.subr.mxu0 0.0
  %515 = vmatpush2.msra.mxu0 %v51
  %516 = vmatprep.subr.mxu0 0.0
  %517 = vmatpush2.msra.mxu0 %v50
  %518 = vmatprep.subr.mxu0 0.0
  %519 = vmatpush2.msra.mxu0 %v49
  %520 = vmatprep.subr.mxu0 0.0
  %521 = vmatpush2.msra.mxu0 %v48
  %522 = vmatprep.subr.mxu0 0.0
  %523 = vmatpush2.msra.mxu0 %v47
  %524 = vmatprep.subr.mxu0 0.0
  %525 = vmatpush2.msra.mxu0 %v46
  %526 = vmatprep.subr.mxu0 0.0
  %527 = vmatpush2.msra.mxu0 %v45
  %528 = vmatprep.subr.mxu0 0.0
  %529 = vmatpush2.msra.mxu0 %v44
  %530 = vmatprep.subr.mxu0 0.0
  %531 = vmatpush2.msra.mxu0 %v43
  %532 = vmatprep.subr.mxu0 0.0
  %533 = vmatpush2.msra.mxu0 %v42
  %534 = vmatprep.subr.mxu0 0.0
  %535 = vmatpush2.msra.mxu0 %v41
  %536 = vmatprep.subr.mxu0 0.0
  %537 = vmatpush2.msra.mxu0 %v40
  %538 = vmatprep.subr.mxu0 0.0
  %539 = vmatpush2.msra.mxu0 %v39
  %540 = vmatprep.mubr.f32.mxu0 %v453
  %541 = vmatmul.mubr.f32.gmra.mxu0 %v452
  %v542 = vpop.f32.mrf.mxu0
  %v543 = vadd.f32 0.0, %v542
  %v544 = vpop.f32.mrf.mxu0
  %545 = vmatprep.mubr.f32.mxu0 %v456
  %546 = vmatmul.mubr.f32.gmra.mxu0 %v455
  %v547 = vpop.f32.mrf.mxu0
  %v548 = vadd.f32 0.0, %v547
  %v549 = vpop.f32.mrf.mxu0
  %550 = vmatprep.mubr.f32.mxu0 %v459
  %551 = vmatmul.mubr.f32.gmra.mxu0 %v458
  %v552 = vpop.f32.mrf.mxu0
  %v553 = vadd.f32 0.0, %v552
  %v554 = vpop.f32.mrf.mxu0
  %555 = vmatprep.mubr.f32.mxu0 %v462
  %556 = vmatmul.mubr.f32.gmra.mxu0 %v461
  %v557 = vpop.f32.mrf.mxu0
  %v558 = vadd.f32 0.0, %v557
  %v559 = vpop.f32.mrf.mxu0
  %560 = vdwg.mxu0
  %561 = vmatprep.subr.mxu0 0.0
  %562 = vmatpush1.msra.mxu0 0.0
  %563 = vmatprep.subr.mxu0 0.0
  %564 = vmatpush1.msra.mxu0 0.0
  %565 = vmatprep.subr.mxu0 0.0
  %566 = vmatpush1.msra.mxu0 0.0
  %567 = vmatprep.subr.mxu0 0.0
  %568 = vmatpush1.msra.mxu0 0.0
  %569 = vmatprep.subr.mxu0 0.0
  %570 = vmatpush1.msra.mxu0 0.0
  %571 = vmatprep.subr.mxu0 0.0
  %572 = vmatpush1.msra.mxu0 0.0
  %573 = vmatprep.subr.mxu0 0.0
  %574 = vmatpush1.msra.mxu0 0.0
  %575 = vmatprep.subr.mxu0 0.0
  %576 = vmatpush1.msra.mxu0 0.0
  %577 = vmatprep.subr.mxu0 0.0
  %578 = vmatpush1.msra.mxu0 0.0
  %579 = vmatprep.subr.mxu0 0.0
  %580 = vmatpush1.msra.mxu0 0.0
  %581 = vmatprep.subr.mxu0 0.0
  %582 = vmatpush1.msra.mxu0 0.0
  %583 = vmatprep.subr.mxu0 0.0
  %584 = vmatpush1.msra.mxu0 0.0
  %585 = vmatprep.subr.mxu0 0.0
  %586 = vmatpush1.msra.mxu0 %v58
  %587 = vmatprep.subr.mxu0 0.0
  %588 = vmatpush1.msra.mxu0 %v57
  %589 = vmatprep.subr.mxu0 0.0
  %590 = vmatpush1.msra.mxu0 %v56
  %591 = vmatprep.subr.mxu0 0.0
  %592 = vmatpush1.msra.mxu0 %v55
  %593 = vmatprep.subr.mxu0 0.0
  %594 = vmatpush2.msra.mxu0 0.0
  %595 = vmatprep.subr.mxu0 0.0
  %596 = vmatpush2.msra.mxu0 0.0
  %597 = vmatprep.subr.mxu0 0.0
  %598 = vmatpush2.msra.mxu0 0.0
  %599 = vmatprep.subr.mxu0 0.0
  %600 = vmatpush2.msra.mxu0 0.0
  %601 = vmatprep.subr.mxu0 0.0
  %602 = vmatpush2.msra.mxu0 0.0
  %603 = vmatprep.subr.mxu0 0.0
  %604 = vmatpush2.msra.mxu0 0.0
  %605 = vmatprep.subr.mxu0 0.0
  %606 = vmatpush2.msra.mxu0 0.0
  %607 = vmatprep.subr.mxu0 0.0
  %608 = vmatpush2.msra.mxu0 0.0
  %609 = vmatprep.subr.mxu0 0.0
  %610 = vmatpush2.msra.mxu0 0.0
  %611 = vmatprep.subr.mxu0 0.0
  %612 = vmatpush2.msra.mxu0 0.0
  %613 = vmatprep.subr.mxu0 0.0
  %614 = vmatpush2.msra.mxu0 0.0
  %615 = vmatprep.subr.mxu0 0.0
  %616 = vmatpush2.msra.mxu0 0.0
  %617 = vmatprep.subr.mxu0 0.0
  %618 = vmatpush2.msra.mxu0 0.0
  %619 = vmatprep.subr.mxu0 0.0
  %620 = vmatpush2.msra.mxu0 0.0
  %621 = vmatprep.subr.mxu0 0.0
  %622 = vmatpush2.msra.mxu0 0.0
  %623 = vmatprep.subr.mxu0 0.0
  %624 = vmatpush2.msra.mxu0 0.0
  %625 = vmatprep.mubr.f32.mxu0 0.0
  %626 = vmatmul.mubr.f32.gmra.mxu0 %v465
  %v627 = vpop.f32.mrf.mxu0
  %v628 = vadd.f32 %v543, %v627
  %v629 = vpop.f32.mrf.mxu0
  %630 = vmatprep.mubr.f32.mxu0 0.0
  %631 = vmatmul.mubr.f32.gmra.mxu0 %v468
  %v632 = vpop.f32.mrf.mxu0
  %v633 = vadd.f32 %v548, %v632
  %v634 = vpop.f32.mrf.mxu0
  %635 = vmatprep.mubr.f32.mxu0 0.0
  %636 = vmatmul.mubr.f32.gmra.mxu0 %v471
  %v637 = vpop.f32.mrf.mxu0
  %v638 = vadd.f32 %v553, %v637
  %v639 = vpop.f32.mrf.mxu0
  %640 = vmatprep.mubr.f32.mxu0 0.0
  %641 = vmatmul.mubr.f32.gmra.mxu0 %v474
  %v642 = vpop.f32.mrf.mxu0
  %v643 = vadd.f32 %v558, %v642
  %v644 = vpop.f32.mrf.mxu0
  %645 = vdwg.mxu0
  %v646 = vmax.f32 %v448, %v628
  %v647 = vmax.f32 %v449, %v633
  %v648 = vmax.f32 %v450, %v638
  %v649 = vmax.f32 %v451, %v643
  %v650 = vld [vmem:[%s3] sm:$0xff]
  %v651 = vld [vmem:[%s3 + $0x8] sm:$0xff]
  %v652 = vld [vmem:[%s3 + $0x10] sm:$0xff]
  %v653 = vld [vmem:[%s3 + $0x18] sm:$0xff]
  %v654 = vld [vmem:[%s3 + $0x20] sm:$0xff]
  %v655 = vld [vmem:[%s3 + $0x28] sm:$0xff]
  %v656 = vld [vmem:[%s3 + $0x30] sm:$0xff]
  %v657 = vld [vmem:[%s3 + $0x38] sm:$0xff]
  %v658 = vld [vmem:[%s3 + $0x40] sm:$0xff]
  %v659 = vld [vmem:[%s3 + $0x48] sm:$0xff]
  %v660 = vld [vmem:[%s3 + $0x50] sm:$0xff]
  %v661 = vld [vmem:[%s3 + $0x58] sm:$0xff]
  %v663 = vsel %vm71, %v652, 0
  %v666 = vsel %vm71, %v655, 0
  %v669 = vsel %vm71, %v658, 0
  %v672 = vsel %vm71, %v661, 0
  %674 = vmatprep.subr.mxu0 0.0
  %675 = vmatpush1.msra.mxu0 %v38
  %676 = vmatprep.subr.mxu0 0.0
  %677 = vmatpush1.msra.mxu0 %v37
  %678 = vmatprep.subr.mxu0 0.0
  %679 = vmatpush1.msra.mxu0 %v36
  %680 = vmatprep.subr.mxu0 0.0
  %681 = vmatpush1.msra.mxu0 %v35
  %682 = vmatprep.subr.mxu0 0.0
  %683 = vmatpush1.msra.mxu0 %v34
  %684 = vmatprep.subr.mxu0 0.0
  %685 = vmatpush1.msra.mxu0 %v33
  %686 = vmatprep.subr.mxu0 0.0
  %687 = vmatpush1.msra.mxu0 %v32
  %688 = vmatprep.subr.mxu0 0.0
  %689 = vmatpush1.msra.mxu0 %v31
  %690 = vmatprep.subr.mxu0 0.0
  %691 = vmatpush1.msra.mxu0 %v30
  %692 = vmatprep.subr.mxu0 0.0
  %693 = vmatpush1.msra.mxu0 %v29
  %694 = vmatprep.subr.mxu0 0.0
  %695 = vmatpush1.msra.mxu0 %v28
  %696 = vmatprep.subr.mxu0 0.0
  %697 = vmatpush1.msra.mxu0 %v27
  %698 = vmatprep.subr.mxu0 0.0
  %699 = vmatpush1.msra.mxu0 %v26
  %700 = vmatprep.subr.mxu0 0.0
  %701 = vmatpush1.msra.mxu0 %v25
  %702 = vmatprep.subr.mxu0 0.0
  %703 = vmatpush1.msra.mxu0 %v24
  %704 = vmatprep.subr.mxu0 0.0
  %705 = vmatpush1.msra.mxu0 %v23
  %706 = vmatprep.subr.mxu0 0.0
  %707 = vmatpush2.msra.mxu0 %v54
  %708 = vmatprep.subr.mxu0 0.0
  %709 = vmatpush2.msra.mxu0 %v53
  %710 = vmatprep.subr.mxu0 0.0
  %711 = vmatpush2.msra.mxu0 %v52
  %712 = vmatprep.subr.mxu0 0.0
  %713 = vmatpush2.msra.mxu0 %v51
  %714 = vmatprep.subr.mxu0 0.0
  %715 = vmatpush2.msra.mxu0 %v50
  %716 = vmatprep.subr.mxu0 0.0
  %717 = vmatpush2.msra.mxu0 %v49
  %718 = vmatprep.subr.mxu0 0.0
  %719 = vmatpush2.msra.mxu0 %v48
  %720 = vmatprep.subr.mxu0 0.0
  %721 = vmatpush2.msra.mxu0 %v47
  %722 = vmatprep.subr.mxu0 0.0
  %723 = vmatpush2.msra.mxu0 %v46
  %724 = vmatprep.subr.mxu0 0.0
  %725 = vmatpush2.msra.mxu0 %v45
  %726 = vmatprep.subr.mxu0 0.0
  %727 = vmatpush2.msra.mxu0 %v44
  %728 = vmatprep.subr.mxu0 0.0
  %729 = vmatpush2.msra.mxu0 %v43
  %730 = vmatprep.subr.mxu0 0.0
  %731 = vmatpush2.msra.mxu0 %v42
  %732 = vmatprep.subr.mxu0 0.0
  %733 = vmatpush2.msra.mxu0 %v41
  %734 = vmatprep.subr.mxu0 0.0
  %735 = vmatpush2.msra.mxu0 %v40
  %736 = vmatprep.subr.mxu0 0.0
  %737 = vmatpush2.msra.mxu0 %v39
  %738 = vmatprep.mubr.f32.mxu0 %v651
  %739 = vmatmul.mubr.f32.gmra.mxu0 %v650
  %v740 = vpop.f32.mrf.mxu0
  %v741 = vadd.f32 0.0, %v740
  %v742 = vpop.f32.mrf.mxu0
  %743 = vmatprep.mubr.f32.mxu0 %v654
  %744 = vmatmul.mubr.f32.gmra.mxu0 %v653
  %v745 = vpop.f32.mrf.mxu0
  %v746 = vadd.f32 0.0, %v745
  %v747 = vpop.f32.mrf.mxu0
  %748 = vmatprep.mubr.f32.mxu0 %v657
  %749 = vmatmul.mubr.f32.gmra.mxu0 %v656
  %v750 = vpop.f32.mrf.mxu0
  %v751 = vadd.f32 0.0, %v750
  %v752 = vpop.f32.mrf.mxu0
  %753 = vmatprep.mubr.f32.mxu0 %v660
  %754 = vmatmul.mubr.f32.gmra.mxu0 %v659
  %v755 = vpop.f32.mrf.mxu0
  %v756 = vadd.f32 0.0, %v755
  %v757 = vpop.f32.mrf.mxu0
  %758 = vdwg.mxu0
  %759 = vmatprep.subr.mxu0 0.0
  %760 = vmatpush1.msra.mxu0 0.0
  %761 = vmatprep.subr.mxu0 0.0
  %762 = vmatpush1.msra.mxu0 0.0
  %763 = vmatprep.subr.mxu0 0.0
  %764 = vmatpush1.msra.mxu0 0.0
  %765 = vmatprep.subr.mxu0 0.0
  %766 = vmatpush1.msra.mxu0 0.0
  %767 = vmatprep.subr.mxu0 0.0
  %768 = vmatpush1.msra.mxu0 0.0
  %769 = vmatprep.subr.mxu0 0.0
  %770 = vmatpush1.msra.mxu0 0.0
  %771 = vmatprep.subr.mxu0 0.0
  %772 = vmatpush1.msra.mxu0 0.0
  %773 = vmatprep.subr.mxu0 0.0
  %774 = vmatpush1.msra.mxu0 0.0
  %775 = vmatprep.subr.mxu0 0.0
  %776 = vmatpush1.msra.mxu0 0.0
  %777 = vmatprep.subr.mxu0 0.0
  %778 = vmatpush1.msra.mxu0 0.0
  %779 = vmatprep.subr.mxu0 0.0
  %780 = vmatpush1.msra.mxu0 0.0
  %781 = vmatprep.subr.mxu0 0.0
  %782 = vmatpush1.msra.mxu0 0.0
  %783 = vmatprep.subr.mxu0 0.0
  %784 = vmatpush1.msra.mxu0 %v58
  %785 = vmatprep.subr.mxu0 0.0
  %786 = vmatpush1.msra.mxu0 %v57
  %787 = vmatprep.subr.mxu0 0.0
  %788 = vmatpush1.msra.mxu0 %v56
  %789 = vmatprep.subr.mxu0 0.0
  %790 = vmatpush1.msra.mxu0 %v55
  %791 = vmatprep.subr.mxu0 0.0
  %792 = vmatpush2.msra.mxu0 0.0
  %793 = vmatprep.subr.mxu0 0.0
  %794 = vmatpush2.msra.mxu0 0.0
  %795 = vmatprep.subr.mxu0 0.0
  %796 = vmatpush2.msra.mxu0 0.0
  %797 = vmatprep.subr.mxu0 0.0
  %798 = vmatpush2.msra.mxu0 0.0
  %799 = vmatprep.subr.mxu0 0.0
  %800 = vmatpush2.msra.mxu0 0.0
  %801 = vmatprep.subr.mxu0 0.0
  %802 = vmatpush2.msra.mxu0 0.0
  %803 = vmatprep.subr.mxu0 0.0
  %804 = vmatpush2.msra.mxu0 0.0
  %805 = vmatprep.subr.mxu0 0.0
  %806 = vmatpush2.msra.mxu0 0.0
  %807 = vmatprep.subr.mxu0 0.0
  %808 = vmatpush2.msra.mxu0 0.0
  %809 = vmatprep.subr.mxu0 0.0
  %810 = vmatpush2.msra.mxu0 0.0
  %811 = vmatprep.subr.mxu0 0.0
  %812 = vmatpush2.msra.mxu0 0.0
  %813 = vmatprep.subr.mxu0 0.0
  %814 = vmatpush2.msra.mxu0 0.0
  %815 = vmatprep.subr.mxu0 0.0
  %816 = vmatpush2.msra.mxu0 0.0
  %817 = vmatprep.subr.mxu0 0.0
  %818 = vmatpush2.msra.mxu0 0.0
  %819 = vmatprep.subr.mxu0 0.0
  %820 = vmatpush2.msra.mxu0 0.0
  %821 = vmatprep.subr.mxu0 0.0
  %822 = vmatpush2.msra.mxu0 0.0
  %823 = vmatprep.mubr.f32.mxu0 0.0
  %824 = vmatmul.mubr.f32.gmra.mxu0 %v663
  %v825 = vpop.f32.mrf.mxu0
  %v826 = vadd.f32 %v741, %v825
  %v827 = vpop.f32.mrf.mxu0
  %828 = vmatprep.mubr.f32.mxu0 0.0
  %829 = vmatmul.mubr.f32.gmra.mxu0 %v666
  %v830 = vpop.f32.mrf.mxu0
  %v831 = vadd.f32 %v746, %v830
  %v832 = vpop.f32.mrf.mxu0
  %833 = vmatprep.mubr.f32.mxu0 0.0
  %834 = vmatmul.mubr.f32.gmra.mxu0 %v669
  %v835 = vpop.f32.mrf.mxu0
  %v836 = vadd.f32 %v751, %v835
  %v837 = vpop.f32.mrf.mxu0
  %838 = vmatprep.mubr.f32.mxu0 0.0
  %839 = vmatmul.mubr.f32.gmra.mxu0 %v672
  %v840 = vpop.f32.mrf.mxu0
  %v841 = vadd.f32 %v756, %v840
  %v842 = vpop.f32.mrf.mxu0
  %843 = vdwg.mxu0
  %v844 = vmax.f32 %v646, %v826
  %v845 = vmax.f32 %v647, %v831
  %v846 = vmax.f32 %v648, %v836
  %v847 = vmax.f32 %v649, %v841
  %v848 = vld [vmem:[%s5] sm:$0x1]
  %v850 = vlaneseq
  %v851 = vshrl.u32 %v850, 7
  %v852 = vsub.s32 0, %v851
  %v853 = vrot.slane %v848, %v852
  %v855 = vadd.f32 %v844, %v853
  %v856 = vadd.f32 %v845, %v853
  %v857 = vadd.f32 %v846, %v853
  %v858 = vadd.f32 %v847, %v853
  %v859 = vmax.f32 %v855, 0.0
  %v860 = vmax.f32 %v856, 0.0
  %v861 = vmax.f32 %v857, 0.0
  %v862 = vmax.f32 %v858, 0.0
  %863 = vst.msk [vmem:[%s6] sm:$0xff] %vm71, %v859
  %864 = vst.msk [vmem:[%s6 + $0x8] sm:$0xff] %vm71, %v860
  %865 = vst.msk [vmem:[%s6 + $0x10] sm:$0xff] %vm71, %v861
  %866 = vst.msk [vmem:[%s6 + $0x18] sm:$0xff] %vm71, %v862
  // Predicated region
  $region26: #{_feature_forward_impl.5} parent=0 // pred_check
    _
  $region27: #{_feature_forward_impl.5} parent=0 // pred_check_branch
    %868 = sbr.rel (0) target = $region29
  $region28: #{_feature_forward_impl.5} parent=0 // pred_region
    _
  $region29: #{_feature_forward_impl.5} parent=0 // pred_fallthru
    _
  // Predicated region
  $region30: #{_feature_forward_impl.5} parent=0 // pred_check
    _
  $region31: #{_feature_forward_impl.5} parent=0 // pred_check_branch
    %870 = sbr.rel (0) target = $region33
  $region32: #{_feature_forward_impl.5} parent=0 // pred_region
    _
  $region33: #{_feature_forward_impl.5} parent=0 // pred_fallthru
    _

// kernel: squeeze.24
$region0: #{squeeze.24}
  %s0 = inlined_call_operand.vmem [shape: f32[2,2,2,288], index: 0, kind: input, shape index: {}]
  %s1 = inlined_call_operand.vmem [shape: f32[8,288], index: 1, kind: output, shape index: {}]
  $region1: #{squeeze.24} parent=0
    #allocation0 [shape = 'u8[49152]{0}', space=vmem, size = 0xc000, scoped, tag = 'scoped mem for input reshape']
    %s3 = sshll.u32 1, 2
    %s4 = ssub.s32 %s3, 1
    %s5 = smul.addr 2, 11
    %s6 = scalar_lea.vmem %s0, %s5
    %v7 = vld [vmem:[%s6] sm:%s4]
    %s8 = scalar_lea.vmem [#allocation0], 88
    %9 = vst [vmem:[%s8] sm:%s4] %v7
    %s10 = smul.addr 2, 10
    %s11 = scalar_lea.vmem %s0, %s10
    %v12 = vld [vmem:[%s11] sm:%s4]
    %s13 = scalar_lea.vmem [#allocation0], 80
    %14 = vst [vmem:[%s13] sm:%s4] %v12
    %s15 = smul.addr 2, 9
    %s16 = scalar_lea.vmem %s0, %s15
    %v17 = vld [vmem:[%s16] sm:%s4]
    %s18 = scalar_lea.vmem [#allocation0], 72
    %19 = vst [vmem:[%s18] sm:%s4] %v17
    %s20 = smul.addr 2, 8
    %s21 = scalar_lea.vmem %s0, %s20
    %v22 = vld [vmem:[%s21] sm:%s4]
    %s23 = scalar_lea.vmem [#allocation0], 64
    %24 = vst [vmem:[%s23] sm:%s4] %v22
    %s25 = smul.addr 2, 7
    %s26 = scalar_lea.vmem %s0, %s25
    %v27 = vld [vmem:[%s26] sm:%s4]
    %s28 = scalar_lea.vmem [#allocation0], 56
    %29 = vst [vmem:[%s28] sm:%s4] %v27
    %s30 = smul.addr 2, 6
    %s31 = scalar_lea.vmem %s0, %s30
    %v32 = vld [vmem:[%s31] sm:%s4]
    %s33 = scalar_lea.vmem [#allocation0], 48
    %34 = vst [vmem:[%s33] sm:%s4] %v32
    %s35 = smul.addr 2, 5
    %s36 = scalar_lea.vmem %s0, %s35
    %v37 = vld [vmem:[%s36] sm:%s4]
    %s38 = scalar_lea.vmem [#allocation0], 40
    %39 = vst [vmem:[%s38] sm:%s4] %v37
    %s40 = smul.addr 2, 4
    %s41 = scalar_lea.vmem %s0, %s40
    %v42 = vld [vmem:[%s41] sm:%s4]
    %s43 = scalar_lea.vmem [#allocation0], 32
    %44 = vst [vmem:[%s43] sm:%s4] %v42
    %s45 = smul.addr 2, 3
    %s46 = scalar_lea.vmem %s0, %s45
    %v47 = vld [vmem:[%s46] sm:%s4]
    %s48 = scalar_lea.vmem [#allocation0], 24
    %49 = vst [vmem:[%s48] sm:%s4] %v47
    %s50 = smul.addr 2, 2
    %s51 = scalar_lea.vmem %s0, %s50
    %v52 = vld [vmem:[%s51] sm:%s4]
    %s53 = scalar_lea.vmem [#allocation0], 16
    %54 = vst [vmem:[%s53] sm:%s4] %v52
    %s55 = scalar_lea.vmem %s0, 2
    %v56 = vld [vmem:[%s55] sm:%s4]
    %s57 = scalar_lea.vmem [#allocation0], 8
    %58 = vst [vmem:[%s57] sm:%s4] %v56
    %v59 = vld [vmem:[%s0] sm:%s4]
    %60 = vst [vmem:[#allocation0] sm:%s4] %v59
    %s61 = scalar_lea.vmem [#allocation0], 16
    %v62 = vld [vmem:[%s61] sm:$0x3]
    %vm63 = vcmask 261120
    %s64 = scalar_lea.vmem %s1, 16
    %65 = vst.msk [vmem:[%s64] sm:$0x3] %vm63, %v62
    %s66 = scalar_lea.vmem [#allocation0], 40
    %v67 = vld [vmem:[%s66] sm:$0x3]
    %vm68 = vcmask 261120
    %s69 = scalar_lea.vmem %s1, 18
    %70 = vst.msk [vmem:[%s69] sm:$0x3] %vm68, %v67
    %s71 = scalar_lea.vmem [#allocation0], 64
    %v72 = vld [vmem:[%s71] sm:$0x3]
    %vm73 = vcmask 261120
    %s74 = scalar_lea.vmem %s1, 20
    %75 = vst.msk [vmem:[%s74] sm:$0x3] %vm73, %v72
    %s76 = scalar_lea.vmem [#allocation0], 88
    %v77 = vld [vmem:[%s76] sm:$0x3]
    %vm78 = vcmask 261120
    %s79 = scalar_lea.vmem %s1, 22
    %80 = vst.msk [vmem:[%s79] sm:$0x3] %vm78, %v77
    %v81 = vld [vmem:[#allocation0] sm:$0x3]
    %82 = vst [vmem:[%s1] sm:$0x3] %v81
    %s83 = scalar_lea.vmem [#allocation0], 8
    %v84 = vld [vmem:[%s83] sm:$0x3]
    %s85 = scalar_lea.vmem %s1, 8
    %86 = vst [vmem:[%s85] sm:$0x3] %v84
    %s87 = scalar_lea.vmem [#allocation0], 24
    %v88 = vld [vmem:[%s87] sm:$0x3]
    %s89 = scalar_lea.vmem %s1, 2
    %90 = vst [vmem:[%s89] sm:$0x3] %v88
    %s91 = scalar_lea.vmem [#allocation0], 32
    %v92 = vld [vmem:[%s91] sm:$0x3]
    %s93 = scalar_lea.vmem %s1, 10
    %94 = vst [vmem:[%s93] sm:$0x3] %v92
    %s95 = scalar_lea.vmem [#allocation0], 48
    %v96 = vld [vmem:[%s95] sm:$0x3]
    %s97 = scalar_lea.vmem %s1, 4
    %98 = vst [vmem:[%s97] sm:$0x3] %v96
    %s99 = scalar_lea.vmem [#allocation0], 56
    %v100 = vld [vmem:[%s99] sm:$0x3]
    %s101 = scalar_lea.vmem %s1, 12
    %102 = vst [vmem:[%s101] sm:$0x3] %v100
    %s103 = scalar_lea.vmem [#allocation0], 72
    %v104 = vld [vmem:[%s103] sm:$0x3]
    %s105 = scalar_lea.vmem %s1, 6
    %106 = vst [vmem:[%s105] sm:$0x3] %v104
    %s107 = scalar_lea.vmem [#allocation0], 80
    %v108 = vld [vmem:[%s107] sm:$0x3]
    %s109 = scalar_lea.vmem %s1, 14
    %110 = vst [vmem:[%s109] sm:$0x3] %v108

// kernel: _feature_forward_impl.6
$region0: #{_feature_forward_impl.6}
  #allocation0 [shape = 'u32[]', space=smem, size = 0x4, offset = 0x4, fixed_abs, tag = 'smem constant byte address 0x4 - core index']
  #allocation1 [shape = 'u32[144,128]{1,0:T(1,128)}', space=vmem, size = 0x12000, scoped, tag = 'internal scratch']
  %s0 = inlined_call_operand.vmem [shape: f32[8,288], index: 0, kind: input, shape index: {}]
  %s1 = inlined_call_operand.vmem [shape: f32[8,288], index: 1, kind: input, shape index: {}]
  %s2 = inlined_call_operand.vmem [shape: f32[8,288], index: 2, kind: input, shape index: {}]
  %s3 = inlined_call_operand.vmem [shape: f32[8,288], index: 3, kind: input, shape index: {}]
  %s4 = inlined_call_operand.vmem [shape: f32[288,32], index: 4, kind: input, shape index: {}]
  %s5 = inlined_call_operand.vmem [shape: f32[1,32], index: 5, kind: input, shape index: {}]
  %s6 = inlined_call_operand.vmem [shape: f32[8,32], index: 6, kind: output, shape index: {}]
  %s7 = sld [smem:[#allocation0]]
  $region34: #{_feature_forward_impl.6} parent=0
    _
  %s9 = ssub.s32 1, %s7
  %s10 = scalar_select 0, %s9, %s7
  // Predicated region
  $region2: #{_feature_forward_impl.6} parent=0 // pred_check
    _
  $region3: #{_feature_forward_impl.6} parent=0 // pred_check_branch
    %12 = sbr.rel (0) target = $region5
  $region4: #{_feature_forward_impl.6} parent=0 // pred_region
    _
  $region5: #{_feature_forward_impl.6} parent=0 // pred_fallthru
    _
  // Predicated region
  $region6: #{_feature_forward_impl.6} parent=0 // pred_check
    _
  $region7: #{_feature_forward_impl.6} parent=0 // pred_check_branch
    %14 = sbr.rel (0) target = $region9
  $region8: #{_feature_forward_impl.6} parent=0 // pred_region
    _
  $region9: #{_feature_forward_impl.6} parent=0 // pred_fallthru
    _
  // Predicated region
  $region10: #{_feature_forward_impl.6} parent=0 // pred_check
    _
  $region11: #{_feature_forward_impl.6} parent=0 // pred_check_branch
    %16 = sbr.rel (0) target = $region13
  $region12: #{_feature_forward_impl.6} parent=0 // pred_region
    _
  $region13: #{_feature_forward_impl.6} parent=0 // pred_fallthru
    _
  // Predicated region
  $region14: #{_feature_forward_impl.6} parent=0 // pred_check
    _
  $region15: #{_feature_forward_impl.6} parent=0 // pred_check_branch
    %18 = sbr.rel (0) target = $region17
  $region16: #{_feature_forward_impl.6} parent=0 // pred_region
    _
  $region17: #{_feature_forward_impl.6} parent=0 // pred_fallthru
    _
  // Predicated region
  $region18: #{_feature_forward_impl.6} parent=0 // pred_check
    _
  $region19: #{_feature_forward_impl.6} parent=0 // pred_check_branch
    %20 = sbr.rel (0) target = $region21
  $region20: #{_feature_forward_impl.6} parent=0 // pred_region
    _
  $region21: #{_feature_forward_impl.6} parent=0 // pred_fallthru
    _
  // Predicated region
  $region22: #{_feature_forward_impl.6} parent=0 // pred_check
    _
  $region23: #{_feature_forward_impl.6} parent=0 // pred_check_branch
    %22 = sbr.rel (0) target = $region25
  $region24: #{_feature_forward_impl.6} parent=0 // pred_region
    _
  $region25: #{_feature_forward_impl.6} parent=0 // pred_fallthru
    _
  %v23 = vld [vmem:[%s4] sm:$0xff]
  %v24 = vld [vmem:[%s4 + $0x8] sm:$0xff]
  %v25 = vld [vmem:[%s4 + $0x10] sm:$0xff]
  %v26 = vld [vmem:[%s4 + $0x18] sm:$0xff]
  %v27 = vld [vmem:[%s4 + $0x20] sm:$0xff]
  %v28 = vld [vmem:[%s4 + $0x28] sm:$0xff]
  %v29 = vld [vmem:[%s4 + $0x30] sm:$0xff]
  %v30 = vld [vmem:[%s4 + $0x38] sm:$0xff]
  %v31 = vld [vmem:[%s4 + $0x40] sm:$0xff]
  %v32 = vld [vmem:[%s4 + $0x48] sm:$0xff]
  %v33 = vld [vmem:[%s4 + $0x50] sm:$0xff]
  %v34 = vld [vmem:[%s4 + $0x58] sm:$0xff]
  %v35 = vld [vmem:[%s4 + $0x60] sm:$0xff]
  %v36 = vld [vmem:[%s4 + $0x68] sm:$0xff]
  %v37 = vld [vmem:[%s4 + $0x70] sm:$0xff]
  %v38 = vld [vmem:[%s4 + $0x78] sm:$0xff]
  %v39 = vld [vmem:[%s4 + $0x80] sm:$0xff]
  %v40 = vld [vmem:[%s4 + $0x88] sm:$0xff]
  %v41 = vld [vmem:[%s4 + $0x90] sm:$0xff]
  %v42 = vld [vmem:[%s4 + $0x98] sm:$0xff]
  %v43 = vld [vmem:[%s4 + $0xa0] sm:$0xff]
  %v44 = vld [vmem:[%s4 + $0xa8] sm:$0xff]
  %v45 = vld [vmem:[%s4 + $0xb0] sm:$0xff]
  %v46 = vld [vmem:[%s4 + $0xb8] sm:$0xff]
  %v47 = vld [vmem:[%s4 + $0xc0] sm:$0xff]
  %v48 = vld [vmem:[%s4 + $0xc8] sm:$0xff]
  %v49 = vld [vmem:[%s4 + $0xd0] sm:$0xff]
  %v50 = vld [vmem:[%s4 + $0xd8] sm:$0xff]
  %v51 = vld [vmem:[%s4 + $0xe0] sm:$0xff]
  %v52 = vld [vmem:[%s4 + $0xe8] sm:$0xff]
  %v53 = vld [vmem:[%s4 + $0xf0] sm:$0xff]
  %v54 = vld [vmem:[%s4 + $0xf8] sm:$0xff]
  %v55 = vld [vmem:[%s4 + $0x100] sm:$0xff]
  %v56 = vld [vmem:[%s4 + $0x108] sm:$0xff]
  %v57 = vld [vmem:[%s4 + $0x110] sm:$0xff]
  %v58 = vld [vmem:[%s4 + $0x118] sm:$0xff]
  %v59 = vld [vmem:[%s0] sm:$0xff]
  %v60 = vld [vmem:[%s0 + $0x8] sm:$0xff]
  %v61 = vld [vmem:[%s0 + $0x10] sm:$0xff]
  %vm62 = vcmask 261120
  %v64 = vsel %vm62, %v61, 0
  %66 = vmatprep.subr.mxu0 0.0
  %67 = vmatpush1.msra.mxu0 %v38
  %68 = vmatprep.subr.mxu0 0.0
  %69 = vmatpush1.msra.mxu0 %v37
  %70 = vmatprep.subr.mxu0 0.0
  %71 = vmatpush1.msra.mxu0 %v36
  %72 = vmatprep.subr.mxu0 0.0
  %73 = vmatpush1.msra.mxu0 %v35
  %74 = vmatprep.subr.mxu0 0.0
  %75 = vmatpush1.msra.mxu0 %v34
  %76 = vmatprep.subr.mxu0 0.0
  %77 = vmatpush1.msra.mxu0 %v33
  %78 = vmatprep.subr.mxu0 0.0
  %79 = vmatpush1.msra.mxu0 %v32
  %80 = vmatprep.subr.mxu0 0.0
  %81 = vmatpush1.msra.mxu0 %v31
  %82 = vmatprep.subr.mxu0 0.0
  %83 = vmatpush1.msra.mxu0 %v30
  %84 = vmatprep.subr.mxu0 0.0
  %85 = vmatpush1.msra.mxu0 %v29
  %86 = vmatprep.subr.mxu0 0.0
  %87 = vmatpush1.msra.mxu0 %v28
  %88 = vmatprep.subr.mxu0 0.0
  %89 = vmatpush1.msra.mxu0 %v27
  %90 = vmatprep.subr.mxu0 0.0
  %91 = vmatpush1.msra.mxu0 %v26
  %92 = vmatprep.subr.mxu0 0.0
  %93 = vmatpush1.msra.mxu0 %v25
  %94 = vmatprep.subr.mxu0 0.0
  %95 = vmatpush1.msra.mxu0 %v24
  %96 = vmatprep.subr.mxu0 0.0
  %97 = vmatpush1.msra.mxu0 %v23
  %98 = vmatprep.subr.mxu0 0.0
  %99 = vmatpush2.msra.mxu0 %v54
  %100 = vmatprep.subr.mxu0 0.0
  %101 = vmatpush2.msra.mxu0 %v53
  %102 = vmatprep.subr.mxu0 0.0
  %103 = vmatpush2.msra.mxu0 %v52
  %104 = vmatprep.subr.mxu0 0.0
  %105 = vmatpush2.msra.mxu0 %v51
  %106 = vmatprep.subr.mxu0 0.0
  %107 = vmatpush2.msra.mxu0 %v50
  %108 = vmatprep.subr.mxu0 0.0
  %109 = vmatpush2.msra.mxu0 %v49
  %110 = vmatprep.subr.mxu0 0.0
  %111 = vmatpush2.msra.mxu0 %v48
  %112 = vmatprep.subr.mxu0 0.0
  %113 = vmatpush2.msra.mxu0 %v47
  %114 = vmatprep.subr.mxu0 0.0
  %115 = vmatpush2.msra.mxu0 %v46
  %116 = vmatprep.subr.mxu0 0.0
  %117 = vmatpush2.msra.mxu0 %v45
  %118 = vmatprep.subr.mxu0 0.0
  %119 = vmatpush2.msra.mxu0 %v44
  %120 = vmatprep.subr.mxu0 0.0
  %121 = vmatpush2.msra.mxu0 %v43
  %122 = vmatprep.subr.mxu0 0.0
  %123 = vmatpush2.msra.mxu0 %v42
  %124 = vmatprep.subr.mxu0 0.0
  %125 = vmatpush2.msra.mxu0 %v41
  %126 = vmatprep.subr.mxu0 0.0
  %127 = vmatpush2.msra.mxu0 %v40
  %128 = vmatprep.subr.mxu0 0.0
  %129 = vmatpush2.msra.mxu0 %v39
  %130 = vmatprep.mubr.f32.mxu0 %v60
  %131 = vmatmul.mubr.f32.gmra.mxu0 %v59
  %v132 = vpop.f32.mrf.mxu0
  %v133 = vadd.f32 0.0, %v132
  %v134 = vpop.f32.mrf.mxu0
  %135 = vdwg.mxu0
  %136 = vmatprep.subr.mxu0 0.0
  %137 = vmatpush1.msra.mxu0 0.0
  %138 = vmatprep.subr.mxu0 0.0
  %139 = vmatpush1.msra.mxu0 0.0
  %140 = vmatprep.subr.mxu0 0.0
  %141 = vmatpush1.msra.mxu0 0.0
  %142 = vmatprep.subr.mxu0 0.0
  %143 = vmatpush1.msra.mxu0 0.0
  %144 = vmatprep.subr.mxu0 0.0
  %145 = vmatpush1.msra.mxu0 0.0
  %146 = vmatprep.subr.mxu0 0.0
  %147 = vmatpush1.msra.mxu0 0.0
  %148 = vmatprep.subr.mxu0 0.0
  %149 = vmatpush1.msra.mxu0 0.0
  %150 = vmatprep.subr.mxu0 0.0
  %151 = vmatpush1.msra.mxu0 0.0
  %152 = vmatprep.subr.mxu0 0.0
  %153 = vmatpush1.msra.mxu0 0.0
  %154 = vmatprep.subr.mxu0 0.0
  %155 = vmatpush1.msra.mxu0 0.0
  %156 = vmatprep.subr.mxu0 0.0
  %157 = vmatpush1.msra.mxu0 0.0
  %158 = vmatprep.subr.mxu0 0.0
  %159 = vmatpush1.msra.mxu0 0.0
  %160 = vmatprep.subr.mxu0 0.0
  %161 = vmatpush1.msra.mxu0 %v58
  %162 = vmatprep.subr.mxu0 0.0
  %163 = vmatpush1.msra.mxu0 %v57
  %164 = vmatprep.subr.mxu0 0.0
  %165 = vmatpush1.msra.mxu0 %v56
  %166 = vmatprep.subr.mxu0 0.0
  %167 = vmatpush1.msra.mxu0 %v55
  %168 = vmatprep.subr.mxu0 0.0
  %169 = vmatpush2.msra.mxu0 0.0
  %170 = vmatprep.subr.mxu0 0.0
  %171 = vmatpush2.msra.mxu0 0.0
  %172 = vmatprep.subr.mxu0 0.0
  %173 = vmatpush2.msra.mxu0 0.0
  %174 = vmatprep.subr.mxu0 0.0
  %175 = vmatpush2.msra.mxu0 0.0
  %176 = vmatprep.subr.mxu0 0.0
  %177 = vmatpush2.msra.mxu0 0.0
  %178 = vmatprep.subr.mxu0 0.0
  %179 = vmatpush2.msra.mxu0 0.0
  %180 = vmatprep.subr.mxu0 0.0
  %181 = vmatpush2.msra.mxu0 0.0
  %182 = vmatprep.subr.mxu0 0.0
  %183 = vmatpush2.msra.mxu0 0.0
  %184 = vmatprep.subr.mxu0 0.0
  %185 = vmatpush2.msra.mxu0 0.0
  %186 = vmatprep.subr.mxu0 0.0
  %187 = vmatpush2.msra.mxu0 0.0
  %188 = vmatprep.subr.mxu0 0.0
  %189 = vmatpush2.msra.mxu0 0.0
  %190 = vmatprep.subr.mxu0 0.0
  %191 = vmatpush2.msra.mxu0 0.0
  %192 = vmatprep.subr.mxu0 0.0
  %193 = vmatpush2.msra.mxu0 0.0
  %194 = vmatprep.subr.mxu0 0.0
  %195 = vmatpush2.msra.mxu0 0.0
  %196 = vmatprep.subr.mxu0 0.0
  %197 = vmatpush2.msra.mxu0 0.0
  %198 = vmatprep.subr.mxu0 0.0
  %199 = vmatpush2.msra.mxu0 0.0
  %200 = vmatprep.mubr.f32.mxu0 0.0
  %201 = vmatmul.mubr.f32.gmra.mxu0 %v64
  %v202 = vpop.f32.mrf.mxu0
  %v203 = vadd.f32 %v133, %v202
  %v204 = vpop.f32.mrf.mxu0
  %205 = vdwg.mxu0
  %v206 = vld [vmem:[%s1] sm:$0xff]
  %v207 = vld [vmem:[%s1 + $0x8] sm:$0xff]
  %v208 = vld [vmem:[%s1 + $0x10] sm:$0xff]
  %v210 = vsel %vm62, %v208, 0
  %212 = vmatprep.subr.mxu0 0.0
  %213 = vmatpush1.msra.mxu0 %v38
  %214 = vmatprep.subr.mxu0 0.0
  %215 = vmatpush1.msra.mxu0 %v37
  %216 = vmatprep.subr.mxu0 0.0
  %217 = vmatpush1.msra.mxu0 %v36
  %218 = vmatprep.subr.mxu0 0.0
  %219 = vmatpush1.msra.mxu0 %v35
  %220 = vmatprep.subr.mxu0 0.0
  %221 = vmatpush1.msra.mxu0 %v34
  %222 = vmatprep.subr.mxu0 0.0
  %223 = vmatpush1.msra.mxu0 %v33
  %224 = vmatprep.subr.mxu0 0.0
  %225 = vmatpush1.msra.mxu0 %v32
  %226 = vmatprep.subr.mxu0 0.0
  %227 = vmatpush1.msra.mxu0 %v31
  %228 = vmatprep.subr.mxu0 0.0
  %229 = vmatpush1.msra.mxu0 %v30
  %230 = vmatprep.subr.mxu0 0.0
  %231 = vmatpush1.msra.mxu0 %v29
  %232 = vmatprep.subr.mxu0 0.0
  %233 = vmatpush1.msra.mxu0 %v28
  %234 = vmatprep.subr.mxu0 0.0
  %235 = vmatpush1.msra.mxu0 %v27
  %236 = vmatprep.subr.mxu0 0.0
  %237 = vmatpush1.msra.mxu0 %v26
  %238 = vmatprep.subr.mxu0 0.0
  %239 = vmatpush1.msra.mxu0 %v25
  %240 = vmatprep.subr.mxu0 0.0
  %241 = vmatpush1.msra.mxu0 %v24
  %242 = vmatprep.subr.mxu0 0.0
  %243 = vmatpush1.msra.mxu0 %v23
  %244 = vmatprep.subr.mxu0 0.0
  %245 = vmatpush2.msra.mxu0 %v54
  %246 = vmatprep.subr.mxu0 0.0
  %247 = vmatpush2.msra.mxu0 %v53
  %248 = vmatprep.subr.mxu0 0.0
  %249 = vmatpush2.msra.mxu0 %v52
  %250 = vmatprep.subr.mxu0 0.0
  %251 = vmatpush2.msra.mxu0 %v51
  %252 = vmatprep.subr.mxu0 0.0
  %253 = vmatpush2.msra.mxu0 %v50
  %254 = vmatprep.subr.mxu0 0.0
  %255 = vmatpush2.msra.mxu0 %v49
  %256 = vmatprep.subr.mxu0 0.0
  %257 = vmatpush2.msra.mxu0 %v48
  %258 = vmatprep.subr.mxu0 0.0
  %259 = vmatpush2.msra.mxu0 %v47
  %260 = vmatprep.subr.mxu0 0.0
  %261 = vmatpush2.msra.mxu0 %v46
  %262 = vmatprep.subr.mxu0 0.0
  %263 = vmatpush2.msra.mxu0 %v45
  %264 = vmatprep.subr.mxu0 0.0
  %265 = vmatpush2.msra.mxu0 %v44
  %266 = vmatprep.subr.mxu0 0.0
  %267 = vmatpush2.msra.mxu0 %v43
  %268 = vmatprep.subr.mxu0 0.0
  %269 = vmatpush2.msra.mxu0 %v42
  %270 = vmatprep.subr.mxu0 0.0
  %271 = vmatpush2.msra.mxu0 %v41
  %272 = vmatprep.subr.mxu0 0.0
  %273 = vmatpush2.msra.mxu0 %v40
  %274 = vmatprep.subr.mxu0 0.0
  %275 = vmatpush2.msra.mxu0 %v39
  %276 = vmatprep.mubr.f32.mxu0 %v207
  %277 = vmatmul.mubr.f32.gmra.mxu0 %v206
  %v278 = vpop.f32.mrf.mxu0
  %v279 = vadd.f32 0.0, %v278
  %v280 = vpop.f32.mrf.mxu0
  %281 = vdwg.mxu0
  %282 = vmatprep.subr.mxu0 0.0
  %283 = vmatpush1.msra.mxu0 0.0
  %284 = vmatprep.subr.mxu0 0.0
  %285 = vmatpush1.msra.mxu0 0.0
  %286 = vmatprep.subr.mxu0 0.0
  %287 = vmatpush1.msra.mxu0 0.0
  %288 = vmatprep.subr.mxu0 0.0
  %289 = vmatpush1.msra.mxu0 0.0
  %290 = vmatprep.subr.mxu0 0.0
  %291 = vmatpush1.msra.mxu0 0.0
  %292 = vmatprep.subr.mxu0 0.0
  %293 = vmatpush1.msra.mxu0 0.0
  %294 = vmatprep.subr.mxu0 0.0
  %295 = vmatpush1.msra.mxu0 0.0
  %296 = vmatprep.subr.mxu0 0.0
  %297 = vmatpush1.msra.mxu0 0.0
  %298 = vmatprep.subr.mxu0 0.0
  %299 = vmatpush1.msra.mxu0 0.0
  %300 = vmatprep.subr.mxu0 0.0
  %301 = vmatpush1.msra.mxu0 0.0
  %302 = vmatprep.subr.mxu0 0.0
  %303 = vmatpush1.msra.mxu0 0.0
  %304 = vmatprep.subr.mxu0 0.0
  %305 = vmatpush1.msra.mxu0 0.0
  %306 = vmatprep.subr.mxu0 0.0
  %307 = vmatpush1.msra.mxu0 %v58
  %308 = vmatprep.subr.mxu0 0.0
  %309 = vmatpush1.msra.mxu0 %v57
  %310 = vmatprep.subr.mxu0 0.0
  %311 = vmatpush1.msra.mxu0 %v56
  %312 = vmatprep.subr.mxu0 0.0
  %313 = vmatpush1.msra.mxu0 %v55
  %314 = vmatprep.subr.mxu0 0.0
  %315 = vmatpush2.msra.mxu0 0.0
  %316 = vmatprep.subr.mxu0 0.0
  %317 = vmatpush2.msra.mxu0 0.0
  %318 = vmatprep.subr.mxu0 0.0
  %319 = vmatpush2.msra.mxu0 0.0
  %320 = vmatprep.subr.mxu0 0.0
  %321 = vmatpush2.msra.mxu0 0.0
  %322 = vmatprep.subr.mxu0 0.0
  %323 = vmatpush2.msra.mxu0 0.0
  %324 = vmatprep.subr.mxu0 0.0
  %325 = vmatpush2.msra.mxu0 0.0
  %326 = vmatprep.subr.mxu0 0.0
  %327 = vmatpush2.msra.mxu0 0.0
  %328 = vmatprep.subr.mxu0 0.0
  %329 = vmatpush2.msra.mxu0 0.0
  %330 = vmatprep.subr.mxu0 0.0
  %331 = vmatpush2.msra.mxu0 0.0
  %332 = vmatprep.subr.mxu0 0.0
  %333 = vmatpush2.msra.mxu0 0.0
  %334 = vmatprep.subr.mxu0 0.0
  %335 = vmatpush2.msra.mxu0 0.0
  %336 = vmatprep.subr.mxu0 0.0
  %337 = vmatpush2.msra.mxu0 0.0
  %338 = vmatprep.subr.mxu0 0.0
  %339 = vmatpush2.msra.mxu0 0.0
  %340 = vmatprep.subr.mxu0 0.0
  %341 = vmatpush2.msra.mxu0 0.0
  %342 = vmatprep.subr.mxu0 0.0
  %343 = vmatpush2.msra.mxu0 0.0
  %344 = vmatprep.subr.mxu0 0.0
  %345 = vmatpush2.msra.mxu0 0.0
  %346 = vmatprep.mubr.f32.mxu0 0.0
  %347 = vmatmul.mubr.f32.gmra.mxu0 %v210
  %v348 = vpop.f32.mrf.mxu0
  %v349 = vadd.f32 %v279, %v348
  %v350 = vpop.f32.mrf.mxu0
  %351 = vdwg.mxu0
  %v352 = vmax.f32 %v203, %v349
  %v353 = vld [vmem:[%s2] sm:$0xff]
  %v354 = vld [vmem:[%s2 + $0x8] sm:$0xff]
  %v355 = vld [vmem:[%s2 + $0x10] sm:$0xff]
  %v357 = vsel %vm62, %v355, 0
  %359 = vmatprep.subr.mxu0 0.0
  %360 = vmatpush1.msra.mxu0 %v38
  %361 = vmatprep.subr.mxu0 0.0
  %362 = vmatpush1.msra.mxu0 %v37
  %363 = vmatprep.subr.mxu0 0.0
  %364 = vmatpush1.msra.mxu0 %v36
  %365 = vmatprep.subr.mxu0 0.0
  %366 = vmatpush1.msra.mxu0 %v35
  %367 = vmatprep.subr.mxu0 0.0
  %368 = vmatpush1.msra.mxu0 %v34
  %369 = vmatprep.subr.mxu0 0.0
  %370 = vmatpush1.msra.mxu0 %v33
  %371 = vmatprep.subr.mxu0 0.0
  %372 = vmatpush1.msra.mxu0 %v32
  %373 = vmatprep.subr.mxu0 0.0
  %374 = vmatpush1.msra.mxu0 %v31
  %375 = vmatprep.subr.mxu0 0.0
  %376 = vmatpush1.msra.mxu0 %v30
  %377 = vmatprep.subr.mxu0 0.0
  %378 = vmatpush1.msra.mxu0 %v29
  %379 = vmatprep.subr.mxu0 0.0
  %380 = vmatpush1.msra.mxu0 %v28
  %381 = vmatprep.subr.mxu0 0.0
  %382 = vmatpush1.msra.mxu0 %v27
  %383 = vmatprep.subr.mxu0 0.0
  %384 = vmatpush1.msra.mxu0 %v26
  %385 = vmatprep.subr.mxu0 0.0
  %386 = vmatpush1.msra.mxu0 %v25
  %387 = vmatprep.subr.mxu0 0.0
  %388 = vmatpush1.msra.mxu0 %v24
  %389 = vmatprep.subr.mxu0 0.0
  %390 = vmatpush1.msra.mxu0 %v23
  %391 = vmatprep.subr.mxu0 0.0
  %392 = vmatpush2.msra.mxu0 %v54
  %393 = vmatprep.subr.mxu0 0.0
  %394 = vmatpush2.msra.mxu0 %v53
  %395 = vmatprep.subr.mxu0 0.0
  %396 = vmatpush2.msra.mxu0 %v52
  %397 = vmatprep.subr.mxu0 0.0
  %398 = vmatpush2.msra.mxu0 %v51
  %399 = vmatprep.subr.mxu0 0.0
  %400 = vmatpush2.msra.mxu0 %v50
  %401 = vmatprep.subr.mxu0 0.0
  %402 = vmatpush2.msra.mxu0 %v49
  %403 = vmatprep.subr.mxu0 0.0
  %404 = vmatpush2.msra.mxu0 %v48
  %405 = vmatprep.subr.mxu0 0.0
  %406 = vmatpush2.msra.mxu0 %v47
  %407 = vmatprep.subr.mxu0 0.0
  %408 = vmatpush2.msra.mxu0 %v46
  %409 = vmatprep.subr.mxu0 0.0
  %410 = vmatpush2.msra.mxu0 %v45
  %411 = vmatprep.subr.mxu0 0.0
  %412 = vmatpush2.msra.mxu0 %v44
  %413 = vmatprep.subr.mxu0 0.0
  %414 = vmatpush2.msra.mxu0 %v43
  %415 = vmatprep.subr.mxu0 0.0
  %416 = vmatpush2.msra.mxu0 %v42
  %417 = vmatprep.subr.mxu0 0.0
  %418 = vmatpush2.msra.mxu0 %v41
  %419 = vmatprep.subr.mxu0 0.0
  %420 = vmatpush2.msra.mxu0 %v40
  %421 = vmatprep.subr.mxu0 0.0
  %422 = vmatpush2.msra.mxu0 %v39
  %423 = vmatprep.mubr.f32.mxu0 %v354
  %424 = vmatmul.mubr.f32.gmra.mxu0 %v353
  %v425 = vpop.f32.mrf.mxu0
  %v426 = vadd.f32 0.0, %v425
  %v427 = vpop.f32.mrf.mxu0
  %428 = vdwg.mxu0
  %429 = vmatprep.subr.mxu0 0.0
  %430 = vmatpush1.msra.mxu0 0.0
  %431 = vmatprep.subr.mxu0 0.0
  %432 = vmatpush1.msra.mxu0 0.0
  %433 = vmatprep.subr.mxu0 0.0
  %434 = vmatpush1.msra.mxu0 0.0
  %435 = vmatprep.subr.mxu0 0.0
  %436 = vmatpush1.msra.mxu0 0.0
  %437 = vmatprep.subr.mxu0 0.0
  %438 = vmatpush1.msra.mxu0 0.0
  %439 = vmatprep.subr.mxu0 0.0
  %440 = vmatpush1.msra.mxu0 0.0
  %441 = vmatprep.subr.mxu0 0.0
  %442 = vmatpush1.msra.mxu0 0.0
  %443 = vmatprep.subr.mxu0 0.0
  %444 = vmatpush1.msra.mxu0 0.0
  %445 = vmatprep.subr.mxu0 0.0
  %446 = vmatpush1.msra.mxu0 0.0
  %447 = vmatprep.subr.mxu0 0.0
  %448 = vmatpush1.msra.mxu0 0.0
  %449 = vmatprep.subr.mxu0 0.0
  %450 = vmatpush1.msra.mxu0 0.0
  %451 = vmatprep.subr.mxu0 0.0
  %452 = vmatpush1.msra.mxu0 0.0
  %453 = vmatprep.subr.mxu0 0.0
  %454 = vmatpush1.msra.mxu0 %v58
  %455 = vmatprep.subr.mxu0 0.0
  %456 = vmatpush1.msra.mxu0 %v57
  %457 = vmatprep.subr.mxu0 0.0
  %458 = vmatpush1.msra.mxu0 %v56
  %459 = vmatprep.subr.mxu0 0.0
  %460 = vmatpush1.msra.mxu0 %v55
  %461 = vmatprep.subr.mxu0 0.0
  %462 = vmatpush2.msra.mxu0 0.0
  %463 = vmatprep.subr.mxu0 0.0
  %464 = vmatpush2.msra.mxu0 0.0
  %465 = vmatprep.subr.mxu0 0.0
  %466 = vmatpush2.msra.mxu0 0.0
  %467 = vmatprep.subr.mxu0 0.0
  %468 = vmatpush2.msra.mxu0 0.0
  %469 = vmatprep.subr.mxu0 0.0
  %470 = vmatpush2.msra.mxu0 0.0
  %471 = vmatprep.subr.mxu0 0.0
  %472 = vmatpush2.msra.mxu0 0.0
  %473 = vmatprep.subr.mxu0 0.0
  %474 = vmatpush2.msra.mxu0 0.0
  %475 = vmatprep.subr.mxu0 0.0
  %476 = vmatpush2.msra.mxu0 0.0
  %477 = vmatprep.subr.mxu0 0.0
  %478 = vmatpush2.msra.mxu0 0.0
  %479 = vmatprep.subr.mxu0 0.0
  %480 = vmatpush2.msra.mxu0 0.0
  %481 = vmatprep.subr.mxu0 0.0
  %482 = vmatpush2.msra.mxu0 0.0
  %483 = vmatprep.subr.mxu0 0.0
  %484 = vmatpush2.msra.mxu0 0.0
  %485 = vmatprep.subr.mxu0 0.0
  %486 = vmatpush2.msra.mxu0 0.0
  %487 = vmatprep.subr.mxu0 0.0
  %488 = vmatpush2.msra.mxu0 0.0
  %489 = vmatprep.subr.mxu0 0.0
  %490 = vmatpush2.msra.mxu0 0.0
  %491 = vmatprep.subr.mxu0 0.0
  %492 = vmatpush2.msra.mxu0 0.0
  %493 = vmatprep.mubr.f32.mxu0 0.0
  %494 = vmatmul.mubr.f32.gmra.mxu0 %v357
  %v495 = vpop.f32.mrf.mxu0
  %v496 = vadd.f32 %v426, %v495
  %v497 = vpop.f32.mrf.mxu0
  %498 = vdwg.mxu0
  %v499 = vmax.f32 %v352, %v496
  %v500 = vld [vmem:[%s3] sm:$0xff]
  %v501 = vld [vmem:[%s3 + $0x8] sm:$0xff]
  %v502 = vld [vmem:[%s3 + $0x10] sm:$0xff]
  %v504 = vsel %vm62, %v502, 0
  %506 = vmatprep.subr.mxu0 0.0
  %507 = vmatpush1.msra.mxu0 %v38
  %508 = vmatprep.subr.mxu0 0.0
  %509 = vmatpush1.msra.mxu0 %v37
  %510 = vmatprep.subr.mxu0 0.0
  %511 = vmatpush1.msra.mxu0 %v36
  %512 = vmatprep.subr.mxu0 0.0
  %513 = vmatpush1.msra.mxu0 %v35
  %514 = vmatprep.subr.mxu0 0.0
  %515 = vmatpush1.msra.mxu0 %v34
  %516 = vmatprep.subr.mxu0 0.0
  %517 = vmatpush1.msra.mxu0 %v33
  %518 = vmatprep.subr.mxu0 0.0
  %519 = vmatpush1.msra.mxu0 %v32
  %520 = vmatprep.subr.mxu0 0.0
  %521 = vmatpush1.msra.mxu0 %v31
  %522 = vmatprep.subr.mxu0 0.0
  %523 = vmatpush1.msra.mxu0 %v30
  %524 = vmatprep.subr.mxu0 0.0
  %525 = vmatpush1.msra.mxu0 %v29
  %526 = vmatprep.subr.mxu0 0.0
  %527 = vmatpush1.msra.mxu0 %v28
  %528 = vmatprep.subr.mxu0 0.0
  %529 = vmatpush1.msra.mxu0 %v27
  %530 = vmatprep.subr.mxu0 0.0
  %531 = vmatpush1.msra.mxu0 %v26
  %532 = vmatprep.subr.mxu0 0.0
  %533 = vmatpush1.msra.mxu0 %v25
  %534 = vmatprep.subr.mxu0 0.0
  %535 = vmatpush1.msra.mxu0 %v24
  %536 = vmatprep.subr.mxu0 0.0
  %537 = vmatpush1.msra.mxu0 %v23
  %538 = vmatprep.subr.mxu0 0.0
  %539 = vmatpush2.msra.mxu0 %v54
  %540 = vmatprep.subr.mxu0 0.0
  %541 = vmatpush2.msra.mxu0 %v53
  %542 = vmatprep.subr.mxu0 0.0
  %543 = vmatpush2.msra.mxu0 %v52
  %544 = vmatprep.subr.mxu0 0.0
  %545 = vmatpush2.msra.mxu0 %v51
  %546 = vmatprep.subr.mxu0 0.0
  %547 = vmatpush2.msra.mxu0 %v50
  %548 = vmatprep.subr.mxu0 0.0
  %549 = vmatpush2.msra.mxu0 %v49
  %550 = vmatprep.subr.mxu0 0.0
  %551 = vmatpush2.msra.mxu0 %v48
  %552 = vmatprep.subr.mxu0 0.0
  %553 = vmatpush2.msra.mxu0 %v47
  %554 = vmatprep.subr.mxu0 0.0
  %555 = vmatpush2.msra.mxu0 %v46
  %556 = vmatprep.subr.mxu0 0.0
  %557 = vmatpush2.msra.mxu0 %v45
  %558 = vmatprep.subr.mxu0 0.0
  %559 = vmatpush2.msra.mxu0 %v44
  %560 = vmatprep.subr.mxu0 0.0
  %561 = vmatpush2.msra.mxu0 %v43
  %562 = vmatprep.subr.mxu0 0.0
  %563 = vmatpush2.msra.mxu0 %v42
  %564 = vmatprep.subr.mxu0 0.0
  %565 = vmatpush2.msra.mxu0 %v41
  %566 = vmatprep.subr.mxu0 0.0
  %567 = vmatpush2.msra.mxu0 %v40
  %568 = vmatprep.subr.mxu0 0.0
  %569 = vmatpush2.msra.mxu0 %v39
  %570 = vmatprep.mubr.f32.mxu0 %v501
  %571 = vmatmul.mubr.f32.gmra.mxu0 %v500
  %v572 = vpop.f32.mrf.mxu0
  %v573 = vadd.f32 0.0, %v572
  %v574 = vpop.f32.mrf.mxu0
  %575 = vdwg.mxu0
  %576 = vmatprep.subr.mxu0 0.0
  %577 = vmatpush1.msra.mxu0 0.0
  %578 = vmatprep.subr.mxu0 0.0
  %579 = vmatpush1.msra.mxu0 0.0
  %580 = vmatprep.subr.mxu0 0.0
  %581 = vmatpush1.msra.mxu0 0.0
  %582 = vmatprep.subr.mxu0 0.0
  %583 = vmatpush1.msra.mxu0 0.0
  %584 = vmatprep.subr.mxu0 0.0
  %585 = vmatpush1.msra.mxu0 0.0
  %586 = vmatprep.subr.mxu0 0.0
  %587 = vmatpush1.msra.mxu0 0.0
  %588 = vmatprep.subr.mxu0 0.0
  %589 = vmatpush1.msra.mxu0 0.0
  %590 = vmatprep.subr.mxu0 0.0
  %591 = vmatpush1.msra.mxu0 0.0
  %592 = vmatprep.subr.mxu0 0.0
  %593 = vmatpush1.msra.mxu0 0.0
  %594 = vmatprep.subr.mxu0 0.0
  %595 = vmatpush1.msra.mxu0 0.0
  %596 = vmatprep.subr.mxu0 0.0
  %597 = vmatpush1.msra.mxu0 0.0
  %598 = vmatprep.subr.mxu0 0.0
  %599 = vmatpush1.msra.mxu0 0.0
  %600 = vmatprep.subr.mxu0 0.0
  %601 = vmatpush1.msra.mxu0 %v58
  %602 = vmatprep.subr.mxu0 0.0
  %603 = vmatpush1.msra.mxu0 %v57
  %604 = vmatprep.subr.mxu0 0.0
  %605 = vmatpush1.msra.mxu0 %v56
  %606 = vmatprep.subr.mxu0 0.0
  %607 = vmatpush1.msra.mxu0 %v55
  %608 = vmatprep.subr.mxu0 0.0
  %609 = vmatpush2.msra.mxu0 0.0
  %610 = vmatprep.subr.mxu0 0.0
  %611 = vmatpush2.msra.mxu0 0.0
  %612 = vmatprep.subr.mxu0 0.0
  %613 = vmatpush2.msra.mxu0 0.0
  %614 = vmatprep.subr.mxu0 0.0
  %615 = vmatpush2.msra.mxu0 0.0
  %616 = vmatprep.subr.mxu0 0.0
  %617 = vmatpush2.msra.mxu0 0.0
  %618 = vmatprep.subr.mxu0 0.0
  %619 = vmatpush2.msra.mxu0 0.0
  %620 = vmatprep.subr.mxu0 0.0
  %621 = vmatpush2.msra.mxu0 0.0
  %622 = vmatprep.subr.mxu0 0.0
  %623 = vmatpush2.msra.mxu0 0.0
  %624 = vmatprep.subr.mxu0 0.0
  %625 = vmatpush2.msra.mxu0 0.0
  %626 = vmatprep.subr.mxu0 0.0
  %627 = vmatpush2.msra.mxu0 0.0
  %628 = vmatprep.subr.mxu0 0.0
  %629 = vmatpush2.msra.mxu0 0.0
  %630 = vmatprep.subr.mxu0 0.0
  %631 = vmatpush2.msra.mxu0 0.0
  %632 = vmatprep.subr.mxu0 0.0
  %633 = vmatpush2.msra.mxu0 0.0
  %634 = vmatprep.subr.mxu0 0.0
  %635 = vmatpush2.msra.mxu0 0.0
  %636 = vmatprep.subr.mxu0 0.0
  %637 = vmatpush2.msra.mxu0 0.0
  %638 = vmatprep.subr.mxu0 0.0
  %639 = vmatpush2.msra.mxu0 0.0
  %640 = vmatprep.mubr.f32.mxu0 0.0
  %641 = vmatmul.mubr.f32.gmra.mxu0 %v504
  %v642 = vpop.f32.mrf.mxu0
  %v643 = vadd.f32 %v573, %v642
  %v644 = vpop.f32.mrf.mxu0
  %645 = vdwg.mxu0
  %v646 = vmax.f32 %v499, %v643
  %v647 = vld [vmem:[%s5] sm:$0x1]
  %v649 = vlaneseq
  %v650 = vshrl.u32 %v649, 7
  %v651 = vsub.s32 0, %v650
  %v652 = vrot.slane %v647, %v651
  %v654 = vadd.f32 %v646, %v652
  %v655 = vmax.f32 %v654, 0.0
  %656 = vst.msk [vmem:[%s6] sm:$0xff] %vm62, %v655
  // Predicated region
  $region26: #{_feature_forward_impl.6} parent=0 // pred_check
    _
  $region27: #{_feature_forward_impl.6} parent=0 // pred_check_branch
    %658 = sbr.rel (0) target = $region29
  $region28: #{_feature_forward_impl.6} parent=0 // pred_region
    _
  $region29: #{_feature_forward_impl.6} parent=0 // pred_fallthru
    _
  // Predicated region
  $region30: #{_feature_forward_impl.6} parent=0 // pred_check
    _
  $region31: #{_feature_forward_impl.6} parent=0 // pred_check_branch
    %660 = sbr.rel (0) target = $region33
  $region32: #{_feature_forward_impl.6} parent=0 // pred_region
    _
  $region33: #{_feature_forward_impl.6} parent=0 // pred_fallthru
    _

// kernel: _feature_forward_impl.7
$region0: #{_feature_forward_impl.7}
  #allocation0 [shape = 'u32[]', space=smem, size = 0x4, offset = 0x4, fixed_abs, tag = 'smem constant byte address 0x4 - core index']
  #allocation1 [shape = 'u32[144,128]{1,0:T(1,128)}', space=vmem, size = 0x12000, scoped, tag = 'internal scratch']
  %s0 = inlined_call_operand.vmem [shape: f32[2,288], index: 0, kind: input, shape index: {}]
  %s1 = inlined_call_operand.vmem [shape: f32[2,288], index: 1, kind: input, shape index: {}]
  %s2 = inlined_call_operand.vmem [shape: f32[2,288], index: 2, kind: input, shape index: {}]
  %s3 = inlined_call_operand.vmem [shape: f32[2,288], index: 3, kind: input, shape index: {}]
  %s4 = inlined_call_operand.vmem [shape: f32[288,32], index: 4, kind: input, shape index: {}]
  %s5 = inlined_call_operand.vmem [shape: f32[1,32], index: 5, kind: input, shape index: {}]
  %s6 = inlined_call_operand.hbm [shape: f32[2,32], index: 6, kind: output, shape index: {}]
  %s7 = sld [smem:[#allocation0]]
  $region34: #{_feature_forward_impl.7} parent=0
    _
  %s9 = ssub.s32 1, %s7
  %s10 = scalar_select 0, %s9, %s7
  $region1: #{_feature_forward_impl.7} parent=0
    #allocation2 [shape = 'u8[1024]{0}', space=vmem, size = 0x400, scoped, tag = 'output window, operand 0, single buffered']
    #allocation3 [shape = 's32[1]{0}', space=sflag, size = 0x4, scoped, tag = 'scoped memory for _feature_forward_impl.7']
    %11 = vsyncpa [#allocation3], 0
    // Predicated region
    $region2: #{_feature_forward_impl.7} parent=1 // pred_check
      _
    $region3: #{_feature_forward_impl.7} parent=1 // pred_check_branch
      %13 = sbr.rel (0) target = $region5
    $region4: #{_feature_forward_impl.7} parent=1 // pred_region
      _
    $region5: #{_feature_forward_impl.7} parent=1 // pred_fallthru
      _
    // Predicated region
    $region6: #{_feature_forward_impl.7} parent=1 // pred_check
      _
    $region7: #{_feature_forward_impl.7} parent=1 // pred_check_branch
      %15 = sbr.rel (0) target = $region9
    $region8: #{_feature_forward_impl.7} parent=1 // pred_region
      _
    $region9: #{_feature_forward_impl.7} parent=1 // pred_fallthru
      _
    // Predicated region
    $region10: #{_feature_forward_impl.7} parent=1 // pred_check
      _
    $region11: #{_feature_forward_impl.7} parent=1 // pred_check_branch
      %17 = sbr.rel (0) target = $region13
    $region12: #{_feature_forward_impl.7} parent=1 // pred_region
      _
    $region13: #{_feature_forward_impl.7} parent=1 // pred_fallthru
      _
    // Predicated region
    $region14: #{_feature_forward_impl.7} parent=1 // pred_check
      _
    $region15: #{_feature_forward_impl.7} parent=1 // pred_check_branch
      %19 = sbr.rel (0) target = $region17
    $region16: #{_feature_forward_impl.7} parent=1 // pred_region
      _
    $region17: #{_feature_forward_impl.7} parent=1 // pred_fallthru
      _
    // Predicated region
    $region18: #{_feature_forward_impl.7} parent=1 // pred_check
      _
    $region19: #{_feature_forward_impl.7} parent=1 // pred_check_branch
      %21 = sbr.rel (0) target = $region21
    $region20: #{_feature_forward_impl.7} parent=1 // pred_region
      _
    $region21: #{_feature_forward_impl.7} parent=1 // pred_fallthru
      _
    // Predicated region
    $region22: #{_feature_forward_impl.7} parent=1 // pred_check
      _
    $region23: #{_feature_forward_impl.7} parent=1 // pred_check_branch
      %23 = sbr.rel (0) target = $region25
    $region24: #{_feature_forward_impl.7} parent=1 // pred_region
      _
    $region25: #{_feature_forward_impl.7} parent=1 // pred_fallthru
      _
    %v24 = vld [vmem:[%s4] sm:$0xff]
    %v25 = vld [vmem:[%s4 + $0x8] sm:$0xff]
    %v26 = vld [vmem:[%s4 + $0x10] sm:$0xff]
    %v27 = vld [vmem:[%s4 + $0x18] sm:$0xff]
    %v28 = vld [vmem:[%s4 + $0x20] sm:$0xff]
    %v29 = vld [vmem:[%s4 + $0x28] sm:$0xff]
    %v30 = vld [vmem:[%s4 + $0x30] sm:$0xff]
    %v31 = vld [vmem:[%s4 + $0x38] sm:$0xff]
    %v32 = vld [vmem:[%s4 + $0x40] sm:$0xff]
    %v33 = vld [vmem:[%s4 + $0x48] sm:$0xff]
    %v34 = vld [vmem:[%s4 + $0x50] sm:$0xff]
    %v35 = vld [vmem:[%s4 + $0x58] sm:$0xff]
    %v36 = vld [vmem:[%s4 + $0x60] sm:$0xff]
    %v37 = vld [vmem:[%s4 + $0x68] sm:$0xff]
    %v38 = vld [vmem:[%s4 + $0x70] sm:$0xff]
    %v39 = vld [vmem:[%s4 + $0x78] sm:$0xff]
    %v40 = vld [vmem:[%s4 + $0x80] sm:$0xff]
    %v41 = vld [vmem:[%s4 + $0x88] sm:$0xff]
    %v42 = vld [vmem:[%s4 + $0x90] sm:$0xff]
    %v43 = vld [vmem:[%s4 + $0x98] sm:$0xff]
    %v44 = vld [vmem:[%s4 + $0xa0] sm:$0xff]
    %v45 = vld [vmem:[%s4 + $0xa8] sm:$0xff]
    %v46 = vld [vmem:[%s4 + $0xb0] sm:$0xff]
    %v47 = vld [vmem:[%s4 + $0xb8] sm:$0xff]
    %v48 = vld [vmem:[%s4 + $0xc0] sm:$0xff]
    %v49 = vld [vmem:[%s4 + $0xc8] sm:$0xff]
    %v50 = vld [vmem:[%s4 + $0xd0] sm:$0xff]
    %v51 = vld [vmem:[%s4 + $0xd8] sm:$0xff]
    %v52 = vld [vmem:[%s4 + $0xe0] sm:$0xff]
    %v53 = vld [vmem:[%s4 + $0xe8] sm:$0xff]
    %v54 = vld [vmem:[%s4 + $0xf0] sm:$0xff]
    %v55 = vld [vmem:[%s4 + $0xf8] sm:$0xff]
    %v56 = vld [vmem:[%s4 + $0x100] sm:$0xff]
    %v57 = vld [vmem:[%s4 + $0x108] sm:$0xff]
    %v58 = vld [vmem:[%s4 + $0x110] sm:$0xff]
    %v59 = vld [vmem:[%s4 + $0x118] sm:$0xff]
    %v60 = vld [vmem:[%s0] sm:$0x3f]
    %v62 = vcombine.high %v60, %v60
    %v64 = vunpack.c.l.s4 1983009808
    %v65 = vunpack.c.0.s8 %v64
    %v66 = vlaneseq
    %v67 = vshrl.u32 %v66, 7
    %v68 = vsub.s32 %v65, %v67
    %v69 = vrot.slane %v60, %v68
    %v71 = vunpack.c.l.s4 1983009808
    %v72 = vunpack.c.0.s8 %v71
    %v73 = vlaneseq
    %v74 = vshrl.u32 %v73, 7
    %v75 = vsub.s32 %v72, %v74
    %v76 = vrot.slane %v62, %v75
    %v77 = vcombine.high %v69, %v69
    %vm80 = vcmask 261120
    %v81 = vsel %vm80, %v76, 0
    %83 = vmatprep.subr.mxu0 0.0
    %84 = vmatpush1.msra.mxu0 %v39
    %85 = vmatprep.subr.mxu0 0.0
    %86 = vmatpush1.msra.mxu0 %v38
    %87 = vmatprep.subr.mxu0 0.0
    %88 = vmatpush1.msra.mxu0 %v37
    %89 = vmatprep.subr.mxu0 0.0
    %90 = vmatpush1.msra.mxu0 %v36
    %91 = vmatprep.subr.mxu0 0.0
    %92 = vmatpush1.msra.mxu0 %v35
    %93 = vmatprep.subr.mxu0 0.0
    %94 = vmatpush1.msra.mxu0 %v34
    %95 = vmatprep.subr.mxu0 0.0
    %96 = vmatpush1.msra.mxu0 %v33
    %97 = vmatprep.subr.mxu0 0.0
    %98 = vmatpush1.msra.mxu0 %v32
    %99 = vmatprep.subr.mxu0 0.0
    %100 = vmatpush1.msra.mxu0 %v31
    %101 = vmatprep.subr.mxu0 0.0
    %102 = vmatpush1.msra.mxu0 %v30
    %103 = vmatprep.subr.mxu0 0.0
    %104 = vmatpush1.msra.mxu0 %v29
    %105 = vmatprep.subr.mxu0 0.0
    %106 = vmatpush1.msra.mxu0 %v28
    %107 = vmatprep.subr.mxu0 0.0
    %108 = vmatpush1.msra.mxu0 %v27
    %109 = vmatprep.subr.mxu0 0.0
    %110 = vmatpush1.msra.mxu0 %v26
    %111 = vmatprep.subr.mxu0 0.0
    %112 = vmatpush1.msra.mxu0 %v25
    %113 = vmatprep.subr.mxu0 0.0
    %114 = vmatpush1.msra.mxu0 %v24
    %115 = vmatprep.subr.mxu0 0.0
    %116 = vmatpush2.msra.mxu0 %v55
    %117 = vmatprep.subr.mxu0 0.0
    %118 = vmatpush2.msra.mxu0 %v54
    %119 = vmatprep.subr.mxu0 0.0
    %120 = vmatpush2.msra.mxu0 %v53
    %121 = vmatprep.subr.mxu0 0.0
    %122 = vmatpush2.msra.mxu0 %v52
    %123 = vmatprep.subr.mxu0 0.0
    %124 = vmatpush2.msra.mxu0 %v51
    %125 = vmatprep.subr.mxu0 0.0
    %126 = vmatpush2.msra.mxu0 %v50
    %127 = vmatprep.subr.mxu0 0.0
    %128 = vmatpush2.msra.mxu0 %v49
    %129 = vmatprep.subr.mxu0 0.0
    %130 = vmatpush2.msra.mxu0 %v48
    %131 = vmatprep.subr.mxu0 0.0
    %132 = vmatpush2.msra.mxu0 %v47
    %133 = vmatprep.subr.mxu0 0.0
    %134 = vmatpush2.msra.mxu0 %v46
    %135 = vmatprep.subr.mxu0 0.0
    %136 = vmatpush2.msra.mxu0 %v45
    %137 = vmatprep.subr.mxu0 0.0
    %138 = vmatpush2.msra.mxu0 %v44
    %139 = vmatprep.subr.mxu0 0.0
    %140 = vmatpush2.msra.mxu0 %v43
    %141 = vmatprep.subr.mxu0 0.0
    %142 = vmatpush2.msra.mxu0 %v42
    %143 = vmatprep.subr.mxu0 0.0
    %144 = vmatpush2.msra.mxu0 %v41
    %145 = vmatprep.subr.mxu0 0.0
    %146 = vmatpush2.msra.mxu0 %v40
    %147 = vmatprep.mubr.f32.mxu0 %v77
    %148 = vmatmul.mubr.f32.gmra.mxu0 %v69
    %v149 = vpop.f32.mrf.mxu0
    %v150 = vadd.f32 0.0, %v149
    %v151 = vpop.f32.mrf.mxu0
    %152 = vdwg.mxu0
    %153 = vmatprep.subr.mxu0 0.0
    %154 = vmatpush1.msra.mxu0 0.0
    %155 = vmatprep.subr.mxu0 0.0
    %156 = vmatpush1.msra.mxu0 0.0
    %157 = vmatprep.subr.mxu0 0.0
    %158 = vmatpush1.msra.mxu0 0.0
    %159 = vmatprep.subr.mxu0 0.0
    %160 = vmatpush1.msra.mxu0 0.0
    %161 = vmatprep.subr.mxu0 0.0
    %162 = vmatpush1.msra.mxu0 0.0
    %163 = vmatprep.subr.mxu0 0.0
    %164 = vmatpush1.msra.mxu0 0.0
    %165 = vmatprep.subr.mxu0 0.0
    %166 = vmatpush1.msra.mxu0 0.0
    %167 = vmatprep.subr.mxu0 0.0
    %168 = vmatpush1.msra.mxu0 0.0
    %169 = vmatprep.subr.mxu0 0.0
    %170 = vmatpush1.msra.mxu0 0.0
    %171 = vmatprep.subr.mxu0 0.0
    %172 = vmatpush1.msra.mxu0 0.0
    %173 = vmatprep.subr.mxu0 0.0
    %174 = vmatpush1.msra.mxu0 0.0
    %175 = vmatprep.subr.mxu0 0.0
    %176 = vmatpush1.msra.mxu0 0.0
    %177 = vmatprep.subr.mxu0 0.0
    %178 = vmatpush1.msra.mxu0 %v59
    %179 = vmatprep.subr.mxu0 0.0
    %180 = vmatpush1.msra.mxu0 %v58
    %181 = vmatprep.subr.mxu0 0.0
    %182 = vmatpush1.msra.mxu0 %v57
    %183 = vmatprep.subr.mxu0 0.0
    %184 = vmatpush1.msra.mxu0 %v56
    %185 = vmatprep.subr.mxu0 0.0
    %186 = vmatpush2.msra.mxu0 0.0
    %187 = vmatprep.subr.mxu0 0.0
    %188 = vmatpush2.msra.mxu0 0.0
    %189 = vmatprep.subr.mxu0 0.0
    %190 = vmatpush2.msra.mxu0 0.0
    %191 = vmatprep.subr.mxu0 0.0
    %192 = vmatpush2.msra.mxu0 0.0
    %193 = vmatprep.subr.mxu0 0.0
    %194 = vmatpush2.msra.mxu0 0.0
    %195 = vmatprep.subr.mxu0 0.0
    %196 = vmatpush2.msra.mxu0 0.0
    %197 = vmatprep.subr.mxu0 0.0
    %198 = vmatpush2.msra.mxu0 0.0
    %199 = vmatprep.subr.mxu0 0.0
    %200 = vmatpush2.msra.mxu0 0.0
    %201 = vmatprep.subr.mxu0 0.0
    %202 = vmatpush2.msra.mxu0 0.0
    %203 = vmatprep.subr.mxu0 0.0
    %204 = vmatpush2.msra.mxu0 0.0
    %205 = vmatprep.subr.mxu0 0.0
    %206 = vmatpush2.msra.mxu0 0.0
    %207 = vmatprep.subr.mxu0 0.0
    %208 = vmatpush2.msra.mxu0 0.0
    %209 = vmatprep.subr.mxu0 0.0
    %210 = vmatpush2.msra.mxu0 0.0
    %211 = vmatprep.subr.mxu0 0.0
    %212 = vmatpush2.msra.mxu0 0.0
    %213 = vmatprep.subr.mxu0 0.0
    %214 = vmatpush2.msra.mxu0 0.0
    %215 = vmatprep.subr.mxu0 0.0
    %216 = vmatpush2.msra.mxu0 0.0
    %217 = vmatprep.mubr.f32.mxu0 0.0
    %218 = vmatmul.mubr.f32.gmra.mxu0 %v81
    %v219 = vpop.f32.mrf.mxu0
    %v220 = vadd.f32 %v150, %v219
    %v221 = vpop.f32.mrf.mxu0
    %222 = vdwg.mxu0
    %v223 = vld [vmem:[%s1] sm:$0x3f]
    %v225 = vcombine.high %v223, %v223
    %v227 = vunpack.c.l.s4 1983009808
    %v228 = vunpack.c.0.s8 %v227
    %v229 = vlaneseq
    %v230 = vshrl.u32 %v229, 7
    %v231 = vsub.s32 %v228, %v230
    %v232 = vrot.slane %v223, %v231
    %v234 = vunpack.c.l.s4 1983009808
    %v235 = vunpack.c.0.s8 %v234
    %v236 = vlaneseq
    %v237 = vshrl.u32 %v236, 7
    %v238 = vsub.s32 %v235, %v237
    %v239 = vrot.slane %v225, %v238
    %v240 = vcombine.high %v232, %v232
    %v243 = vsel %vm80, %v239, 0
    %245 = vmatprep.subr.mxu0 0.0
    %246 = vmatpush1.msra.mxu0 %v39
    %247 = vmatprep.subr.mxu0 0.0
    %248 = vmatpush1.msra.mxu0 %v38
    %249 = vmatprep.subr.mxu0 0.0
    %250 = vmatpush1.msra.mxu0 %v37
    %251 = vmatprep.subr.mxu0 0.0
    %252 = vmatpush1.msra.mxu0 %v36
    %253 = vmatprep.subr.mxu0 0.0
    %254 = vmatpush1.msra.mxu0 %v35
    %255 = vmatprep.subr.mxu0 0.0
    %256 = vmatpush1.msra.mxu0 %v34
    %257 = vmatprep.subr.mxu0 0.0
    %258 = vmatpush1.msra.mxu0 %v33
    %259 = vmatprep.subr.mxu0 0.0
    %260 = vmatpush1.msra.mxu0 %v32
    %261 = vmatprep.subr.mxu0 0.0
    %262 = vmatpush1.msra.mxu0 %v31
    %263 = vmatprep.subr.mxu0 0.0
    %264 = vmatpush1.msra.mxu0 %v30
    %265 = vmatprep.subr.mxu0 0.0
    %266 = vmatpush1.msra.mxu0 %v29
    %267 = vmatprep.subr.mxu0 0.0
    %268 = vmatpush1.msra.mxu0 %v28
    %269 = vmatprep.subr.mxu0 0.0
    %270 = vmatpush1.msra.mxu0 %v27
    %271 = vmatprep.subr.mxu0 0.0
    %272 = vmatpush1.msra.mxu0 %v26
    %273 = vmatprep.subr.mxu0 0.0
    %274 = vmatpush1.msra.mxu0 %v25
    %275 = vmatprep.subr.mxu0 0.0
    %276 = vmatpush1.msra.mxu0 %v24
    %277 = vmatprep.subr.mxu0 0.0
    %278 = vmatpush2.msra.mxu0 %v55
    %279 = vmatprep.subr.mxu0 0.0
    %280 = vmatpush2.msra.mxu0 %v54
    %281 = vmatprep.subr.mxu0 0.0
    %282 = vmatpush2.msra.mxu0 %v53
    %283 = vmatprep.subr.mxu0 0.0
    %284 = vmatpush2.msra.mxu0 %v52
    %285 = vmatprep.subr.mxu0 0.0
    %286 = vmatpush2.msra.mxu0 %v51
    %287 = vmatprep.subr.mxu0 0.0
    %288 = vmatpush2.msra.mxu0 %v50
    %289 = vmatprep.subr.mxu0 0.0
    %290 = vmatpush2.msra.mxu0 %v49
    %291 = vmatprep.subr.mxu0 0.0
    %292 = vmatpush2.msra.mxu0 %v48
    %293 = vmatprep.subr.mxu0 0.0
    %294 = vmatpush2.msra.mxu0 %v47
    %295 = vmatprep.subr.mxu0 0.0
    %296 = vmatpush2.msra.mxu0 %v46
    %297 = vmatprep.subr.mxu0 0.0
    %298 = vmatpush2.msra.mxu0 %v45
    %299 = vmatprep.subr.mxu0 0.0
    %300 = vmatpush2.msra.mxu0 %v44
    %301 = vmatprep.subr.mxu0 0.0
    %302 = vmatpush2.msra.mxu0 %v43
    %303 = vmatprep.subr.mxu0 0.0
    %304 = vmatpush2.msra.mxu0 %v42
    %305 = vmatprep.subr.mxu0 0.0
    %306 = vmatpush2.msra.mxu0 %v41
    %307 = vmatprep.subr.mxu0 0.0
    %308 = vmatpush2.msra.mxu0 %v40
    %309 = vmatprep.mubr.f32.mxu0 %v240
    %310 = vmatmul.mubr.f32.gmra.mxu0 %v232
    %v311 = vpop.f32.mrf.mxu0
    %v312 = vadd.f32 0.0, %v311
    %v313 = vpop.f32.mrf.mxu0
    %314 = vdwg.mxu0
    %315 = vmatprep.subr.mxu0 0.0
    %316 = vmatpush1.msra.mxu0 0.0
    %317 = vmatprep.subr.mxu0 0.0
    %318 = vmatpush1.msra.mxu0 0.0
    %319 = vmatprep.subr.mxu0 0.0
    %320 = vmatpush1.msra.mxu0 0.0
    %321 = vmatprep.subr.mxu0 0.0
    %322 = vmatpush1.msra.mxu0 0.0
    %323 = vmatprep.subr.mxu0 0.0
    %324 = vmatpush1.msra.mxu0 0.0
    %325 = vmatprep.subr.mxu0 0.0
    %326 = vmatpush1.msra.mxu0 0.0
    %327 = vmatprep.subr.mxu0 0.0
    %328 = vmatpush1.msra.mxu0 0.0
    %329 = vmatprep.subr.mxu0 0.0
    %330 = vmatpush1.msra.mxu0 0.0
    %331 = vmatprep.subr.mxu0 0.0
    %332 = vmatpush1.msra.mxu0 0.0
    %333 = vmatprep.subr.mxu0 0.0
    %334 = vmatpush1.msra.mxu0 0.0
    %335 = vmatprep.subr.mxu0 0.0
    %336 = vmatpush1.msra.mxu0 0.0
    %337 = vmatprep.subr.mxu0 0.0
    %338 = vmatpush1.msra.mxu0 0.0
    %339 = vmatprep.subr.mxu0 0.0
    %340 = vmatpush1.msra.mxu0 %v59
    %341 = vmatprep.subr.mxu0 0.0
    %342 = vmatpush1.msra.mxu0 %v58
    %343 = vmatprep.subr.mxu0 0.0
    %344 = vmatpush1.msra.mxu0 %v57
    %345 = vmatprep.subr.mxu0 0.0
    %346 = vmatpush1.msra.mxu0 %v56
    %347 = vmatprep.subr.mxu0 0.0
    %348 = vmatpush2.msra.mxu0 0.0
    %349 = vmatprep.subr.mxu0 0.0
    %350 = vmatpush2.msra.mxu0 0.0
    %351 = vmatprep.subr.mxu0 0.0
    %352 = vmatpush2.msra.mxu0 0.0
    %353 = vmatprep.subr.mxu0 0.0
    %354 = vmatpush2.msra.mxu0 0.0
    %355 = vmatprep.subr.mxu0 0.0
    %356 = vmatpush2.msra.mxu0 0.0
    %357 = vmatprep.subr.mxu0 0.0
    %358 = vmatpush2.msra.mxu0 0.0
    %359 = vmatprep.subr.mxu0 0.0
    %360 = vmatpush2.msra.mxu0 0.0
    %361 = vmatprep.subr.mxu0 0.0
    %362 = vmatpush2.msra.mxu0 0.0
    %363 = vmatprep.subr.mxu0 0.0
    %364 = vmatpush2.msra.mxu0 0.0
    %365 = vmatprep.subr.mxu0 0.0
    %366 = vmatpush2.msra.mxu0 0.0
    %367 = vmatprep.subr.mxu0 0.0
    %368 = vmatpush2.msra.mxu0 0.0
    %369 = vmatprep.subr.mxu0 0.0
    %370 = vmatpush2.msra.mxu0 0.0
    %371 = vmatprep.subr.mxu0 0.0
    %372 = vmatpush2.msra.mxu0 0.0
    %373 = vmatprep.subr.mxu0 0.0
    %374 = vmatpush2.msra.mxu0 0.0
    %375 = vmatprep.subr.mxu0 0.0
    %376 = vmatpush2.msra.mxu0 0.0
    %377 = vmatprep.subr.mxu0 0.0
    %378 = vmatpush2.msra.mxu0 0.0
    %379 = vmatprep.mubr.f32.mxu0 0.0
    %380 = vmatmul.mubr.f32.gmra.mxu0 %v243
    %v381 = vpop.f32.mrf.mxu0
    %v382 = vadd.f32 %v312, %v381
    %v383 = vpop.f32.mrf.mxu0
    %384 = vdwg.mxu0
    %v385 = vmax.f32 %v220, %v382
    %v386 = vld [vmem:[%s2] sm:$0x3f]
    %v388 = vcombine.high %v386, %v386
    %v390 = vunpack.c.l.s4 1983009808
    %v391 = vunpack.c.0.s8 %v390
    %v392 = vlaneseq
    %v393 = vshrl.u32 %v392, 7
    %v394 = vsub.s32 %v391, %v393
    %v395 = vrot.slane %v386, %v394
    %v397 = vunpack.c.l.s4 1983009808
    %v398 = vunpack.c.0.s8 %v397
    %v399 = vlaneseq
    %v400 = vshrl.u32 %v399, 7
    %v401 = vsub.s32 %v398, %v400
    %v402 = vrot.slane %v388, %v401
    %v403 = vcombine.high %v395, %v395
    %v406 = vsel %vm80, %v402, 0
    %408 = vmatprep.subr.mxu0 0.0
    %409 = vmatpush1.msra.mxu0 %v39
    %410 = vmatprep.subr.mxu0 0.0
    %411 = vmatpush1.msra.mxu0 %v38
    %412 = vmatprep.subr.mxu0 0.0
    %413 = vmatpush1.msra.mxu0 %v37
    %414 = vmatprep.subr.mxu0 0.0
    %415 = vmatpush1.msra.mxu0 %v36
    %416 = vmatprep.subr.mxu0 0.0
    %417 = vmatpush1.msra.mxu0 %v35
    %418 = vmatprep.subr.mxu0 0.0
    %419 = vmatpush1.msra.mxu0 %v34
    %420 = vmatprep.subr.mxu0 0.0
    %421 = vmatpush1.msra.mxu0 %v33
    %422 = vmatprep.subr.mxu0 0.0
    %423 = vmatpush1.msra.mxu0 %v32
    %424 = vmatprep.subr.mxu0 0.0
    %425 = vmatpush1.msra.mxu0 %v31
    %426 = vmatprep.subr.mxu0 0.0
    %427 = vmatpush1.msra.mxu0 %v30
    %428 = vmatprep.subr.mxu0 0.0
    %429 = vmatpush1.msra.mxu0 %v29
    %430 = vmatprep.subr.mxu0 0.0
    %431 = vmatpush1.msra.mxu0 %v28
    %432 = vmatprep.subr.mxu0 0.0
    %433 = vmatpush1.msra.mxu0 %v27
    %434 = vmatprep.subr.mxu0 0.0
    %435 = vmatpush1.msra.mxu0 %v26
    %436 = vmatprep.subr.mxu0 0.0
    %437 = vmatpush1.msra.mxu0 %v25
    %438 = vmatprep.subr.mxu0 0.0
    %439 = vmatpush1.msra.mxu0 %v24
    %440 = vmatprep.subr.mxu0 0.0
    %441 = vmatpush2.msra.mxu0 %v55
    %442 = vmatprep.subr.mxu0 0.0
    %443 = vmatpush2.msra.mxu0 %v54
    %444 = vmatprep.subr.mxu0 0.0
    %445 = vmatpush2.msra.mxu0 %v53
    %446 = vmatprep.subr.mxu0 0.0
    %447 = vmatpush2.msra.mxu0 %v52
    %448 = vmatprep.subr.mxu0 0.0
    %449 = vmatpush2.msra.mxu0 %v51
    %450 = vmatprep.subr.mxu0 0.0
    %451 = vmatpush2.msra.mxu0 %v50
    %452 = vmatprep.subr.mxu0 0.0
    %453 = vmatpush2.msra.mxu0 %v49
    %454 = vmatprep.subr.mxu0 0.0
    %455 = vmatpush2.msra.mxu0 %v48
    %456 = vmatprep.subr.mxu0 0.0
    %457 = vmatpush2.msra.mxu0 %v47
    %458 = vmatprep.subr.mxu0 0.0
    %459 = vmatpush2.msra.mxu0 %v46
    %460 = vmatprep.subr.mxu0 0.0
    %461 = vmatpush2.msra.mxu0 %v45
    %462 = vmatprep.subr.mxu0 0.0
    %463 = vmatpush2.msra.mxu0 %v44
    %464 = vmatprep.subr.mxu0 0.0
    %465 = vmatpush2.msra.mxu0 %v43
    %466 = vmatprep.subr.mxu0 0.0
    %467 = vmatpush2.msra.mxu0 %v42
    %468 = vmatprep.subr.mxu0 0.0
    %469 = vmatpush2.msra.mxu0 %v41
    %470 = vmatprep.subr.mxu0 0.0
    %471 = vmatpush2.msra.mxu0 %v40
    %472 = vmatprep.mubr.f32.mxu0 %v403
    %473 = vmatmul.mubr.f32.gmra.mxu0 %v395
    %v474 = vpop.f32.mrf.mxu0
    %v475 = vadd.f32 0.0, %v474
    %v476 = vpop.f32.mrf.mxu0
    %477 = vdwg.mxu0
    %478 = vmatprep.subr.mxu0 0.0
    %479 = vmatpush1.msra.mxu0 0.0
    %480 = vmatprep.subr.mxu0 0.0
    %481 = vmatpush1.msra.mxu0 0.0
    %482 = vmatprep.subr.mxu0 0.0
    %483 = vmatpush1.msra.mxu0 0.0
    %484 = vmatprep.subr.mxu0 0.0
    %485 = vmatpush1.msra.mxu0 0.0
    %486 = vmatprep.subr.mxu0 0.0
    %487 = vmatpush1.msra.mxu0 0.0
    %488 = vmatprep.subr.mxu0 0.0
    %489 = vmatpush1.msra.mxu0 0.0
    %490 = vmatprep.subr.mxu0 0.0
    %491 = vmatpush1.msra.mxu0 0.0
    %492 = vmatprep.subr.mxu0 0.0
    %493 = vmatpush1.msra.mxu0 0.0
    %494 = vmatprep.subr.mxu0 0.0
    %495 = vmatpush1.msra.mxu0 0.0
    %496 = vmatprep.subr.mxu0 0.0
    %497 = vmatpush1.msra.mxu0 0.0
    %498 = vmatprep.subr.mxu0 0.0
    %499 = vmatpush1.msra.mxu0 0.0
    %500 = vmatprep.subr.mxu0 0.0
    %501 = vmatpush1.msra.mxu0 0.0
    %502 = vmatprep.subr.mxu0 0.0
    %503 = vmatpush1.msra.mxu0 %v59
    %504 = vmatprep.subr.mxu0 0.0
    %505 = vmatpush1.msra.mxu0 %v58
    %506 = vmatprep.subr.mxu0 0.0
    %507 = vmatpush1.msra.mxu0 %v57
    %508 = vmatprep.subr.mxu0 0.0
    %509 = vmatpush1.msra.mxu0 %v56
    %510 = vmatprep.subr.mxu0 0.0
    %511 = vmatpush2.msra.mxu0 0.0
    %512 = vmatprep.subr.mxu0 0.0
    %513 = vmatpush2.msra.mxu0 0.0
    %514 = vmatprep.subr.mxu0 0.0
    %515 = vmatpush2.msra.mxu0 0.0
    %516 = vmatprep.subr.mxu0 0.0
    %517 = vmatpush2.msra.mxu0 0.0
    %518 = vmatprep.subr.mxu0 0.0
    %519 = vmatpush2.msra.mxu0 0.0
    %520 = vmatprep.subr.mxu0 0.0
    %521 = vmatpush2.msra.mxu0 0.0
    %522 = vmatprep.subr.mxu0 0.0
    %523 = vmatpush2.msra.mxu0 0.0
    %524 = vmatprep.subr.mxu0 0.0
    %525 = vmatpush2.msra.mxu0 0.0
    %526 = vmatprep.subr.mxu0 0.0
    %527 = vmatpush2.msra.mxu0 0.0
    %528 = vmatprep.subr.mxu0 0.0
    %529 = vmatpush2.msra.mxu0 0.0
    %530 = vmatprep.subr.mxu0 0.0
    %531 = vmatpush2.msra.mxu0 0.0
    %532 = vmatprep.subr.mxu0 0.0
    %533 = vmatpush2.msra.mxu0 0.0
    %534 = vmatprep.subr.mxu0 0.0
    %535 = vmatpush2.msra.mxu0 0.0
    %536 = vmatprep.subr.mxu0 0.0
    %537 = vmatpush2.msra.mxu0 0.0
    %538 = vmatprep.subr.mxu0 0.0
    %539 = vmatpush2.msra.mxu0 0.0
    %540 = vmatprep.subr.mxu0 0.0
    %541 = vmatpush2.msra.mxu0 0.0
    %542 = vmatprep.mubr.f32.mxu0 0.0
    %543 = vmatmul.mubr.f32.gmra.mxu0 %v406
    %v544 = vpop.f32.mrf.mxu0
    %v545 = vadd.f32 %v475, %v544
    %v546 = vpop.f32.mrf.mxu0
    %547 = vdwg.mxu0
    %v548 = vmax.f32 %v385, %v545
    %v549 = vld [vmem:[%s3] sm:$0x3f]
    %v551 = vcombine.high %v549, %v549
    %v553 = vunpack.c.l.s4 1983009808
    %v554 = vunpack.c.0.s8 %v553
    %v555 = vlaneseq
    %v556 = vshrl.u32 %v555, 7
    %v557 = vsub.s32 %v554, %v556
    %v558 = vrot.slane %v549, %v557
    %v560 = vunpack.c.l.s4 1983009808
    %v561 = vunpack.c.0.s8 %v560
    %v562 = vlaneseq
    %v563 = vshrl.u32 %v562, 7
    %v564 = vsub.s32 %v561, %v563
    %v565 = vrot.slane %v551, %v564
    %v566 = vcombine.high %v558, %v558
    %v569 = vsel %vm80, %v565, 0
    %571 = vmatprep.subr.mxu0 0.0
    %572 = vmatpush1.msra.mxu0 %v39
    %573 = vmatprep.subr.mxu0 0.0
    %574 = vmatpush1.msra.mxu0 %v38
    %575 = vmatprep.subr.mxu0 0.0
    %576 = vmatpush1.msra.mxu0 %v37
    %577 = vmatprep.subr.mxu0 0.0
    %578 = vmatpush1.msra.mxu0 %v36
    %579 = vmatprep.subr.mxu0 0.0
    %580 = vmatpush1.msra.mxu0 %v35
    %581 = vmatprep.subr.mxu0 0.0
    %582 = vmatpush1.msra.mxu0 %v34
    %583 = vmatprep.subr.mxu0 0.0
    %584 = vmatpush1.msra.mxu0 %v33
    %585 = vmatprep.subr.mxu0 0.0
    %586 = vmatpush1.msra.mxu0 %v32
    %587 = vmatprep.subr.mxu0 0.0
    %588 = vmatpush1.msra.mxu0 %v31
    %589 = vmatprep.subr.mxu0 0.0
    %590 = vmatpush1.msra.mxu0 %v30
    %591 = vmatprep.subr.mxu0 0.0
    %592 = vmatpush1.msra.mxu0 %v29
    %593 = vmatprep.subr.mxu0 0.0
    %594 = vmatpush1.msra.mxu0 %v28
    %595 = vmatprep.subr.mxu0 0.0
    %596 = vmatpush1.msra.mxu0 %v27
    %597 = vmatprep.subr.mxu0 0.0
    %598 = vmatpush1.msra.mxu0 %v26
    %599 = vmatprep.subr.mxu0 0.0
    %600 = vmatpush1.msra.mxu0 %v25
    %601 = vmatprep.subr.mxu0 0.0
    %602 = vmatpush1.msra.mxu0 %v24
    %603 = vmatprep.subr.mxu0 0.0
    %604 = vmatpush2.msra.mxu0 %v55
    %605 = vmatprep.subr.mxu0 0.0
    %606 = vmatpush2.msra.mxu0 %v54
    %607 = vmatprep.subr.mxu0 0.0
    %608 = vmatpush2.msra.mxu0 %v53
    %609 = vmatprep.subr.mxu0 0.0
    %610 = vmatpush2.msra.mxu0 %v52
    %611 = vmatprep.subr.mxu0 0.0
    %612 = vmatpush2.msra.mxu0 %v51
    %613 = vmatprep.subr.mxu0 0.0
    %614 = vmatpush2.msra.mxu0 %v50
    %615 = vmatprep.subr.mxu0 0.0
    %616 = vmatpush2.msra.mxu0 %v49
    %617 = vmatprep.subr.mxu0 0.0
    %618 = vmatpush2.msra.mxu0 %v48
    %619 = vmatprep.subr.mxu0 0.0
    %620 = vmatpush2.msra.mxu0 %v47
    %621 = vmatprep.subr.mxu0 0.0
    %622 = vmatpush2.msra.mxu0 %v46
    %623 = vmatprep.subr.mxu0 0.0
    %624 = vmatpush2.msra.mxu0 %v45
    %625 = vmatprep.subr.mxu0 0.0
    %626 = vmatpush2.msra.mxu0 %v44
    %627 = vmatprep.subr.mxu0 0.0
    %628 = vmatpush2.msra.mxu0 %v43
    %629 = vmatprep.subr.mxu0 0.0
    %630 = vmatpush2.msra.mxu0 %v42
    %631 = vmatprep.subr.mxu0 0.0
    %632 = vmatpush2.msra.mxu0 %v41
    %633 = vmatprep.subr.mxu0 0.0
    %634 = vmatpush2.msra.mxu0 %v40
    %635 = vmatprep.mubr.f32.mxu0 %v566
    %636 = vmatmul.mubr.f32.gmra.mxu0 %v558
    %v637 = vpop.f32.mrf.mxu0
    %v638 = vadd.f32 0.0, %v637
    %v639 = vpop.f32.mrf.mxu0
    %640 = vdwg.mxu0
    %641 = vmatprep.subr.mxu0 0.0
    %642 = vmatpush1.msra.mxu0 0.0
    %643 = vmatprep.subr.mxu0 0.0
    %644 = vmatpush1.msra.mxu0 0.0
    %645 = vmatprep.subr.mxu0 0.0
    %646 = vmatpush1.msra.mxu0 0.0
    %647 = vmatprep.subr.mxu0 0.0
    %648 = vmatpush1.msra.mxu0 0.0
    %649 = vmatprep.subr.mxu0 0.0
    %650 = vmatpush1.msra.mxu0 0.0
    %651 = vmatprep.subr.mxu0 0.0
    %652 = vmatpush1.msra.mxu0 0.0
    %653 = vmatprep.subr.mxu0 0.0
    %654 = vmatpush1.msra.mxu0 0.0
    %655 = vmatprep.subr.mxu0 0.0
    %656 = vmatpush1.msra.mxu0 0.0
    %657 = vmatprep.subr.mxu0 0.0
    %658 = vmatpush1.msra.mxu0 0.0
    %659 = vmatprep.subr.mxu0 0.0
    %660 = vmatpush1.msra.mxu0 0.0
    %661 = vmatprep.subr.mxu0 0.0
    %662 = vmatpush1.msra.mxu0 0.0
    %663 = vmatprep.subr.mxu0 0.0
    %664 = vmatpush1.msra.mxu0 0.0
    %665 = vmatprep.subr.mxu0 0.0
    %666 = vmatpush1.msra.mxu0 %v59
    %667 = vmatprep.subr.mxu0 0.0
    %668 = vmatpush1.msra.mxu0 %v58
    %669 = vmatprep.subr.mxu0 0.0
    %670 = vmatpush1.msra.mxu0 %v57
    %671 = vmatprep.subr.mxu0 0.0
    %672 = vmatpush1.msra.mxu0 %v56
    %673 = vmatprep.subr.mxu0 0.0
    %674 = vmatpush2.msra.mxu0 0.0
    %675 = vmatprep.subr.mxu0 0.0
    %676 = vmatpush2.msra.mxu0 0.0
    %677 = vmatprep.subr.mxu0 0.0
    %678 = vmatpush2.msra.mxu0 0.0
    %679 = vmatprep.subr.mxu0 0.0
    %680 = vmatpush2.msra.mxu0 0.0
    %681 = vmatprep.subr.mxu0 0.0
    %682 = vmatpush2.msra.mxu0 0.0
    %683 = vmatprep.subr.mxu0 0.0
    %684 = vmatpush2.msra.mxu0 0.0
    %685 = vmatprep.subr.mxu0 0.0
    %686 = vmatpush2.msra.mxu0 0.0
    %687 = vmatprep.subr.mxu0 0.0
    %688 = vmatpush2.msra.mxu0 0.0
    %689 = vmatprep.subr.mxu0 0.0
    %690 = vmatpush2.msra.mxu0 0.0
    %691 = vmatprep.subr.mxu0 0.0
    %692 = vmatpush2.msra.mxu0 0.0
    %693 = vmatprep.subr.mxu0 0.0
    %694 = vmatpush2.msra.mxu0 0.0
    %695 = vmatprep.subr.mxu0 0.0
    %696 = vmatpush2.msra.mxu0 0.0
    %697 = vmatprep.subr.mxu0 0.0
    %698 = vmatpush2.msra.mxu0 0.0
    %699 = vmatprep.subr.mxu0 0.0
    %700 = vmatpush2.msra.mxu0 0.0
    %701 = vmatprep.subr.mxu0 0.0
    %702 = vmatpush2.msra.mxu0 0.0
    %703 = vmatprep.subr.mxu0 0.0
    %704 = vmatpush2.msra.mxu0 0.0
    %705 = vmatprep.mubr.f32.mxu0 0.0
    %706 = vmatmul.mubr.f32.gmra.mxu0 %v569
    %v707 = vpop.f32.mrf.mxu0
    %v708 = vadd.f32 %v638, %v707
    %v709 = vpop.f32.mrf.mxu0
    %710 = vdwg.mxu0
    %v711 = vmax.f32 %v548, %v708
    %v712 = vld [vmem:[%s5] sm:$0x1]
    %v714 = vlaneseq
    %v715 = vshrl.u32 %v714, 7
    %v716 = vsub.s32 0, %v715
    %v717 = vrot.slane %v712, %v716
    %v719 = vadd.f32 %v711, %v717
    %v720 = vmax.f32 %v719, 0.0
    %vm721 = vcmask 254976
    %722 = vst.msk [vmem:[#allocation2] sm:$0x3] %vm721, %v720
    // Predicated region
    $region26: #{_feature_forward_impl.7} parent=1 // pred_check
      _
    $region27: #{_feature_forward_impl.7} parent=1 // pred_check_branch
      %724 = sbr.rel (0) target = $region29
    $region28: #{_feature_forward_impl.7} parent=1 // pred_region
      %s726 = ssub.s32 32, 32
      %727 = vsyncadd [#allocation3], %s726
      %s729 = sshll.u32 [#allocation2], 4
      %s730 = int_to_ptr.vmem [resolvable:$true] %s729
      %732 = dma.vmem_to_hbm [thread:$0]  %s730, 32, %s6, [#allocation3]
    $region29: #{_feature_forward_impl.7} parent=1 // pred_fallthru
      _
    // Predicated region
    $region30: #{_feature_forward_impl.7} parent=1 // pred_check
      _
    $region31: #{_feature_forward_impl.7} parent=1 // pred_check_branch
      %734 = sbr.rel (0) target = $region33
    $region32: #{_feature_forward_impl.7} parent=1 // pred_region
      %735 = dma.done [#allocation3], 32
    $region33: #{_feature_forward_impl.7} parent=1 // pred_fallthru
      _
    %736 = vsyncpa [#allocation3], 1

</llo_original>
